<compile_context>
chip_gen: v6e
topology: v6e:2x2x1
jax: 0.10.0
libtpu: 0.0.40
codegen_flags: <defaults>
</compile_context>

<pallas_src>
import jax
import jax.numpy as jnp
from jax.experimental import pallas as pl
from jax.experimental.pallas import tpu as pltpu

IN_DIM = 28 * 28   # 784
HID = 800
OUT_DIM = 10
OUT_PAD = 128      # lane-dense padded output width
DEFAULT_TB = 256   # batch tile: safe on v7x (64 MiB VMEM); v5e/v6e have headroom


def _round_up(n, m):
    return (n + m - 1) // m * m


def _mlp_kernel(x_ref, w1_ref, b1_ref, w2_ref, b2_ref, w3_ref, b3_ref, o_ref):
    # Layer 1: (TB, 784)bf16 @ (784, 800)bf16 -> f32 acc, + bias, ReLU
    h1 = jnp.dot(x_ref[...], w1_ref[...], preferred_element_type=jnp.float32)
    h1 = jnp.maximum(h1 + b1_ref[...], 0.0).astype(jnp.bfloat16)
    # Layer 2: (TB, 800) @ (800, 800)
    h2 = jnp.dot(h1, w2_ref[...], preferred_element_type=jnp.float32)
    h2 = jnp.maximum(h2 + b2_ref[...], 0.0).astype(jnp.bfloat16)
    # Layer 3: (TB, 800) @ (800, 128-padded)
    o = jnp.dot(h2, w3_ref[...], preferred_element_type=jnp.float32)
    o_ref[...] = (o + b3_ref[...]).astype(o_ref.dtype)


def prepare_params(params):
    """One-time param prep (hoisted out of the per-call path):
    transpose to (in, out), cast weights to bf16, zero-pad the final layer to
    128 output lanes, reshape biases to (1, N) f32."""
    w1, b1, w2, b2, w3, b3 = params
    w1t = w1.T.astype(jnp.bfloat16)                                   # (784, 800)
    w2t = w2.T.astype(jnp.bfloat16)                                   # (800, 800)
    w3t = jnp.zeros((HID, OUT_PAD), jnp.bfloat16).at[:, :OUT_DIM].set(
        w3.T.astype(jnp.bfloat16))                                    # (800, 128)
    b1r = b1.reshape(1, HID).astype(jnp.float32)
    b2r = b2.reshape(1, HID).astype(jnp.float32)
    b3r = jnp.zeros((1, OUT_PAD), jnp.float32).at[:, :OUT_DIM].set(
        b3.astype(jnp.float32))
    return (w1t, b1r, w2t, b2r, w3t, b3r)


def student_net_forward(x, prepared, *, tb=DEFAULT_TB):
    """x: any shape whose rows flatten to 784 (e.g. (B, 1, 28, 28))."""
    w1t, b1r, w2t, b2r, w3t, b3r = prepared

    x2d = x.reshape(-1, IN_DIM).astype(jnp.bfloat16)      # x.view(-1, 28*28)
    B = x2d.shape[0]
    TB = min(tb, _round_up(B, 16))                        # small batches: one tile
    Bp = _round_up(B, TB)
    if Bp != B:
        x2d = jnp.pad(x2d, ((0, Bp - B), (0, 0)))
    nb = Bp // TB

    # Weights/biases: constant block index -> stay VMEM-resident across steps.
    resident = lambda shape: pl.BlockSpec(shape, lambda i: (0, 0))

    out_padded = pl.pallas_call(
        _mlp_kernel,
        out_shape=jax.ShapeDtypeStruct((Bp, OUT_PAD), jnp.float32),
        grid=(nb,),
        in_specs=[
            pl.BlockSpec((TB, IN_DIM), lambda i: (i, 0)),   # x: batch-tiled
            resident((IN_DIM, HID)),                        # w1
            resident((1, HID)),                             # b1
            resident((HID, HID)),                           # w2
            resident((1, HID)),                             # b2
            resident((HID, OUT_PAD)),                       # w3 (lane-padded)
            resident((1, OUT_PAD)),                         # b3 (lane-padded)
        ],
        out_specs=pl.BlockSpec((TB, OUT_PAD), lambda i: (i, 0)),
        compiler_params=pltpu.CompilerParams(
            dimension_semantics=("parallel",),
            vmem_limit_bytes=32 << 20),
    )(x2d, w1t, b1r, w2t, b2r, w3t, b3r)

    return out_padded[:B, :OUT_DIM]


def init_params(key):
    """Deterministic init mimicking nn.Linear's U(-1/sqrt(fan_in), 1/sqrt(fan_in))."""
    def linear(k, fan_in, fan_out):
        kw, kb = jax.random.split(k)
        bound = 1.0 / jnp.sqrt(fan_in)
        w = jax.random.uniform(kw, (fan_out, fan_in), jnp.float32, -bound, bound)
        b = jax.random.uniform(kb, (fan_out,), jnp.float32, -bound, bound)
        return w, b

    k1, k2, k3 = jax.random.split(key, 3)
    w1, b1 = linear(k1, IN_DIM, HID)
    w2, b2 = linear(k2, HID, HID)
    w3, b3 = linear(k3, HID, OUT_DIM)
    return (w1, b1, w2, b2, w3, b3)


def _reference_bf16(x, params):
    """Pure-JAX reference applying the same bf16 quantization as the kernel."""
    w1, b1, w2, b2, w3, b3 = params
    h = x.reshape(-1, IN_DIM).astype(jnp.bfloat16)
    h = jnp.maximum(
        jnp.dot(h, w1.T.astype(jnp.bfloat16),
                preferred_element_type=jnp.float32) + b1, 0.0).astype(jnp.bfloat16)
    h = jnp.maximum(
        jnp.dot(h, w2.T.astype(jnp.bfloat16),
                preferred_element_type=jnp.float32) + b2, 0.0).astype(jnp.bfloat16)
    return jnp.dot(h, w3.T.astype(jnp.bfloat16),
                   preferred_element_type=jnp.float32) + b3


if __name__ == "__main__":
    key = jax.random.PRNGKey(0)
    kx, kp = jax.random.split(key)
    params = init_params(kp)
    prepared = prepare_params(params)        # one-time (hoisted) param prep

    # MNIST-like input: batch=8, 1x28x28 images.
    x = jax.random.normal(kx, (8, 1, 28, 28), jnp.float32)

    out = student_net_forward(x, prepared)
    out = jax.block_until_ready(out)

    ref = _reference_bf16(x, params)
    assert out.shape == (8, OUT_DIM)
    assert jnp.allclose(out, ref, atol=1e-2, rtol=1e-2), (
        float(jnp.max(jnp.abs(out - ref))))

    print("KERNEL_OK")
</pallas_src>

<mosaic_0001>
module attributes {stable_mosaic.version = 11 : i64} {
  func.func @_mlp_kernel(%arg0: i32, %arg1: memref<16x784xbf16, #tpu.memory_space<vmem>>, %arg2: memref<784x800xbf16, #tpu.memory_space<vmem>>, %arg3: memref<1x800xf32, #tpu.memory_space<vmem>>, %arg4: memref<800x800xbf16, #tpu.memory_space<vmem>>, %arg5: memref<1x800xf32, #tpu.memory_space<vmem>>, %arg6: memref<800x128xbf16, #tpu.memory_space<vmem>>, %arg7: memref<1x128xf32, #tpu.memory_space<vmem>>, %arg8: memref<16x128xf32, #tpu.memory_space<vmem>>) attributes {dimension_semantics = [#tpu.dimension_semantics<parallel>], iteration_bounds = array<i64: 1>, scalar_prefetch = 0 : i64, scratch_operands = 0 : i64, tpu.core_type = #tpu.core_type<tc>, window_params = [{transform_indices = @transform_0, window_bounds = array<i64: 16, 784>}, {pipeline_mode = #tpu.pipeline_mode<synchronous>, transform_indices = @transform_1, window_bounds = array<i64: 784, 800>}, {pipeline_mode = #tpu.pipeline_mode<synchronous>, transform_indices = @transform_2, window_bounds = array<i64: 1, 800>}, {pipeline_mode = #tpu.pipeline_mode<synchronous>, transform_indices = @transform_3, window_bounds = array<i64: 800, 800>}, {pipeline_mode = #tpu.pipeline_mode<synchronous>, transform_indices = @transform_4, window_bounds = array<i64: 1, 800>}, {pipeline_mode = #tpu.pipeline_mode<synchronous>, transform_indices = @transform_5, window_bounds = array<i64: 800, 128>}, {pipeline_mode = #tpu.pipeline_mode<synchronous>, transform_indices = @transform_6, window_bounds = array<i64: 1, 128>}, {transform_indices = @transform_7, window_bounds = array<i64: 16, 128>}]} {
    %c0 = arith.constant 0 : index
    %c0_0 = arith.constant 0 : index
    %0 = vector.load %arg1[%c0, %c0_0] : memref<16x784xbf16, #tpu.memory_space<vmem>>, vector<16x784xbf16>
    %c0_1 = arith.constant 0 : index
    %c0_2 = arith.constant 0 : index
    %1 = vector.load %arg2[%c0_1, %c0_2] : memref<784x800xbf16, #tpu.memory_space<vmem>>, vector<784x800xbf16>
    %cst = arith.constant dense<0.000000e+00> : vector<16x800xf32>
    %2 = tpu.matmul %0, %1, %cst {dimension_numbers = #tpu.dot_dimension_numbers<[1], [0], [0], [1], [0, 0, 1, 1], [], []>} : vector<16x784xbf16>, vector<784x800xbf16>, vector<16x800xf32> -> vector<16x800xf32>
    %c0_3 = arith.constant 0 : index
    %c0_4 = arith.constant 0 : index
    %3 = vector.load %arg3[%c0_3, %c0_4] : memref<1x800xf32, #tpu.memory_space<vmem>>, vector<1x800xf32>
    %4 = vector.broadcast %3 : vector<1x800xf32> to vector<16x800xf32>
    %5 = arith.addf %2, %4 : vector<16x800xf32>
    %cst_5 = arith.constant 0.000000e+00 : f32
    %6 = vector.broadcast %cst_5 : f32 to vector<16x800xf32>
    %7 = arith.maximumf %5, %6 : vector<16x800xf32>
    %8 = arith.truncf %7 : vector<16x800xf32> to vector<16x800xbf16>
    %c0_6 = arith.constant 0 : index
    %c0_7 = arith.constant 0 : index
    %9 = vector.load %arg4[%c0_6, %c0_7] : memref<800x800xbf16, #tpu.memory_space<vmem>>, vector<800x800xbf16>
    %cst_8 = arith.constant dense<0.000000e+00> : vector<16x800xf32>
    %10 = tpu.matmul %8, %9, %cst_8 {dimension_numbers = #tpu.dot_dimension_numbers<[1], [0], [0], [1], [0, 0, 1, 1], [], []>} : vector<16x800xbf16>, vector<800x800xbf16>, vector<16x800xf32> -> vector<16x800xf32>
    %c0_9 = arith.constant 0 : index
    %c0_10 = arith.constant 0 : index
    %11 = vector.load %arg5[%c0_9, %c0_10] : memref<1x800xf32, #tpu.memory_space<vmem>>, vector<1x800xf32>
    %12 = vector.broadcast %11 : vector<1x800xf32> to vector<16x800xf32>
    %13 = arith.addf %10, %12 : vector<16x800xf32>
    %cst_11 = arith.constant 0.000000e+00 : f32
    %14 = vector.broadcast %cst_11 : f32 to vector<16x800xf32>
    %15 = arith.maximumf %13, %14 : vector<16x800xf32>
    %16 = arith.truncf %15 : vector<16x800xf32> to vector<16x800xbf16>
    %c0_12 = arith.constant 0 : index
    %c0_13 = arith.constant 0 : index
    %17 = vector.load %arg6[%c0_12, %c0_13] : memref<800x128xbf16, #tpu.memory_space<vmem>>, vector<800x128xbf16>
    %cst_14 = arith.constant dense<0.000000e+00> : vector<16x128xf32>
    %18 = tpu.matmul %16, %17, %cst_14 {dimension_numbers = #tpu.dot_dimension_numbers<[1], [0], [0], [1], [0, 0, 1, 1], [], []>} : vector<16x800xbf16>, vector<800x128xbf16>, vector<16x128xf32> -> vector<16x128xf32>
    %c0_15 = arith.constant 0 : index
    %c0_16 = arith.constant 0 : index
    %19 = vector.load %arg7[%c0_15, %c0_16] : memref<1x128xf32, #tpu.memory_space<vmem>>, vector<1x128xf32>
    %20 = vector.broadcast %19 : vector<1x128xf32> to vector<16x128xf32>
    %21 = arith.addf %18, %20 : vector<16x128xf32>
    %c0_17 = arith.constant 0 : index
    %c0_18 = arith.constant 0 : index
    %22 = vector.load %arg8[%c0_17, %c0_18] : memref<16x128xf32, #tpu.memory_space<vmem>>, vector<16x128xf32>
    tpu.vector_store %arg8[%c0_17, %c0_18], %21 {strides = array<i32>} : memref<16x128xf32, #tpu.memory_space<vmem>>, vector<16x128xf32>,
    return
  }
  func.func @transform_0(%arg0: i32) -> (i32, i32) {
    %c0_i32 = arith.constant 0 : i32
    %c0_i32_0 = arith.constant 0 : i32
    return %arg0, %c0_i32 : i32, i32
  }
  func.func @transform_1(%arg0: i32) -> (i32, i32) {
    %c0_i32 = arith.constant 0 : i32
    %c0_i32_0 = arith.constant 0 : i32
    %c0_i32_1 = arith.constant 0 : i32
    return %c0_i32, %c0_i32_0 : i32, i32
  }
  func.func @transform_2(%arg0: i32) -> (i32, i32) {
    %c0_i32 = arith.constant 0 : i32
    %c0_i32_0 = arith.constant 0 : i32
    %c0_i32_1 = arith.constant 0 : i32
    return %c0_i32, %c0_i32_0 : i32, i32
  }
  func.func @transform_3(%arg0: i32) -> (i32, i32) {
    %c0_i32 = arith.constant 0 : i32
    %c0_i32_0 = arith.constant 0 : i32
    %c0_i32_1 = arith.constant 0 : i32
    return %c0_i32, %c0_i32_0 : i32, i32
  }
  func.func @transform_4(%arg0: i32) -> (i32, i32) {
    %c0_i32 = arith.constant 0 : i32
    %c0_i32_0 = arith.constant 0 : i32
    %c0_i32_1 = arith.constant 0 : i32
    return %c0_i32, %c0_i32_0 : i32, i32
  }
  func.func @transform_5(%arg0: i32) -> (i32, i32) {
    %c0_i32 = arith.constant 0 : i32
    %c0_i32_0 = arith.constant 0 : i32
    %c0_i32_1 = arith.constant 0 : i32
    return %c0_i32, %c0_i32_0 : i32, i32
  }
  func.func @transform_6(%arg0: i32) -> (i32, i32) {
    %c0_i32 = arith.constant 0 : i32
    %c0_i32_0 = arith.constant 0 : i32
    %c0_i32_1 = arith.constant 0 : i32
    return %c0_i32, %c0_i32_0 : i32, i32
  }
  func.func @transform_7(%arg0: i32) -> (i32, i32) {
    %c0_i32 = arith.constant 0 : i32
    %c0_i32_0 = arith.constant 0 : i32
    return %arg0, %c0_i32 : i32, i32
  }
}

</mosaic_0001>

<llo_original>
// kernel: tpu_custom_call.1
$region0: #{tpu_custom_call.1}
  #allocation0 [shape = 'u32[]', space=smem, size = 0x4, offset = 0x4, fixed_abs, tag = 'smem constant byte address 0x4 - core index']
  #allocation1 [shape = 'u32[144,128]{1,0:T(1,128)}', space=vmem, size = 0x12000, scoped, tag = 'internal scratch']
  %s0 = inlined_call_operand.hbm [shape: bf16[16,784], index: 0, kind: input, shape index: {}]
  %s1 = inlined_call_operand.hbm [shape: bf16[784,800], index: 1, kind: input, shape index: {}]
  %s2 = inlined_call_operand.hbm [shape: f32[1,800], index: 2, kind: input, shape index: {}]
  %s3 = inlined_call_operand.hbm [shape: bf16[800,800], index: 3, kind: input, shape index: {}]
  %s4 = inlined_call_operand.hbm [shape: f32[1,800], index: 4, kind: input, shape index: {}]
  %s5 = inlined_call_operand.hbm [shape: bf16[800,128], index: 5, kind: input, shape index: {}]
  %s6 = inlined_call_operand.hbm [shape: f32[1,128], index: 6, kind: input, shape index: {}]
  %s7 = inlined_call_operand.hbm [shape: f32[16,128], index: 7, kind: output, shape index: {}]
  %s8 = sld [smem:[#allocation0]]
  $region66: #{tpu_custom_call.1} parent=0
    _
  %s10 = ssub.s32 1, %s8
  %s11 = scalar_select 0, %s10, %s8
  $region1: #{tpu_custom_call.1} parent=0
    #allocation2 [shape = 'u8[28672]{0}', space=vmem, size = 0x7000, scoped, tag = 'input window, operand 0, single buffered']
    #allocation3 [shape = 's32[1]{0}', space=sflag, size = 0x4, scoped, tag = 'scoped memory for tpu_custom_call.1']
    #allocation4 [shape = 's32[1]{0}', space=sflag, size = 0x4, scoped, tag = 'scoped memory for tpu_custom_call.1']
    #allocation5 [shape = 'u8[1404928]{0}', space=vmem, size = 0x157000, scoped, tag = 'input window, operand 1, single buffered']
    #allocation6 [shape = 's32[1]{0}', space=sflag, size = 0x4, scoped, tag = 'scoped memory for tpu_custom_call.1']
    #allocation7 [shape = 'u8[3584]{0}', space=vmem, size = 0x1000, scoped, tag = 'input window, operand 2, single buffered']
    #allocation8 [shape = 'u8[1433600]{0}', space=vmem, size = 0x15e000, scoped, tag = 'input window, operand 3, single buffered']
    #allocation9 [shape = 's32[1]{0}', space=sflag, size = 0x4, scoped, tag = 'scoped memory for tpu_custom_call.1']
    #allocation10 [shape = 'u8[3584]{0}', space=vmem, size = 0x1000, scoped, tag = 'input window, operand 4, single buffered']
    #allocation11 [shape = 'u8[204800]{0}', space=vmem, size = 0x32000, scoped, tag = 'input window, operand 5, single buffered']
    #allocation12 [shape = 's32[1]{0}', space=sflag, size = 0x4, scoped, tag = 'scoped memory for tpu_custom_call.1']
    #allocation13 [shape = 'u8[512]{0}', space=vmem, size = 0x400, scoped, tag = 'input window, operand 6, single buffered']
    #allocation14 [shape = 'u8[8192]{0}', space=vmem, size = 0x2000, scoped, tag = 'output window, operand 0, single buffered']
    %12 = vsyncpa [#allocation3], 0
    %13 = vsyncpa [#allocation6], 0
    %14 = vsyncpa [#allocation9], 0
    %15 = vsyncpa [#allocation12], 0
    %16 = vsyncpa [#allocation4], 0
    // Predicated region
    $region2: #{tpu_custom_call.1} parent=1 // pred_check
      _
    $region3: #{tpu_custom_call.1} parent=1 // pred_check_branch
      %18 = sbr.rel (0) target = $region5
    $region4: #{tpu_custom_call.1} parent=1 // pred_region
      %s20 = ssub.s32 896, 896
      %21 = vsyncadd [#allocation3], %s20
      %s22 = sshll.u32 [#allocation2], 4
      %s23 = int_to_ptr.vmem [resolvable:$true] %s22
      %28 = dma.hbm_to_vmem [thread:$0]  %s0, 896, %s23, [#allocation3], 448, 448, 28
    $region5: #{tpu_custom_call.1} parent=1 // pred_fallthru
      _
    // Predicated region
    $region6: #{tpu_custom_call.1} parent=1 // pred_check
      _
    $region7: #{tpu_custom_call.1} parent=1 // pred_check_branch
      %30 = sbr.rel (0) target = $region9
    $region8: #{tpu_custom_call.1} parent=1 // pred_region
      %s32 = ssub.s32 43904, 43904
      %33 = vsyncadd [#allocation6], %s32
      %s34 = sshll.u32 [#allocation5], 4
      %s35 = int_to_ptr.vmem [resolvable:$true] %s34
      %40 = dma.hbm_to_vmem [thread:$0]  %s1, 43904, %s35, [#allocation6], 448, 448, 28
    $region9: #{tpu_custom_call.1} parent=1 // pred_fallthru
      _
    // Predicated region
    $region10: #{tpu_custom_call.1} parent=1 // pred_check
      _
    $region11: #{tpu_custom_call.1} parent=1 // pred_check_branch
      %42 = sbr.rel (0) target = $region13
    $region12: #{tpu_custom_call.1} parent=1 // pred_region
      %s44 = ssub.s32 112, 112
      %45 = vsyncadd [#allocation6], %s44
      %s47 = sshll.u32 [#allocation7], 4
      %s48 = int_to_ptr.vmem [resolvable:$true] %s47
      %50 = dma.hbm_to_vmem [thread:$0]  %s2, 112, %s48, [#allocation6]
    $region13: #{tpu_custom_call.1} parent=1 // pred_fallthru
      _
    // Predicated region
    $region14: #{tpu_custom_call.1} parent=1 // pred_check
      _
    $region15: #{tpu_custom_call.1} parent=1 // pred_check_branch
      %52 = sbr.rel (0) target = $region17
    $region16: #{tpu_custom_call.1} parent=1 // pred_region
      %s54 = ssub.s32 44800, 44800
      %55 = vsyncadd [#allocation9], %s54
      %s56 = sshll.u32 [#allocation8], 4
      %s57 = int_to_ptr.vmem [resolvable:$true] %s56
      %62 = dma.hbm_to_vmem [thread:$0]  %s3, 44800, %s57, [#allocation9], 448, 448, 28
    $region17: #{tpu_custom_call.1} parent=1 // pred_fallthru
      _
    // Predicated region
    $region18: #{tpu_custom_call.1} parent=1 // pred_check
      _
    $region19: #{tpu_custom_call.1} parent=1 // pred_check_branch
      %64 = sbr.rel (0) target = $region21
    $region20: #{tpu_custom_call.1} parent=1 // pred_region
      %s66 = ssub.s32 112, 112
      %67 = vsyncadd [#allocation9], %s66
      %s69 = sshll.u32 [#allocation10], 4
      %s70 = int_to_ptr.vmem [resolvable:$true] %s69
      %72 = dma.hbm_to_vmem [thread:$0]  %s4, 112, %s70, [#allocation9]
    $region21: #{tpu_custom_call.1} parent=1 // pred_fallthru
      _
    // Predicated region
    $region22: #{tpu_custom_call.1} parent=1 // pred_check
      _
    $region23: #{tpu_custom_call.1} parent=1 // pred_check_branch
      %74 = sbr.rel (0) target = $region25
    $region24: #{tpu_custom_call.1} parent=1 // pred_region
      %s76 = ssub.s32 6400, 6400
      %77 = vsyncadd [#allocation12], %s76
      %s78 = sshll.u32 [#allocation11], 4
      %s79 = int_to_ptr.vmem [resolvable:$true] %s78
      %84 = dma.hbm_to_vmem [thread:$0]  %s5, 6400, %s79, [#allocation12], 64, 64, 4
    $region25: #{tpu_custom_call.1} parent=1 // pred_fallthru
      _
    // Predicated region
    $region26: #{tpu_custom_call.1} parent=1 // pred_check
      _
    $region27: #{tpu_custom_call.1} parent=1 // pred_check_branch
      %86 = sbr.rel (0) target = $region29
    $region28: #{tpu_custom_call.1} parent=1 // pred_region
      %s88 = ssub.s32 16, 16
      %89 = vsyncadd [#allocation12], %s88
      %s91 = sshll.u32 [#allocation13], 4
      %s92 = int_to_ptr.vmem [resolvable:$true] %s91
      %94 = dma.hbm_to_vmem [thread:$0]  %s6, 16, %s92, [#allocation12]
    $region29: #{tpu_custom_call.1} parent=1 // pred_fallthru
      _
    // Predicated region
    $region30: #{tpu_custom_call.1} parent=1 // pred_check
      _
    $region31: #{tpu_custom_call.1} parent=1 // pred_check_branch
      %96 = sbr.rel (0) target = $region33
    $region32: #{tpu_custom_call.1} parent=1 // pred_region
      %97 = dma.done [#allocation3], 896
    $region33: #{tpu_custom_call.1} parent=1 // pred_fallthru
      _
    // Predicated region
    $region34: #{tpu_custom_call.1} parent=1 // pred_check
      _
    $region35: #{tpu_custom_call.1} parent=1 // pred_check_branch
      %99 = sbr.rel (0) target = $region37
    $region36: #{tpu_custom_call.1} parent=1 // pred_region
      %100 = dma.done [#allocation6], 43904
    $region37: #{tpu_custom_call.1} parent=1 // pred_fallthru
      _
    // Predicated region
    $region38: #{tpu_custom_call.1} parent=1 // pred_check
      _
    $region39: #{tpu_custom_call.1} parent=1 // pred_check_branch
      %102 = sbr.rel (0) target = $region41
    $region40: #{tpu_custom_call.1} parent=1 // pred_region
      %103 = dma.done [#allocation6], 112
    $region41: #{tpu_custom_call.1} parent=1 // pred_fallthru
      _
    // Predicated region
    $region42: #{tpu_custom_call.1} parent=1 // pred_check
      _
    $region43: #{tpu_custom_call.1} parent=1 // pred_check_branch
      %105 = sbr.rel (0) target = $region45
    $region44: #{tpu_custom_call.1} parent=1 // pred_region
      %106 = dma.done [#allocation9], 44800
    $region45: #{tpu_custom_call.1} parent=1 // pred_fallthru
      _
    // Predicated region
    $region46: #{tpu_custom_call.1} parent=1 // pred_check
      _
    $region47: #{tpu_custom_call.1} parent=1 // pred_check_branch
      %108 = sbr.rel (0) target = $region49
    $region48: #{tpu_custom_call.1} parent=1 // pred_region
      %109 = dma.done [#allocation9], 112
    $region49: #{tpu_custom_call.1} parent=1 // pred_fallthru
      _
    // Predicated region
    $region50: #{tpu_custom_call.1} parent=1 // pred_check
      _
    $region51: #{tpu_custom_call.1} parent=1 // pred_check_branch
      %111 = sbr.rel (0) target = $region53
    $region52: #{tpu_custom_call.1} parent=1 // pred_region
      %112 = dma.done [#allocation12], 6400
    $region53: #{tpu_custom_call.1} parent=1 // pred_fallthru
      _
    // Predicated region
    $region54: #{tpu_custom_call.1} parent=1 // pred_check
      _
    $region55: #{tpu_custom_call.1} parent=1 // pred_check_branch
      %114 = sbr.rel (0) target = $region57
    $region56: #{tpu_custom_call.1} parent=1 // pred_region
      %115 = dma.done [#allocation12], 16
    $region57: #{tpu_custom_call.1} parent=1 // pred_fallthru
      _
    %v117 = vld [vmem:[#allocation2] sm:$0xff]
    %v118 = vld [vmem:[#allocation2 + $0x8] sm:$0xff]
    %v119 = vld [vmem:[#allocation2 + $0x10] sm:$0xff]
    %v120 = vld [vmem:[#allocation2 + $0x18] sm:$0xf]
    %v121 = vld [vmem:[#allocation2 + $0x1c] sm:$0xff]
    %v122 = vld [vmem:[#allocation2 + $0x24] sm:$0xff]
    %v123 = vld [vmem:[#allocation2 + $0x2c] sm:$0xff]
    %v124 = vld [vmem:[#allocation2 + $0x34] sm:$0xf]
    %v125 = vld [vmem:[#allocation5] sm:$0xff]
    %v126 = vld [vmem:[#allocation5 + $0x8] sm:$0xff]
    %v127 = vld [vmem:[#allocation5 + $0x10] sm:$0xff]
    %v128 = vld [vmem:[#allocation5 + $0x18] sm:$0xf]
    %v129 = vld [vmem:[#allocation5 + $0x1c] sm:$0xff]
    %v130 = vld [vmem:[#allocation5 + $0x24] sm:$0xff]
    %v131 = vld [vmem:[#allocation5 + $0x2c] sm:$0xff]
    %v132 = vld [vmem:[#allocation5 + $0x34] sm:$0xf]
    %v133 = vld [vmem:[#allocation5 + $0x38] sm:$0xff]
    %v134 = vld [vmem:[#allocation5 + $0x40] sm:$0xff]
    %v135 = vld [vmem:[#allocation5 + $0x48] sm:$0xff]
    %v136 = vld [vmem:[#allocation5 + $0x50] sm:$0xf]
    %v137 = vld [vmem:[#allocation5 + $0x54] sm:$0xff]
    %v138 = vld [vmem:[#allocation5 + $0x5c] sm:$0xff]
    %v139 = vld [vmem:[#allocation5 + $0x64] sm:$0xff]
    %v140 = vld [vmem:[#allocation5 + $0x6c] sm:$0xf]
    %v141 = vld [vmem:[#allocation5 + $0x70] sm:$0xff]
    %v142 = vld [vmem:[#allocation5 + $0x78] sm:$0xff]
    %v143 = vld [vmem:[#allocation5 + $0x80] sm:$0xff]
    %v144 = vld [vmem:[#allocation5 + $0x88] sm:$0xf]
    %v145 = vld [vmem:[#allocation5 + $0x8c] sm:$0xff]
    %v146 = vld [vmem:[#allocation5 + $0x94] sm:$0xff]
    %v147 = vld [vmem:[#allocation5 + $0x9c] sm:$0xff]
    %v148 = vld [vmem:[#allocation5 + $0xa4] sm:$0xf]
    %v149 = vld [vmem:[#allocation5 + $0xa8] sm:$0xff]
    %v150 = vld [vmem:[#allocation5 + $0xb0] sm:$0xff]
    %v151 = vld [vmem:[#allocation5 + $0xb8] sm:$0xff]
    %v152 = vld [vmem:[#allocation5 + $0xc0] sm:$0xf]
    %v153 = vld [vmem:[#allocation5 + $0xc4] sm:$0xff]
    %v154 = vld [vmem:[#allocation5 + $0xcc] sm:$0xff]
    %v155 = vld [vmem:[#allocation5 + $0xd4] sm:$0xff]
    %v156 = vld [vmem:[#allocation5 + $0xdc] sm:$0xf]
    %v157 = vld [vmem:[#allocation5 + $0xe0] sm:$0xff]
    %v158 = vld [vmem:[#allocation5 + $0xe8] sm:$0xff]
    %v159 = vld [vmem:[#allocation5 + $0xf0] sm:$0xff]
    %v160 = vld [vmem:[#allocation5 + $0xf8] sm:$0xf]
    %v161 = vld [vmem:[#allocation5 + $0xfc] sm:$0xff]
    %v162 = vld [vmem:[#allocation5 + $0x104] sm:$0xff]
    %v163 = vld [vmem:[#allocation5 + $0x10c] sm:$0xff]
    %v164 = vld [vmem:[#allocation5 + $0x114] sm:$0xf]
    %v165 = vld [vmem:[#allocation5 + $0x118] sm:$0xff]
    %v166 = vld [vmem:[#allocation5 + $0x120] sm:$0xff]
    %v167 = vld [vmem:[#allocation5 + $0x128] sm:$0xff]
    %v168 = vld [vmem:[#allocation5 + $0x130] sm:$0xf]
    %v169 = vld [vmem:[#allocation5 + $0x134] sm:$0xff]
    %v170 = vld [vmem:[#allocation5 + $0x13c] sm:$0xff]
    %v171 = vld [vmem:[#allocation5 + $0x144] sm:$0xff]
    %v172 = vld [vmem:[#allocation5 + $0x14c] sm:$0xf]
    %v173 = vld [vmem:[#allocation5 + $0x150] sm:$0xff]
    %v174 = vld [vmem:[#allocation5 + $0x158] sm:$0xff]
    %v175 = vld [vmem:[#allocation5 + $0x160] sm:$0xff]
    %v176 = vld [vmem:[#allocation5 + $0x168] sm:$0xf]
    %v177 = vld [vmem:[#allocation5 + $0x16c] sm:$0xff]
    %v178 = vld [vmem:[#allocation5 + $0x174] sm:$0xff]
    %v179 = vld [vmem:[#allocation5 + $0x17c] sm:$0xff]
    %v180 = vld [vmem:[#allocation5 + $0x184] sm:$0xf]
    %v181 = vld [vmem:[#allocation5 + $0x188] sm:$0xff]
    %v182 = vld [vmem:[#allocation5 + $0x190] sm:$0xff]
    %v183 = vld [vmem:[#allocation5 + $0x198] sm:$0xff]
    %v184 = vld [vmem:[#allocation5 + $0x1a0] sm:$0xf]
    %v185 = vld [vmem:[#allocation5 + $0x1a4] sm:$0xff]
    %v186 = vld [vmem:[#allocation5 + $0x1ac] sm:$0xff]
    %v187 = vld [vmem:[#allocation5 + $0x1b4] sm:$0xff]
    %v188 = vld [vmem:[#allocation5 + $0x1bc] sm:$0xf]
    %v189 = vld [vmem:[#allocation5 + $0x1c0] sm:$0xff]
    %v190 = vld [vmem:[#allocation5 + $0x1c8] sm:$0xff]
    %v191 = vld [vmem:[#allocation5 + $0x1d0] sm:$0xff]
    %v192 = vld [vmem:[#allocation5 + $0x1d8] sm:$0xf]
    %v193 = vld [vmem:[#allocation5 + $0x1dc] sm:$0xff]
    %v194 = vld [vmem:[#allocation5 + $0x1e4] sm:$0xff]
    %v195 = vld [vmem:[#allocation5 + $0x1ec] sm:$0xff]
    %v196 = vld [vmem:[#allocation5 + $0x1f4] sm:$0xf]
    %v197 = vld [vmem:[#allocation5 + $0x1f8] sm:$0xff]
    %v198 = vld [vmem:[#allocation5 + $0x200] sm:$0xff]
    %v199 = vld [vmem:[#allocation5 + $0x208] sm:$0xff]
    %v200 = vld [vmem:[#allocation5 + $0x210] sm:$0xf]
    %v201 = vld [vmem:[#allocation5 + $0x214] sm:$0xff]
    %v202 = vld [vmem:[#allocation5 + $0x21c] sm:$0xff]
    %v203 = vld [vmem:[#allocation5 + $0x224] sm:$0xff]
    %v204 = vld [vmem:[#allocation5 + $0x22c] sm:$0xf]
    %v205 = vld [vmem:[#allocation5 + $0x230] sm:$0xff]
    %v206 = vld [vmem:[#allocation5 + $0x238] sm:$0xff]
    %v207 = vld [vmem:[#allocation5 + $0x240] sm:$0xff]
    %v208 = vld [vmem:[#allocation5 + $0x248] sm:$0xf]
    %v209 = vld [vmem:[#allocation5 + $0x24c] sm:$0xff]
    %v210 = vld [vmem:[#allocation5 + $0x254] sm:$0xff]
    %v211 = vld [vmem:[#allocation5 + $0x25c] sm:$0xff]
    %v212 = vld [vmem:[#allocation5 + $0x264] sm:$0xf]
    %v213 = vld [vmem:[#allocation5 + $0x268] sm:$0xff]
    %v214 = vld [vmem:[#allocation5 + $0x270] sm:$0xff]
    %v215 = vld [vmem:[#allocation5 + $0x278] sm:$0xff]
    %v216 = vld [vmem:[#allocation5 + $0x280] sm:$0xf]
    %v217 = vld [vmem:[#allocation5 + $0x284] sm:$0xff]
    %v218 = vld [vmem:[#allocation5 + $0x28c] sm:$0xff]
    %v219 = vld [vmem:[#allocation5 + $0x294] sm:$0xff]
    %v220 = vld [vmem:[#allocation5 + $0x29c] sm:$0xf]
    %v221 = vld [vmem:[#allocation5 + $0x2a0] sm:$0xff]
    %v222 = vld [vmem:[#allocation5 + $0x2a8] sm:$0xff]
    %v223 = vld [vmem:[#allocation5 + $0x2b0] sm:$0xff]
    %v224 = vld [vmem:[#allocation5 + $0x2b8] sm:$0xf]
    %v225 = vld [vmem:[#allocation5 + $0x2bc] sm:$0xff]
    %v226 = vld [vmem:[#allocation5 + $0x2c4] sm:$0xff]
    %v227 = vld [vmem:[#allocation5 + $0x2cc] sm:$0xff]
    %v228 = vld [vmem:[#allocation5 + $0x2d4] sm:$0xf]
    %v229 = vld [vmem:[#allocation5 + $0x2d8] sm:$0xff]
    %v230 = vld [vmem:[#allocation5 + $0x2e0] sm:$0xff]
    %v231 = vld [vmem:[#allocation5 + $0x2e8] sm:$0xff]
    %v232 = vld [vmem:[#allocation5 + $0x2f0] sm:$0xf]
    %v233 = vld [vmem:[#allocation5 + $0x2f4] sm:$0xff]
    %v234 = vld [vmem:[#allocation5 + $0x2fc] sm:$0xff]
    %v235 = vld [vmem:[#allocation5 + $0x304] sm:$0xff]
    %v236 = vld [vmem:[#allocation5 + $0x30c] sm:$0xf]
    %v237 = vld [vmem:[#allocation5 + $0x310] sm:$0xff]
    %v238 = vld [vmem:[#allocation5 + $0x318] sm:$0xff]
    %v239 = vld [vmem:[#allocation5 + $0x320] sm:$0xff]
    %v240 = vld [vmem:[#allocation5 + $0x328] sm:$0xf]
    %v241 = vld [vmem:[#allocation5 + $0x32c] sm:$0xff]
    %v242 = vld [vmem:[#allocation5 + $0x334] sm:$0xff]
    %v243 = vld [vmem:[#allocation5 + $0x33c] sm:$0xff]
    %v244 = vld [vmem:[#allocation5 + $0x344] sm:$0xf]
    %v245 = vld [vmem:[#allocation5 + $0x348] sm:$0xff]
    %v246 = vld [vmem:[#allocation5 + $0x350] sm:$0xff]
    %v247 = vld [vmem:[#allocation5 + $0x358] sm:$0xff]
    %v248 = vld [vmem:[#allocation5 + $0x360] sm:$0xf]
    %v249 = vld [vmem:[#allocation5 + $0x364] sm:$0xff]
    %v250 = vld [vmem:[#allocation5 + $0x36c] sm:$0xff]
    %v251 = vld [vmem:[#allocation5 + $0x374] sm:$0xff]
    %v252 = vld [vmem:[#allocation5 + $0x37c] sm:$0xf]
    %v253 = vld [vmem:[#allocation5 + $0x380] sm:$0xff]
    %v254 = vld [vmem:[#allocation5 + $0x388] sm:$0xff]
    %v255 = vld [vmem:[#allocation5 + $0x390] sm:$0xff]
    %v256 = vld [vmem:[#allocation5 + $0x398] sm:$0xf]
    %v257 = vld [vmem:[#allocation5 + $0x39c] sm:$0xff]
    %v258 = vld [vmem:[#allocation5 + $0x3a4] sm:$0xff]
    %v259 = vld [vmem:[#allocation5 + $0x3ac] sm:$0xff]
    %v260 = vld [vmem:[#allocation5 + $0x3b4] sm:$0xf]
    %v261 = vld [vmem:[#allocation5 + $0x3b8] sm:$0xff]
    %v262 = vld [vmem:[#allocation5 + $0x3c0] sm:$0xff]
    %v263 = vld [vmem:[#allocation5 + $0x3c8] sm:$0xff]
    %v264 = vld [vmem:[#allocation5 + $0x3d0] sm:$0xf]
    %v265 = vld [vmem:[#allocation5 + $0x3d4] sm:$0xff]
    %v266 = vld [vmem:[#allocation5 + $0x3dc] sm:$0xff]
    %v267 = vld [vmem:[#allocation5 + $0x3e4] sm:$0xff]
    %v268 = vld [vmem:[#allocation5 + $0x3ec] sm:$0xf]
    %v269 = vld [vmem:[#allocation5 + $0x3f0] sm:$0xff]
    %v270 = vld [vmem:[#allocation5 + $0x3f8] sm:$0xff]
    %v271 = vld [vmem:[#allocation5 + $0x400] sm:$0xff]
    %v272 = vld [vmem:[#allocation5 + $0x408] sm:$0xf]
    %v273 = vld [vmem:[#allocation5 + $0x40c] sm:$0xff]
    %v274 = vld [vmem:[#allocation5 + $0x414] sm:$0xff]
    %v275 = vld [vmem:[#allocation5 + $0x41c] sm:$0xff]
    %v276 = vld [vmem:[#allocation5 + $0x424] sm:$0xf]
    %v277 = vld [vmem:[#allocation5 + $0x428] sm:$0xff]
    %v278 = vld [vmem:[#allocation5 + $0x430] sm:$0xff]
    %v279 = vld [vmem:[#allocation5 + $0x438] sm:$0xff]
    %v280 = vld [vmem:[#allocation5 + $0x440] sm:$0xf]
    %v281 = vld [vmem:[#allocation5 + $0x444] sm:$0xff]
    %v282 = vld [vmem:[#allocation5 + $0x44c] sm:$0xff]
    %v283 = vld [vmem:[#allocation5 + $0x454] sm:$0xff]
    %v284 = vld [vmem:[#allocation5 + $0x45c] sm:$0xf]
    %v285 = vld [vmem:[#allocation5 + $0x460] sm:$0xff]
    %v286 = vld [vmem:[#allocation5 + $0x468] sm:$0xff]
    %v287 = vld [vmem:[#allocation5 + $0x470] sm:$0xff]
    %v288 = vld [vmem:[#allocation5 + $0x478] sm:$0xf]
    %v289 = vld [vmem:[#allocation5 + $0x47c] sm:$0xff]
    %v290 = vld [vmem:[#allocation5 + $0x484] sm:$0xff]
    %v291 = vld [vmem:[#allocation5 + $0x48c] sm:$0xff]
    %v292 = vld [vmem:[#allocation5 + $0x494] sm:$0xf]
    %v293 = vld [vmem:[#allocation5 + $0x498] sm:$0xff]
    %v294 = vld [vmem:[#allocation5 + $0x4a0] sm:$0xff]
    %v295 = vld [vmem:[#allocation5 + $0x4a8] sm:$0xff]
    %v296 = vld [vmem:[#allocation5 + $0x4b0] sm:$0xf]
    %v297 = vld [vmem:[#allocation5 + $0x4b4] sm:$0xff]
    %v298 = vld [vmem:[#allocation5 + $0x4bc] sm:$0xff]
    %v299 = vld [vmem:[#allocation5 + $0x4c4] sm:$0xff]
    %v300 = vld [vmem:[#allocation5 + $0x4cc] sm:$0xf]
    %v301 = vld [vmem:[#allocation5 + $0x4d0] sm:$0xff]
    %v302 = vld [vmem:[#allocation5 + $0x4d8] sm:$0xff]
    %v303 = vld [vmem:[#allocation5 + $0x4e0] sm:$0xff]
    %v304 = vld [vmem:[#allocation5 + $0x4e8] sm:$0xf]
    %v305 = vld [vmem:[#allocation5 + $0x4ec] sm:$0xff]
    %v306 = vld [vmem:[#allocation5 + $0x4f4] sm:$0xff]
    %v307 = vld [vmem:[#allocation5 + $0x4fc] sm:$0xff]
    %v308 = vld [vmem:[#allocation5 + $0x504] sm:$0xf]
    %v309 = vld [vmem:[#allocation5 + $0x508] sm:$0xff]
    %v310 = vld [vmem:[#allocation5 + $0x510] sm:$0xff]
    %v311 = vld [vmem:[#allocation5 + $0x518] sm:$0xff]
    %v312 = vld [vmem:[#allocation5 + $0x520] sm:$0xf]
    %v313 = vld [vmem:[#allocation5 + $0x524] sm:$0xff]
    %v314 = vld [vmem:[#allocation5 + $0x52c] sm:$0xff]
    %v315 = vld [vmem:[#allocation5 + $0x534] sm:$0xff]
    %v316 = vld [vmem:[#allocation5 + $0x53c] sm:$0xf]
    %v317 = vld [vmem:[#allocation5 + $0x540] sm:$0xff]
    %v318 = vld [vmem:[#allocation5 + $0x548] sm:$0xff]
    %v319 = vld [vmem:[#allocation5 + $0x550] sm:$0xff]
    %v320 = vld [vmem:[#allocation5 + $0x558] sm:$0xf]
    %v321 = vld [vmem:[#allocation5 + $0x55c] sm:$0xff]
    %v322 = vld [vmem:[#allocation5 + $0x564] sm:$0xff]
    %v323 = vld [vmem:[#allocation5 + $0x56c] sm:$0xff]
    %v324 = vld [vmem:[#allocation5 + $0x574] sm:$0xf]
    %v325 = vld [vmem:[#allocation5 + $0x578] sm:$0xff]
    %v326 = vld [vmem:[#allocation5 + $0x580] sm:$0xff]
    %v327 = vld [vmem:[#allocation5 + $0x588] sm:$0xff]
    %v328 = vld [vmem:[#allocation5 + $0x590] sm:$0xf]
    %v329 = vld [vmem:[#allocation5 + $0x594] sm:$0xff]
    %v330 = vld [vmem:[#allocation5 + $0x59c] sm:$0xff]
    %v331 = vld [vmem:[#allocation5 + $0x5a4] sm:$0xff]
    %v332 = vld [vmem:[#allocation5 + $0x5ac] sm:$0xf]
    %v333 = vld [vmem:[#allocation5 + $0x5b0] sm:$0xff]
    %v334 = vld [vmem:[#allocation5 + $0x5b8] sm:$0xff]
    %v335 = vld [vmem:[#allocation5 + $0x5c0] sm:$0xff]
    %v336 = vld [vmem:[#allocation5 + $0x5c8] sm:$0xf]
    %v337 = vld [vmem:[#allocation5 + $0x5cc] sm:$0xff]
    %v338 = vld [vmem:[#allocation5 + $0x5d4] sm:$0xff]
    %v339 = vld [vmem:[#allocation5 + $0x5dc] sm:$0xff]
    %v340 = vld [vmem:[#allocation5 + $0x5e4] sm:$0xf]
    %v341 = vld [vmem:[#allocation5 + $0x5e8] sm:$0xff]
    %v342 = vld [vmem:[#allocation5 + $0x5f0] sm:$0xff]
    %v343 = vld [vmem:[#allocation5 + $0x5f8] sm:$0xff]
    %v344 = vld [vmem:[#allocation5 + $0x600] sm:$0xf]
    %v345 = vld [vmem:[#allocation5 + $0x604] sm:$0xff]
    %v346 = vld [vmem:[#allocation5 + $0x60c] sm:$0xff]
    %v347 = vld [vmem:[#allocation5 + $0x614] sm:$0xff]
    %v348 = vld [vmem:[#allocation5 + $0x61c] sm:$0xf]
    %v349 = vld [vmem:[#allocation5 + $0x620] sm:$0xff]
    %v350 = vld [vmem:[#allocation5 + $0x628] sm:$0xff]
    %v351 = vld [vmem:[#allocation5 + $0x630] sm:$0xff]
    %v352 = vld [vmem:[#allocation5 + $0x638] sm:$0xf]
    %v353 = vld [vmem:[#allocation5 + $0x63c] sm:$0xff]
    %v354 = vld [vmem:[#allocation5 + $0x644] sm:$0xff]
    %v355 = vld [vmem:[#allocation5 + $0x64c] sm:$0xff]
    %v356 = vld [vmem:[#allocation5 + $0x654] sm:$0xf]
    %v357 = vld [vmem:[#allocation5 + $0x658] sm:$0xff]
    %v358 = vld [vmem:[#allocation5 + $0x660] sm:$0xff]
    %v359 = vld [vmem:[#allocation5 + $0x668] sm:$0xff]
    %v360 = vld [vmem:[#allocation5 + $0x670] sm:$0xf]
    %v361 = vld [vmem:[#allocation5 + $0x674] sm:$0xff]
    %v362 = vld [vmem:[#allocation5 + $0x67c] sm:$0xff]
    %v363 = vld [vmem:[#allocation5 + $0x684] sm:$0xff]
    %v364 = vld [vmem:[#allocation5 + $0x68c] sm:$0xf]
    %v365 = vld [vmem:[#allocation5 + $0x690] sm:$0xff]
    %v366 = vld [vmem:[#allocation5 + $0x698] sm:$0xff]
    %v367 = vld [vmem:[#allocation5 + $0x6a0] sm:$0xff]
    %v368 = vld [vmem:[#allocation5 + $0x6a8] sm:$0xf]
    %v369 = vld [vmem:[#allocation5 + $0x6ac] sm:$0xff]
    %v370 = vld [vmem:[#allocation5 + $0x6b4] sm:$0xff]
    %v371 = vld [vmem:[#allocation5 + $0x6bc] sm:$0xff]
    %v372 = vld [vmem:[#allocation5 + $0x6c4] sm:$0xf]
    %v373 = vld [vmem:[#allocation5 + $0x6c8] sm:$0xff]
    %v374 = vld [vmem:[#allocation5 + $0x6d0] sm:$0xff]
    %v375 = vld [vmem:[#allocation5 + $0x6d8] sm:$0xff]
    %v376 = vld [vmem:[#allocation5 + $0x6e0] sm:$0xf]
    %v377 = vld [vmem:[#allocation5 + $0x6e4] sm:$0xff]
    %v378 = vld [vmem:[#allocation5 + $0x6ec] sm:$0xff]
    %v379 = vld [vmem:[#allocation5 + $0x6f4] sm:$0xff]
    %v380 = vld [vmem:[#allocation5 + $0x6fc] sm:$0xf]
    %v381 = vld [vmem:[#allocation5 + $0x700] sm:$0xff]
    %v382 = vld [vmem:[#allocation5 + $0x708] sm:$0xff]
    %v383 = vld [vmem:[#allocation5 + $0x710] sm:$0xff]
    %v384 = vld [vmem:[#allocation5 + $0x718] sm:$0xf]
    %v385 = vld [vmem:[#allocation5 + $0x71c] sm:$0xff]
    %v386 = vld [vmem:[#allocation5 + $0x724] sm:$0xff]
    %v387 = vld [vmem:[#allocation5 + $0x72c] sm:$0xff]
    %v388 = vld [vmem:[#allocation5 + $0x734] sm:$0xf]
    %v389 = vld [vmem:[#allocation5 + $0x738] sm:$0xff]
    %v390 = vld [vmem:[#allocation5 + $0x740] sm:$0xff]
    %v391 = vld [vmem:[#allocation5 + $0x748] sm:$0xff]
    %v392 = vld [vmem:[#allocation5 + $0x750] sm:$0xf]
    %v393 = vld [vmem:[#allocation5 + $0x754] sm:$0xff]
    %v394 = vld [vmem:[#allocation5 + $0x75c] sm:$0xff]
    %v395 = vld [vmem:[#allocation5 + $0x764] sm:$0xff]
    %v396 = vld [vmem:[#allocation5 + $0x76c] sm:$0xf]
    %v397 = vld [vmem:[#allocation5 + $0x770] sm:$0xff]
    %v398 = vld [vmem:[#allocation5 + $0x778] sm:$0xff]
    %v399 = vld [vmem:[#allocation5 + $0x780] sm:$0xff]
    %v400 = vld [vmem:[#allocation5 + $0x788] sm:$0xf]
    %v401 = vld [vmem:[#allocation5 + $0x78c] sm:$0xff]
    %v402 = vld [vmem:[#allocation5 + $0x794] sm:$0xff]
    %v403 = vld [vmem:[#allocation5 + $0x79c] sm:$0xff]
    %v404 = vld [vmem:[#allocation5 + $0x7a4] sm:$0xf]
    %v405 = vld [vmem:[#allocation5 + $0x7a8] sm:$0xff]
    %v406 = vld [vmem:[#allocation5 + $0x7b0] sm:$0xff]
    %v407 = vld [vmem:[#allocation5 + $0x7b8] sm:$0xff]
    %v408 = vld [vmem:[#allocation5 + $0x7c0] sm:$0xf]
    %v409 = vld [vmem:[#allocation5 + $0x7c4] sm:$0xff]
    %v410 = vld [vmem:[#allocation5 + $0x7cc] sm:$0xff]
    %v411 = vld [vmem:[#allocation5 + $0x7d4] sm:$0xff]
    %v412 = vld [vmem:[#allocation5 + $0x7dc] sm:$0xf]
    %v413 = vld [vmem:[#allocation5 + $0x7e0] sm:$0xff]
    %v414 = vld [vmem:[#allocation5 + $0x7e8] sm:$0xff]
    %v415 = vld [vmem:[#allocation5 + $0x7f0] sm:$0xff]
    %v416 = vld [vmem:[#allocation5 + $0x7f8] sm:$0xf]
    %v417 = vld [vmem:[#allocation5 + $0x7fc] sm:$0xff]
    %v418 = vld [vmem:[#allocation5 + $0x804] sm:$0xff]
    %v419 = vld [vmem:[#allocation5 + $0x80c] sm:$0xff]
    %v420 = vld [vmem:[#allocation5 + $0x814] sm:$0xf]
    %v421 = vld [vmem:[#allocation5 + $0x818] sm:$0xff]
    %v422 = vld [vmem:[#allocation5 + $0x820] sm:$0xff]
    %v423 = vld [vmem:[#allocation5 + $0x828] sm:$0xff]
    %v424 = vld [vmem:[#allocation5 + $0x830] sm:$0xf]
    %v425 = vld [vmem:[#allocation5 + $0x834] sm:$0xff]
    %v426 = vld [vmem:[#allocation5 + $0x83c] sm:$0xff]
    %v427 = vld [vmem:[#allocation5 + $0x844] sm:$0xff]
    %v428 = vld [vmem:[#allocation5 + $0x84c] sm:$0xf]
    %v429 = vld [vmem:[#allocation5 + $0x850] sm:$0xff]
    %v430 = vld [vmem:[#allocation5 + $0x858] sm:$0xff]
    %v431 = vld [vmem:[#allocation5 + $0x860] sm:$0xff]
    %v432 = vld [vmem:[#allocation5 + $0x868] sm:$0xf]
    %v433 = vld [vmem:[#allocation5 + $0x86c] sm:$0xff]
    %v434 = vld [vmem:[#allocation5 + $0x874] sm:$0xff]
    %v435 = vld [vmem:[#allocation5 + $0x87c] sm:$0xff]
    %v436 = vld [vmem:[#allocation5 + $0x884] sm:$0xf]
    %v437 = vld [vmem:[#allocation5 + $0x888] sm:$0xff]
    %v438 = vld [vmem:[#allocation5 + $0x890] sm:$0xff]
    %v439 = vld [vmem:[#allocation5 + $0x898] sm:$0xff]
    %v440 = vld [vmem:[#allocation5 + $0x8a0] sm:$0xf]
    %v441 = vld [vmem:[#allocation5 + $0x8a4] sm:$0xff]
    %v442 = vld [vmem:[#allocation5 + $0x8ac] sm:$0xff]
    %v443 = vld [vmem:[#allocation5 + $0x8b4] sm:$0xff]
    %v444 = vld [vmem:[#allocation5 + $0x8bc] sm:$0xf]
    %v445 = vld [vmem:[#allocation5 + $0x8c0] sm:$0xff]
    %v446 = vld [vmem:[#allocation5 + $0x8c8] sm:$0xff]
    %v447 = vld [vmem:[#allocation5 + $0x8d0] sm:$0xff]
    %v448 = vld [vmem:[#allocation5 + $0x8d8] sm:$0xf]
    %v449 = vld [vmem:[#allocation5 + $0x8dc] sm:$0xff]
    %v450 = vld [vmem:[#allocation5 + $0x8e4] sm:$0xff]
    %v451 = vld [vmem:[#allocation5 + $0x8ec] sm:$0xff]
    %v452 = vld [vmem:[#allocation5 + $0x8f4] sm:$0xf]
    %v453 = vld [vmem:[#allocation5 + $0x8f8] sm:$0xff]
    %v454 = vld [vmem:[#allocation5 + $0x900] sm:$0xff]
    %v455 = vld [vmem:[#allocation5 + $0x908] sm:$0xff]
    %v456 = vld [vmem:[#allocation5 + $0x910] sm:$0xf]
    %v457 = vld [vmem:[#allocation5 + $0x914] sm:$0xff]
    %v458 = vld [vmem:[#allocation5 + $0x91c] sm:$0xff]
    %v459 = vld [vmem:[#allocation5 + $0x924] sm:$0xff]
    %v460 = vld [vmem:[#allocation5 + $0x92c] sm:$0xf]
    %v461 = vld [vmem:[#allocation5 + $0x930] sm:$0xff]
    %v462 = vld [vmem:[#allocation5 + $0x938] sm:$0xff]
    %v463 = vld [vmem:[#allocation5 + $0x940] sm:$0xff]
    %v464 = vld [vmem:[#allocation5 + $0x948] sm:$0xf]
    %v465 = vld [vmem:[#allocation5 + $0x94c] sm:$0xff]
    %v466 = vld [vmem:[#allocation5 + $0x954] sm:$0xff]
    %v467 = vld [vmem:[#allocation5 + $0x95c] sm:$0xff]
    %v468 = vld [vmem:[#allocation5 + $0x964] sm:$0xf]
    %v469 = vld [vmem:[#allocation5 + $0x968] sm:$0xff]
    %v470 = vld [vmem:[#allocation5 + $0x970] sm:$0xff]
    %v471 = vld [vmem:[#allocation5 + $0x978] sm:$0xff]
    %v472 = vld [vmem:[#allocation5 + $0x980] sm:$0xf]
    %v473 = vld [vmem:[#allocation5 + $0x984] sm:$0xff]
    %v474 = vld [vmem:[#allocation5 + $0x98c] sm:$0xff]
    %v475 = vld [vmem:[#allocation5 + $0x994] sm:$0xff]
    %v476 = vld [vmem:[#allocation5 + $0x99c] sm:$0xf]
    %v477 = vld [vmem:[#allocation5 + $0x9a0] sm:$0xff]
    %v478 = vld [vmem:[#allocation5 + $0x9a8] sm:$0xff]
    %v479 = vld [vmem:[#allocation5 + $0x9b0] sm:$0xff]
    %v480 = vld [vmem:[#allocation5 + $0x9b8] sm:$0xf]
    %v481 = vld [vmem:[#allocation5 + $0x9bc] sm:$0xff]
    %v482 = vld [vmem:[#allocation5 + $0x9c4] sm:$0xff]
    %v483 = vld [vmem:[#allocation5 + $0x9cc] sm:$0xff]
    %v484 = vld [vmem:[#allocation5 + $0x9d4] sm:$0xf]
    %v485 = vld [vmem:[#allocation5 + $0x9d8] sm:$0xff]
    %v486 = vld [vmem:[#allocation5 + $0x9e0] sm:$0xff]
    %v487 = vld [vmem:[#allocation5 + $0x9e8] sm:$0xff]
    %v488 = vld [vmem:[#allocation5 + $0x9f0] sm:$0xf]
    %v489 = vld [vmem:[#allocation5 + $0x9f4] sm:$0xff]
    %v490 = vld [vmem:[#allocation5 + $0x9fc] sm:$0xff]
    %v491 = vld [vmem:[#allocation5 + $0xa04] sm:$0xff]
    %v492 = vld [vmem:[#allocation5 + $0xa0c] sm:$0xf]
    %v493 = vld [vmem:[#allocation5 + $0xa10] sm:$0xff]
    %v494 = vld [vmem:[#allocation5 + $0xa18] sm:$0xff]
    %v495 = vld [vmem:[#allocation5 + $0xa20] sm:$0xff]
    %v496 = vld [vmem:[#allocation5 + $0xa28] sm:$0xf]
    %v497 = vld [vmem:[#allocation5 + $0xa2c] sm:$0xff]
    %v498 = vld [vmem:[#allocation5 + $0xa34] sm:$0xff]
    %v499 = vld [vmem:[#allocation5 + $0xa3c] sm:$0xff]
    %v500 = vld [vmem:[#allocation5 + $0xa44] sm:$0xf]
    %v501 = vld [vmem:[#allocation5 + $0xa48] sm:$0xff]
    %v502 = vld [vmem:[#allocation5 + $0xa50] sm:$0xff]
    %v503 = vld [vmem:[#allocation5 + $0xa58] sm:$0xff]
    %v504 = vld [vmem:[#allocation5 + $0xa60] sm:$0xf]
    %v505 = vld [vmem:[#allocation5 + $0xa64] sm:$0xff]
    %v506 = vld [vmem:[#allocation5 + $0xa6c] sm:$0xff]
    %v507 = vld [vmem:[#allocation5 + $0xa74] sm:$0xff]
    %v508 = vld [vmem:[#allocation5 + $0xa7c] sm:$0xf]
    %v509 = vld [vmem:[#allocation5 + $0xa80] sm:$0xff]
    %v510 = vld [vmem:[#allocation5 + $0xa88] sm:$0xff]
    %v511 = vld [vmem:[#allocation5 + $0xa90] sm:$0xff]
    %v512 = vld [vmem:[#allocation5 + $0xa98] sm:$0xf]
    %v513 = vld [vmem:[#allocation5 + $0xa9c] sm:$0xff]
    %v514 = vld [vmem:[#allocation5 + $0xaa4] sm:$0xff]
    %v515 = vld [vmem:[#allocation5 + $0xaac] sm:$0xff]
    %v516 = vld [vmem:[#allocation5 + $0xab4] sm:$0xf]
    %v517 = vld [vmem:[#allocation7] sm:$0x7f]
    %v519 = vlaneseq
    %v520 = vshrl.u32 %v519, 7
    %v521 = vsub.s32 0, %v520
    %v522 = vrot.slane %v517, %v521
    %v523 = vlaneseq
    %v524 = vshrl.u32 %v523, 7
    %v525 = vsub.s32 1, %v524
    %v526 = vrot.slane %v517, %v525
    %v527 = vlaneseq
    %v528 = vshrl.u32 %v527, 7
    %v529 = vsub.s32 2, %v528
    %v530 = vrot.slane %v517, %v529
    %v531 = vlaneseq
    %v532 = vshrl.u32 %v531, 7
    %v533 = vsub.s32 3, %v532
    %v534 = vrot.slane %v517, %v533
    %v535 = vlaneseq
    %v536 = vshrl.u32 %v535, 7
    %v537 = vsub.s32 4, %v536
    %v538 = vrot.slane %v517, %v537
    %v539 = vlaneseq
    %v540 = vshrl.u32 %v539, 7
    %v541 = vsub.s32 5, %v540
    %v542 = vrot.slane %v517, %v541
    %v543 = vlaneseq
    %v544 = vshrl.u32 %v543, 7
    %v545 = vsub.s32 6, %v544
    %v546 = vrot.slane %v517, %v545
    %v562 = vunpack.c.l.b16 %v117
    %v563 = vunpack.c.h.b16 %v117
    %v564 = vunpack.c.l.b16 %v118
    %v565 = vunpack.c.h.b16 %v118
    %v566 = vunpack.c.l.b16 %v119
    %v567 = vunpack.c.h.b16 %v119
    %v568 = vunpack.c.l.b16 %v120
    %v569 = vunpack.c.l.b16 %v121
    %v570 = vunpack.c.h.b16 %v121
    %v571 = vunpack.c.l.b16 %v122
    %v572 = vunpack.c.h.b16 %v122
    %v573 = vunpack.c.l.b16 %v123
    %v574 = vunpack.c.h.b16 %v123
    %v575 = vunpack.c.l.b16 %v124
    %v576 = vpack.c.b16 %v569, %v562
    %v577 = vpack.c.b16 %v570, %v563
    %v578 = vpack.c.b16 %v571, %v564
    %v579 = vpack.c.b16 %v572, %v565
    %v580 = vpack.c.b16 %v573, %v566
    %v581 = vpack.c.b16 %v574, %v567
    %v582 = vpack.c.b16 %v575, %v568
    %v981 = vunpack.c.l.b16 %v125
    %v982 = vunpack.c.h.b16 %v125
    %v983 = vunpack.c.l.b16 %v126
    %v984 = vunpack.c.h.b16 %v126
    %v985 = vunpack.c.l.b16 %v127
    %v986 = vunpack.c.h.b16 %v127
    %v987 = vunpack.c.l.b16 %v128
    %v988 = vunpack.c.l.b16 %v129
    %v989 = vunpack.c.h.b16 %v129
    %v990 = vunpack.c.l.b16 %v130
    %v991 = vunpack.c.h.b16 %v130
    %v992 = vunpack.c.l.b16 %v131
    %v993 = vunpack.c.h.b16 %v131
    %v994 = vunpack.c.l.b16 %v132
    %v995 = vunpack.c.l.b16 %v133
    %v996 = vunpack.c.h.b16 %v133
    %v997 = vunpack.c.l.b16 %v134
    %v998 = vunpack.c.h.b16 %v134
    %v999 = vunpack.c.l.b16 %v135
    %v1000 = vunpack.c.h.b16 %v135
    %v1001 = vunpack.c.l.b16 %v136
    %v1002 = vunpack.c.l.b16 %v137
    %v1003 = vunpack.c.h.b16 %v137
    %v1004 = vunpack.c.l.b16 %v138
    %v1005 = vunpack.c.h.b16 %v138
    %v1006 = vunpack.c.l.b16 %v139
    %v1007 = vunpack.c.h.b16 %v139
    %v1008 = vunpack.c.l.b16 %v140
    %v1009 = vunpack.c.l.b16 %v141
    %v1010 = vunpack.c.h.b16 %v141
    %v1011 = vunpack.c.l.b16 %v142
    %v1012 = vunpack.c.h.b16 %v142
    %v1013 = vunpack.c.l.b16 %v143
    %v1014 = vunpack.c.h.b16 %v143
    %v1015 = vunpack.c.l.b16 %v144
    %v1016 = vunpack.c.l.b16 %v145
    %v1017 = vunpack.c.h.b16 %v145
    %v1018 = vunpack.c.l.b16 %v146
    %v1019 = vunpack.c.h.b16 %v146
    %v1020 = vunpack.c.l.b16 %v147
    %v1021 = vunpack.c.h.b16 %v147
    %v1022 = vunpack.c.l.b16 %v148
    %v1023 = vunpack.c.l.b16 %v149
    %v1024 = vunpack.c.h.b16 %v149
    %v1025 = vunpack.c.l.b16 %v150
    %v1026 = vunpack.c.h.b16 %v150
    %v1027 = vunpack.c.l.b16 %v151
    %v1028 = vunpack.c.h.b16 %v151
    %v1029 = vunpack.c.l.b16 %v152
    %v1030 = vunpack.c.l.b16 %v153
    %v1031 = vunpack.c.h.b16 %v153
    %v1032 = vunpack.c.l.b16 %v154
    %v1033 = vunpack.c.h.b16 %v154
    %v1034 = vunpack.c.l.b16 %v155
    %v1035 = vunpack.c.h.b16 %v155
    %v1036 = vunpack.c.l.b16 %v156
    %v1037 = vunpack.c.l.b16 %v157
    %v1038 = vunpack.c.h.b16 %v157
    %v1039 = vunpack.c.l.b16 %v158
    %v1040 = vunpack.c.h.b16 %v158
    %v1041 = vunpack.c.l.b16 %v159
    %v1042 = vunpack.c.h.b16 %v159
    %v1043 = vunpack.c.l.b16 %v160
    %v1044 = vunpack.c.l.b16 %v161
    %v1045 = vunpack.c.h.b16 %v161
    %v1046 = vunpack.c.l.b16 %v162
    %v1047 = vunpack.c.h.b16 %v162
    %v1048 = vunpack.c.l.b16 %v163
    %v1049 = vunpack.c.h.b16 %v163
    %v1050 = vunpack.c.l.b16 %v164
    %v1051 = vunpack.c.l.b16 %v165
    %v1052 = vunpack.c.h.b16 %v165
    %v1053 = vunpack.c.l.b16 %v166
    %v1054 = vunpack.c.h.b16 %v166
    %v1055 = vunpack.c.l.b16 %v167
    %v1056 = vunpack.c.h.b16 %v167
    %v1057 = vunpack.c.l.b16 %v168
    %v1058 = vunpack.c.l.b16 %v169
    %v1059 = vunpack.c.h.b16 %v169
    %v1060 = vunpack.c.l.b16 %v170
    %v1061 = vunpack.c.h.b16 %v170
    %v1062 = vunpack.c.l.b16 %v171
    %v1063 = vunpack.c.h.b16 %v171
    %v1064 = vunpack.c.l.b16 %v172
    %v1065 = vunpack.c.l.b16 %v173
    %v1066 = vunpack.c.h.b16 %v173
    %v1067 = vunpack.c.l.b16 %v174
    %v1068 = vunpack.c.h.b16 %v174
    %v1069 = vunpack.c.l.b16 %v175
    %v1070 = vunpack.c.h.b16 %v175
    %v1071 = vunpack.c.l.b16 %v176
    %v1072 = vunpack.c.l.b16 %v177
    %v1073 = vunpack.c.h.b16 %v177
    %v1074 = vunpack.c.l.b16 %v178
    %v1075 = vunpack.c.h.b16 %v178
    %v1076 = vunpack.c.l.b16 %v179
    %v1077 = vunpack.c.h.b16 %v179
    %v1078 = vunpack.c.l.b16 %v180
    %v1079 = vunpack.c.l.b16 %v181
    %v1080 = vunpack.c.h.b16 %v181
    %v1081 = vunpack.c.l.b16 %v182
    %v1082 = vunpack.c.h.b16 %v182
    %v1083 = vunpack.c.l.b16 %v183
    %v1084 = vunpack.c.h.b16 %v183
    %v1085 = vunpack.c.l.b16 %v184
    %v1086 = vunpack.c.l.b16 %v185
    %v1087 = vunpack.c.h.b16 %v185
    %v1088 = vunpack.c.l.b16 %v186
    %v1089 = vunpack.c.h.b16 %v186
    %v1090 = vunpack.c.l.b16 %v187
    %v1091 = vunpack.c.h.b16 %v187
    %v1092 = vunpack.c.l.b16 %v188
    %v1093 = vunpack.c.l.b16 %v189
    %v1094 = vunpack.c.h.b16 %v189
    %v1095 = vunpack.c.l.b16 %v190
    %v1096 = vunpack.c.h.b16 %v190
    %v1097 = vunpack.c.l.b16 %v191
    %v1098 = vunpack.c.h.b16 %v191
    %v1099 = vunpack.c.l.b16 %v192
    %v1100 = vunpack.c.l.b16 %v193
    %v1101 = vunpack.c.h.b16 %v193
    %v1102 = vunpack.c.l.b16 %v194
    %v1103 = vunpack.c.h.b16 %v194
    %v1104 = vunpack.c.l.b16 %v195
    %v1105 = vunpack.c.h.b16 %v195
    %v1106 = vunpack.c.l.b16 %v196
    %v1107 = vunpack.c.l.b16 %v197
    %v1108 = vunpack.c.h.b16 %v197
    %v1109 = vunpack.c.l.b16 %v198
    %v1110 = vunpack.c.h.b16 %v198
    %v1111 = vunpack.c.l.b16 %v199
    %v1112 = vunpack.c.h.b16 %v199
    %v1113 = vunpack.c.l.b16 %v200
    %v1114 = vunpack.c.l.b16 %v201
    %v1115 = vunpack.c.h.b16 %v201
    %v1116 = vunpack.c.l.b16 %v202
    %v1117 = vunpack.c.h.b16 %v202
    %v1118 = vunpack.c.l.b16 %v203
    %v1119 = vunpack.c.h.b16 %v203
    %v1120 = vunpack.c.l.b16 %v204
    %v1121 = vunpack.c.l.b16 %v205
    %v1122 = vunpack.c.h.b16 %v205
    %v1123 = vunpack.c.l.b16 %v206
    %v1124 = vunpack.c.h.b16 %v206
    %v1125 = vunpack.c.l.b16 %v207
    %v1126 = vunpack.c.h.b16 %v207
    %v1127 = vunpack.c.l.b16 %v208
    %v1128 = vunpack.c.l.b16 %v209
    %v1129 = vunpack.c.h.b16 %v209
    %v1130 = vunpack.c.l.b16 %v210
    %v1131 = vunpack.c.h.b16 %v210
    %v1132 = vunpack.c.l.b16 %v211
    %v1133 = vunpack.c.h.b16 %v211
    %v1134 = vunpack.c.l.b16 %v212
    %v1135 = vunpack.c.l.b16 %v213
    %v1136 = vunpack.c.h.b16 %v213
    %v1137 = vunpack.c.l.b16 %v214
    %v1138 = vunpack.c.h.b16 %v214
    %v1139 = vunpack.c.l.b16 %v215
    %v1140 = vunpack.c.h.b16 %v215
    %v1141 = vunpack.c.l.b16 %v216
    %v1142 = vunpack.c.l.b16 %v217
    %v1143 = vunpack.c.h.b16 %v217
    %v1144 = vunpack.c.l.b16 %v218
    %v1145 = vunpack.c.h.b16 %v218
    %v1146 = vunpack.c.l.b16 %v219
    %v1147 = vunpack.c.h.b16 %v219
    %v1148 = vunpack.c.l.b16 %v220
    %v1149 = vunpack.c.l.b16 %v221
    %v1150 = vunpack.c.h.b16 %v221
    %v1151 = vunpack.c.l.b16 %v222
    %v1152 = vunpack.c.h.b16 %v222
    %v1153 = vunpack.c.l.b16 %v223
    %v1154 = vunpack.c.h.b16 %v223
    %v1155 = vunpack.c.l.b16 %v224
    %v1156 = vunpack.c.l.b16 %v225
    %v1157 = vunpack.c.h.b16 %v225
    %v1158 = vunpack.c.l.b16 %v226
    %v1159 = vunpack.c.h.b16 %v226
    %v1160 = vunpack.c.l.b16 %v227
    %v1161 = vunpack.c.h.b16 %v227
    %v1162 = vunpack.c.l.b16 %v228
    %v1163 = vunpack.c.l.b16 %v229
    %v1164 = vunpack.c.h.b16 %v229
    %v1165 = vunpack.c.l.b16 %v230
    %v1166 = vunpack.c.h.b16 %v230
    %v1167 = vunpack.c.l.b16 %v231
    %v1168 = vunpack.c.h.b16 %v231
    %v1169 = vunpack.c.l.b16 %v232
    %v1170 = vunpack.c.l.b16 %v233
    %v1171 = vunpack.c.h.b16 %v233
    %v1172 = vunpack.c.l.b16 %v234
    %v1173 = vunpack.c.h.b16 %v234
    %v1174 = vunpack.c.l.b16 %v235
    %v1175 = vunpack.c.h.b16 %v235
    %v1176 = vunpack.c.l.b16 %v236
    %v1177 = vunpack.c.l.b16 %v237
    %v1178 = vunpack.c.h.b16 %v237
    %v1179 = vunpack.c.l.b16 %v238
    %v1180 = vunpack.c.h.b16 %v238
    %v1181 = vunpack.c.l.b16 %v239
    %v1182 = vunpack.c.h.b16 %v239
    %v1183 = vunpack.c.l.b16 %v240
    %v1184 = vunpack.c.l.b16 %v241
    %v1185 = vunpack.c.h.b16 %v241
    %v1186 = vunpack.c.l.b16 %v242
    %v1187 = vunpack.c.h.b16 %v242
    %v1188 = vunpack.c.l.b16 %v243
    %v1189 = vunpack.c.h.b16 %v243
    %v1190 = vunpack.c.l.b16 %v244
    %v1191 = vunpack.c.l.b16 %v245
    %v1192 = vunpack.c.h.b16 %v245
    %v1193 = vunpack.c.l.b16 %v246
    %v1194 = vunpack.c.h.b16 %v246
    %v1195 = vunpack.c.l.b16 %v247
    %v1196 = vunpack.c.h.b16 %v247
    %v1197 = vunpack.c.l.b16 %v248
    %v1198 = vunpack.c.l.b16 %v249
    %v1199 = vunpack.c.h.b16 %v249
    %v1200 = vunpack.c.l.b16 %v250
    %v1201 = vunpack.c.h.b16 %v250
    %v1202 = vunpack.c.l.b16 %v251
    %v1203 = vunpack.c.h.b16 %v251
    %v1204 = vunpack.c.l.b16 %v252
    %v1205 = vunpack.c.l.b16 %v253
    %v1206 = vunpack.c.h.b16 %v253
    %v1207 = vunpack.c.l.b16 %v254
    %v1208 = vunpack.c.h.b16 %v254
    %v1209 = vunpack.c.l.b16 %v255
    %v1210 = vunpack.c.h.b16 %v255
    %v1211 = vunpack.c.l.b16 %v256
    %v1212 = vunpack.c.l.b16 %v257
    %v1213 = vunpack.c.h.b16 %v257
    %v1214 = vunpack.c.l.b16 %v258
    %v1215 = vunpack.c.h.b16 %v258
    %v1216 = vunpack.c.l.b16 %v259
    %v1217 = vunpack.c.h.b16 %v259
    %v1218 = vunpack.c.l.b16 %v260
    %v1219 = vunpack.c.l.b16 %v261
    %v1220 = vunpack.c.h.b16 %v261
    %v1221 = vunpack.c.l.b16 %v262
    %v1222 = vunpack.c.h.b16 %v262
    %v1223 = vunpack.c.l.b16 %v263
    %v1224 = vunpack.c.h.b16 %v263
    %v1225 = vunpack.c.l.b16 %v264
    %v1226 = vunpack.c.l.b16 %v265
    %v1227 = vunpack.c.h.b16 %v265
    %v1228 = vunpack.c.l.b16 %v266
    %v1229 = vunpack.c.h.b16 %v266
    %v1230 = vunpack.c.l.b16 %v267
    %v1231 = vunpack.c.h.b16 %v267
    %v1232 = vunpack.c.l.b16 %v268
    %v1233 = vunpack.c.l.b16 %v269
    %v1234 = vunpack.c.h.b16 %v269
    %v1235 = vunpack.c.l.b16 %v270
    %v1236 = vunpack.c.h.b16 %v270
    %v1237 = vunpack.c.l.b16 %v271
    %v1238 = vunpack.c.h.b16 %v271
    %v1239 = vunpack.c.l.b16 %v272
    %v1240 = vunpack.c.l.b16 %v273
    %v1241 = vunpack.c.h.b16 %v273
    %v1242 = vunpack.c.l.b16 %v274
    %v1243 = vunpack.c.h.b16 %v274
    %v1244 = vunpack.c.l.b16 %v275
    %v1245 = vunpack.c.h.b16 %v275
    %v1246 = vunpack.c.l.b16 %v276
    %v1247 = vunpack.c.l.b16 %v277
    %v1248 = vunpack.c.h.b16 %v277
    %v1249 = vunpack.c.l.b16 %v278
    %v1250 = vunpack.c.h.b16 %v278
    %v1251 = vunpack.c.l.b16 %v279
    %v1252 = vunpack.c.h.b16 %v279
    %v1253 = vunpack.c.l.b16 %v280
    %v1254 = vunpack.c.l.b16 %v281
    %v1255 = vunpack.c.h.b16 %v281
    %v1256 = vunpack.c.l.b16 %v282
    %v1257 = vunpack.c.h.b16 %v282
    %v1258 = vunpack.c.l.b16 %v283
    %v1259 = vunpack.c.h.b16 %v283
    %v1260 = vunpack.c.l.b16 %v284
    %v1261 = vunpack.c.l.b16 %v285
    %v1262 = vunpack.c.h.b16 %v285
    %v1263 = vunpack.c.l.b16 %v286
    %v1264 = vunpack.c.h.b16 %v286
    %v1265 = vunpack.c.l.b16 %v287
    %v1266 = vunpack.c.h.b16 %v287
    %v1267 = vunpack.c.l.b16 %v288
    %v1268 = vunpack.c.l.b16 %v289
    %v1269 = vunpack.c.h.b16 %v289
    %v1270 = vunpack.c.l.b16 %v290
    %v1271 = vunpack.c.h.b16 %v290
    %v1272 = vunpack.c.l.b16 %v291
    %v1273 = vunpack.c.h.b16 %v291
    %v1274 = vunpack.c.l.b16 %v292
    %v1275 = vunpack.c.l.b16 %v293
    %v1276 = vunpack.c.h.b16 %v293
    %v1277 = vunpack.c.l.b16 %v294
    %v1278 = vunpack.c.h.b16 %v294
    %v1279 = vunpack.c.l.b16 %v295
    %v1280 = vunpack.c.h.b16 %v295
    %v1281 = vunpack.c.l.b16 %v296
    %v1282 = vunpack.c.l.b16 %v297
    %v1283 = vunpack.c.h.b16 %v297
    %v1284 = vunpack.c.l.b16 %v298
    %v1285 = vunpack.c.h.b16 %v298
    %v1286 = vunpack.c.l.b16 %v299
    %v1287 = vunpack.c.h.b16 %v299
    %v1288 = vunpack.c.l.b16 %v300
    %v1289 = vunpack.c.l.b16 %v301
    %v1290 = vunpack.c.h.b16 %v301
    %v1291 = vunpack.c.l.b16 %v302
    %v1292 = vunpack.c.h.b16 %v302
    %v1293 = vunpack.c.l.b16 %v303
    %v1294 = vunpack.c.h.b16 %v303
    %v1295 = vunpack.c.l.b16 %v304
    %v1296 = vunpack.c.l.b16 %v305
    %v1297 = vunpack.c.h.b16 %v305
    %v1298 = vunpack.c.l.b16 %v306
    %v1299 = vunpack.c.h.b16 %v306
    %v1300 = vunpack.c.l.b16 %v307
    %v1301 = vunpack.c.h.b16 %v307
    %v1302 = vunpack.c.l.b16 %v308
    %v1303 = vunpack.c.l.b16 %v309
    %v1304 = vunpack.c.h.b16 %v309
    %v1305 = vunpack.c.l.b16 %v310
    %v1306 = vunpack.c.h.b16 %v310
    %v1307 = vunpack.c.l.b16 %v311
    %v1308 = vunpack.c.h.b16 %v311
    %v1309 = vunpack.c.l.b16 %v312
    %v1310 = vunpack.c.l.b16 %v313
    %v1311 = vunpack.c.h.b16 %v313
    %v1312 = vunpack.c.l.b16 %v314
    %v1313 = vunpack.c.h.b16 %v314
    %v1314 = vunpack.c.l.b16 %v315
    %v1315 = vunpack.c.h.b16 %v315
    %v1316 = vunpack.c.l.b16 %v316
    %v1317 = vunpack.c.l.b16 %v317
    %v1318 = vunpack.c.h.b16 %v317
    %v1319 = vunpack.c.l.b16 %v318
    %v1320 = vunpack.c.h.b16 %v318
    %v1321 = vunpack.c.l.b16 %v319
    %v1322 = vunpack.c.h.b16 %v319
    %v1323 = vunpack.c.l.b16 %v320
    %v1324 = vunpack.c.l.b16 %v321
    %v1325 = vunpack.c.h.b16 %v321
    %v1326 = vunpack.c.l.b16 %v322
    %v1327 = vunpack.c.h.b16 %v322
    %v1328 = vunpack.c.l.b16 %v323
    %v1329 = vunpack.c.h.b16 %v323
    %v1330 = vunpack.c.l.b16 %v324
    %v1331 = vunpack.c.l.b16 %v325
    %v1332 = vunpack.c.h.b16 %v325
    %v1333 = vunpack.c.l.b16 %v326
    %v1334 = vunpack.c.h.b16 %v326
    %v1335 = vunpack.c.l.b16 %v327
    %v1336 = vunpack.c.h.b16 %v327
    %v1337 = vunpack.c.l.b16 %v328
    %v1338 = vunpack.c.l.b16 %v329
    %v1339 = vunpack.c.h.b16 %v329
    %v1340 = vunpack.c.l.b16 %v330
    %v1341 = vunpack.c.h.b16 %v330
    %v1342 = vunpack.c.l.b16 %v331
    %v1343 = vunpack.c.h.b16 %v331
    %v1344 = vunpack.c.l.b16 %v332
    %v1345 = vunpack.c.l.b16 %v333
    %v1346 = vunpack.c.h.b16 %v333
    %v1347 = vunpack.c.l.b16 %v334
    %v1348 = vunpack.c.h.b16 %v334
    %v1349 = vunpack.c.l.b16 %v335
    %v1350 = vunpack.c.h.b16 %v335
    %v1351 = vunpack.c.l.b16 %v336
    %v1352 = vunpack.c.l.b16 %v337
    %v1353 = vunpack.c.h.b16 %v337
    %v1354 = vunpack.c.l.b16 %v338
    %v1355 = vunpack.c.h.b16 %v338
    %v1356 = vunpack.c.l.b16 %v339
    %v1357 = vunpack.c.h.b16 %v339
    %v1358 = vunpack.c.l.b16 %v340
    %v1359 = vunpack.c.l.b16 %v341
    %v1360 = vunpack.c.h.b16 %v341
    %v1361 = vunpack.c.l.b16 %v342
    %v1362 = vunpack.c.h.b16 %v342
    %v1363 = vunpack.c.l.b16 %v343
    %v1364 = vunpack.c.h.b16 %v343
    %v1365 = vunpack.c.l.b16 %v344
    %v1366 = vunpack.c.l.b16 %v345
    %v1367 = vunpack.c.h.b16 %v345
    %v1368 = vunpack.c.l.b16 %v346
    %v1369 = vunpack.c.h.b16 %v346
    %v1370 = vunpack.c.l.b16 %v347
    %v1371 = vunpack.c.h.b16 %v347
    %v1372 = vunpack.c.l.b16 %v348
    %v1373 = vunpack.c.l.b16 %v349
    %v1374 = vunpack.c.h.b16 %v349
    %v1375 = vunpack.c.l.b16 %v350
    %v1376 = vunpack.c.h.b16 %v350
    %v1377 = vunpack.c.l.b16 %v351
    %v1378 = vunpack.c.h.b16 %v351
    %v1379 = vunpack.c.l.b16 %v352
    %v1380 = vunpack.c.l.b16 %v353
    %v1381 = vunpack.c.h.b16 %v353
    %v1382 = vunpack.c.l.b16 %v354
    %v1383 = vunpack.c.h.b16 %v354
    %v1384 = vunpack.c.l.b16 %v355
    %v1385 = vunpack.c.h.b16 %v355
    %v1386 = vunpack.c.l.b16 %v356
    %v1387 = vunpack.c.l.b16 %v357
    %v1388 = vunpack.c.h.b16 %v357
    %v1389 = vunpack.c.l.b16 %v358
    %v1390 = vunpack.c.h.b16 %v358
    %v1391 = vunpack.c.l.b16 %v359
    %v1392 = vunpack.c.h.b16 %v359
    %v1393 = vunpack.c.l.b16 %v360
    %v1394 = vunpack.c.l.b16 %v361
    %v1395 = vunpack.c.h.b16 %v361
    %v1396 = vunpack.c.l.b16 %v362
    %v1397 = vunpack.c.h.b16 %v362
    %v1398 = vunpack.c.l.b16 %v363
    %v1399 = vunpack.c.h.b16 %v363
    %v1400 = vunpack.c.l.b16 %v364
    %v1401 = vunpack.c.l.b16 %v365
    %v1402 = vunpack.c.h.b16 %v365
    %v1403 = vunpack.c.l.b16 %v366
    %v1404 = vunpack.c.h.b16 %v366
    %v1405 = vunpack.c.l.b16 %v367
    %v1406 = vunpack.c.h.b16 %v367
    %v1407 = vunpack.c.l.b16 %v368
    %v1408 = vunpack.c.l.b16 %v369
    %v1409 = vunpack.c.h.b16 %v369
    %v1410 = vunpack.c.l.b16 %v370
    %v1411 = vunpack.c.h.b16 %v370
    %v1412 = vunpack.c.l.b16 %v371
    %v1413 = vunpack.c.h.b16 %v371
    %v1414 = vunpack.c.l.b16 %v372
    %v1415 = vunpack.c.l.b16 %v373
    %v1416 = vunpack.c.h.b16 %v373
    %v1417 = vunpack.c.l.b16 %v374
    %v1418 = vunpack.c.h.b16 %v374
    %v1419 = vunpack.c.l.b16 %v375
    %v1420 = vunpack.c.h.b16 %v375
    %v1421 = vunpack.c.l.b16 %v376
    %v1422 = vunpack.c.l.b16 %v377
    %v1423 = vunpack.c.h.b16 %v377
    %v1424 = vunpack.c.l.b16 %v378
    %v1425 = vunpack.c.h.b16 %v378
    %v1426 = vunpack.c.l.b16 %v379
    %v1427 = vunpack.c.h.b16 %v379
    %v1428 = vunpack.c.l.b16 %v380
    %v1429 = vunpack.c.l.b16 %v381
    %v1430 = vunpack.c.h.b16 %v381
    %v1431 = vunpack.c.l.b16 %v382
    %v1432 = vunpack.c.h.b16 %v382
    %v1433 = vunpack.c.l.b16 %v383
    %v1434 = vunpack.c.h.b16 %v383
    %v1435 = vunpack.c.l.b16 %v384
    %v1436 = vunpack.c.l.b16 %v385
    %v1437 = vunpack.c.h.b16 %v385
    %v1438 = vunpack.c.l.b16 %v386
    %v1439 = vunpack.c.h.b16 %v386
    %v1440 = vunpack.c.l.b16 %v387
    %v1441 = vunpack.c.h.b16 %v387
    %v1442 = vunpack.c.l.b16 %v388
    %v1443 = vunpack.c.l.b16 %v389
    %v1444 = vunpack.c.h.b16 %v389
    %v1445 = vunpack.c.l.b16 %v390
    %v1446 = vunpack.c.h.b16 %v390
    %v1447 = vunpack.c.l.b16 %v391
    %v1448 = vunpack.c.h.b16 %v391
    %v1449 = vunpack.c.l.b16 %v392
    %v1450 = vunpack.c.l.b16 %v393
    %v1451 = vunpack.c.h.b16 %v393
    %v1452 = vunpack.c.l.b16 %v394
    %v1453 = vunpack.c.h.b16 %v394
    %v1454 = vunpack.c.l.b16 %v395
    %v1455 = vunpack.c.h.b16 %v395
    %v1456 = vunpack.c.l.b16 %v396
    %v1457 = vunpack.c.l.b16 %v397
    %v1458 = vunpack.c.h.b16 %v397
    %v1459 = vunpack.c.l.b16 %v398
    %v1460 = vunpack.c.h.b16 %v398
    %v1461 = vunpack.c.l.b16 %v399
    %v1462 = vunpack.c.h.b16 %v399
    %v1463 = vunpack.c.l.b16 %v400
    %v1464 = vunpack.c.l.b16 %v401
    %v1465 = vunpack.c.h.b16 %v401
    %v1466 = vunpack.c.l.b16 %v402
    %v1467 = vunpack.c.h.b16 %v402
    %v1468 = vunpack.c.l.b16 %v403
    %v1469 = vunpack.c.h.b16 %v403
    %v1470 = vunpack.c.l.b16 %v404
    %v1471 = vunpack.c.l.b16 %v405
    %v1472 = vunpack.c.h.b16 %v405
    %v1473 = vunpack.c.l.b16 %v406
    %v1474 = vunpack.c.h.b16 %v406
    %v1475 = vunpack.c.l.b16 %v407
    %v1476 = vunpack.c.h.b16 %v407
    %v1477 = vunpack.c.l.b16 %v408
    %v1478 = vunpack.c.l.b16 %v409
    %v1479 = vunpack.c.h.b16 %v409
    %v1480 = vunpack.c.l.b16 %v410
    %v1481 = vunpack.c.h.b16 %v410
    %v1482 = vunpack.c.l.b16 %v411
    %v1483 = vunpack.c.h.b16 %v411
    %v1484 = vunpack.c.l.b16 %v412
    %v1485 = vunpack.c.l.b16 %v413
    %v1486 = vunpack.c.h.b16 %v413
    %v1487 = vunpack.c.l.b16 %v414
    %v1488 = vunpack.c.h.b16 %v414
    %v1489 = vunpack.c.l.b16 %v415
    %v1490 = vunpack.c.h.b16 %v415
    %v1491 = vunpack.c.l.b16 %v416
    %v1492 = vunpack.c.l.b16 %v417
    %v1493 = vunpack.c.h.b16 %v417
    %v1494 = vunpack.c.l.b16 %v418
    %v1495 = vunpack.c.h.b16 %v418
    %v1496 = vunpack.c.l.b16 %v419
    %v1497 = vunpack.c.h.b16 %v419
    %v1498 = vunpack.c.l.b16 %v420
    %v1499 = vunpack.c.l.b16 %v421
    %v1500 = vunpack.c.h.b16 %v421
    %v1501 = vunpack.c.l.b16 %v422
    %v1502 = vunpack.c.h.b16 %v422
    %v1503 = vunpack.c.l.b16 %v423
    %v1504 = vunpack.c.h.b16 %v423
    %v1505 = vunpack.c.l.b16 %v424
    %v1506 = vunpack.c.l.b16 %v425
    %v1507 = vunpack.c.h.b16 %v425
    %v1508 = vunpack.c.l.b16 %v426
    %v1509 = vunpack.c.h.b16 %v426
    %v1510 = vunpack.c.l.b16 %v427
    %v1511 = vunpack.c.h.b16 %v427
    %v1512 = vunpack.c.l.b16 %v428
    %v1513 = vunpack.c.l.b16 %v429
    %v1514 = vunpack.c.h.b16 %v429
    %v1515 = vunpack.c.l.b16 %v430
    %v1516 = vunpack.c.h.b16 %v430
    %v1517 = vunpack.c.l.b16 %v431
    %v1518 = vunpack.c.h.b16 %v431
    %v1519 = vunpack.c.l.b16 %v432
    %v1520 = vunpack.c.l.b16 %v433
    %v1521 = vunpack.c.h.b16 %v433
    %v1522 = vunpack.c.l.b16 %v434
    %v1523 = vunpack.c.h.b16 %v434
    %v1524 = vunpack.c.l.b16 %v435
    %v1525 = vunpack.c.h.b16 %v435
    %v1526 = vunpack.c.l.b16 %v436
    %v1527 = vunpack.c.l.b16 %v437
    %v1528 = vunpack.c.h.b16 %v437
    %v1529 = vunpack.c.l.b16 %v438
    %v1530 = vunpack.c.h.b16 %v438
    %v1531 = vunpack.c.l.b16 %v439
    %v1532 = vunpack.c.h.b16 %v439
    %v1533 = vunpack.c.l.b16 %v440
    %v1534 = vunpack.c.l.b16 %v441
    %v1535 = vunpack.c.h.b16 %v441
    %v1536 = vunpack.c.l.b16 %v442
    %v1537 = vunpack.c.h.b16 %v442
    %v1538 = vunpack.c.l.b16 %v443
    %v1539 = vunpack.c.h.b16 %v443
    %v1540 = vunpack.c.l.b16 %v444
    %v1541 = vunpack.c.l.b16 %v445
    %v1542 = vunpack.c.h.b16 %v445
    %v1543 = vunpack.c.l.b16 %v446
    %v1544 = vunpack.c.h.b16 %v446
    %v1545 = vunpack.c.l.b16 %v447
    %v1546 = vunpack.c.h.b16 %v447
    %v1547 = vunpack.c.l.b16 %v448
    %v1548 = vunpack.c.l.b16 %v449
    %v1549 = vunpack.c.h.b16 %v449
    %v1550 = vunpack.c.l.b16 %v450
    %v1551 = vunpack.c.h.b16 %v450
    %v1552 = vunpack.c.l.b16 %v451
    %v1553 = vunpack.c.h.b16 %v451
    %v1554 = vunpack.c.l.b16 %v452
    %v1555 = vunpack.c.l.b16 %v453
    %v1556 = vunpack.c.h.b16 %v453
    %v1557 = vunpack.c.l.b16 %v454
    %v1558 = vunpack.c.h.b16 %v454
    %v1559 = vunpack.c.l.b16 %v455
    %v1560 = vunpack.c.h.b16 %v455
    %v1561 = vunpack.c.l.b16 %v456
    %v1562 = vunpack.c.l.b16 %v457
    %v1563 = vunpack.c.h.b16 %v457
    %v1564 = vunpack.c.l.b16 %v458
    %v1565 = vunpack.c.h.b16 %v458
    %v1566 = vunpack.c.l.b16 %v459
    %v1567 = vunpack.c.h.b16 %v459
    %v1568 = vunpack.c.l.b16 %v460
    %v1569 = vunpack.c.l.b16 %v461
    %v1570 = vunpack.c.h.b16 %v461
    %v1571 = vunpack.c.l.b16 %v462
    %v1572 = vunpack.c.h.b16 %v462
    %v1573 = vunpack.c.l.b16 %v463
    %v1574 = vunpack.c.h.b16 %v463
    %v1575 = vunpack.c.l.b16 %v464
    %v1576 = vunpack.c.l.b16 %v465
    %v1577 = vunpack.c.h.b16 %v465
    %v1578 = vunpack.c.l.b16 %v466
    %v1579 = vunpack.c.h.b16 %v466
    %v1580 = vunpack.c.l.b16 %v467
    %v1581 = vunpack.c.h.b16 %v467
    %v1582 = vunpack.c.l.b16 %v468
    %v1583 = vunpack.c.l.b16 %v469
    %v1584 = vunpack.c.h.b16 %v469
    %v1585 = vunpack.c.l.b16 %v470
    %v1586 = vunpack.c.h.b16 %v470
    %v1587 = vunpack.c.l.b16 %v471
    %v1588 = vunpack.c.h.b16 %v471
    %v1589 = vunpack.c.l.b16 %v472
    %v1590 = vunpack.c.l.b16 %v473
    %v1591 = vunpack.c.h.b16 %v473
    %v1592 = vunpack.c.l.b16 %v474
    %v1593 = vunpack.c.h.b16 %v474
    %v1594 = vunpack.c.l.b16 %v475
    %v1595 = vunpack.c.h.b16 %v475
    %v1596 = vunpack.c.l.b16 %v476
    %v1597 = vunpack.c.l.b16 %v477
    %v1598 = vunpack.c.h.b16 %v477
    %v1599 = vunpack.c.l.b16 %v478
    %v1600 = vunpack.c.h.b16 %v478
    %v1601 = vunpack.c.l.b16 %v479
    %v1602 = vunpack.c.h.b16 %v479
    %v1603 = vunpack.c.l.b16 %v480
    %v1604 = vunpack.c.l.b16 %v481
    %v1605 = vunpack.c.h.b16 %v481
    %v1606 = vunpack.c.l.b16 %v482
    %v1607 = vunpack.c.h.b16 %v482
    %v1608 = vunpack.c.l.b16 %v483
    %v1609 = vunpack.c.h.b16 %v483
    %v1610 = vunpack.c.l.b16 %v484
    %v1611 = vunpack.c.l.b16 %v485
    %v1612 = vunpack.c.h.b16 %v485
    %v1613 = vunpack.c.l.b16 %v486
    %v1614 = vunpack.c.h.b16 %v486
    %v1615 = vunpack.c.l.b16 %v487
    %v1616 = vunpack.c.h.b16 %v487
    %v1617 = vunpack.c.l.b16 %v488
    %v1618 = vunpack.c.l.b16 %v489
    %v1619 = vunpack.c.h.b16 %v489
    %v1620 = vunpack.c.l.b16 %v490
    %v1621 = vunpack.c.h.b16 %v490
    %v1622 = vunpack.c.l.b16 %v491
    %v1623 = vunpack.c.h.b16 %v491
    %v1624 = vunpack.c.l.b16 %v492
    %v1625 = vunpack.c.l.b16 %v493
    %v1626 = vunpack.c.h.b16 %v493
    %v1627 = vunpack.c.l.b16 %v494
    %v1628 = vunpack.c.h.b16 %v494
    %v1629 = vunpack.c.l.b16 %v495
    %v1630 = vunpack.c.h.b16 %v495
    %v1631 = vunpack.c.l.b16 %v496
    %v1632 = vunpack.c.l.b16 %v497
    %v1633 = vunpack.c.h.b16 %v497
    %v1634 = vunpack.c.l.b16 %v498
    %v1635 = vunpack.c.h.b16 %v498
    %v1636 = vunpack.c.l.b16 %v499
    %v1637 = vunpack.c.h.b16 %v499
    %v1638 = vunpack.c.l.b16 %v500
    %v1639 = vunpack.c.l.b16 %v501
    %v1640 = vunpack.c.h.b16 %v501
    %v1641 = vunpack.c.l.b16 %v502
    %v1642 = vunpack.c.h.b16 %v502
    %v1643 = vunpack.c.l.b16 %v503
    %v1644 = vunpack.c.h.b16 %v503
    %v1645 = vunpack.c.l.b16 %v504
    %v1646 = vunpack.c.l.b16 %v505
    %v1647 = vunpack.c.h.b16 %v505
    %v1648 = vunpack.c.l.b16 %v506
    %v1649 = vunpack.c.h.b16 %v506
    %v1650 = vunpack.c.l.b16 %v507
    %v1651 = vunpack.c.h.b16 %v507
    %v1652 = vunpack.c.l.b16 %v508
    %v1653 = vunpack.c.l.b16 %v509
    %v1654 = vunpack.c.h.b16 %v509
    %v1655 = vunpack.c.l.b16 %v510
    %v1656 = vunpack.c.h.b16 %v510
    %v1657 = vunpack.c.l.b16 %v511
    %v1658 = vunpack.c.h.b16 %v511
    %v1659 = vunpack.c.l.b16 %v512
    %v1660 = vunpack.c.l.b16 %v513
    %v1661 = vunpack.c.h.b16 %v513
    %v1662 = vunpack.c.l.b16 %v514
    %v1663 = vunpack.c.h.b16 %v514
    %v1664 = vunpack.c.l.b16 %v515
    %v1665 = vunpack.c.h.b16 %v515
    %v1666 = vunpack.c.l.b16 %v516
    %v1667 = vpack.c.b16 %v988, %v981
    %v1668 = vpack.c.b16 %v989, %v982
    %v1669 = vpack.c.b16 %v990, %v983
    %v1670 = vpack.c.b16 %v991, %v984
    %v1671 = vpack.c.b16 %v992, %v985
    %v1672 = vpack.c.b16 %v993, %v986
    %v1673 = vpack.c.b16 %v994, %v987
    %v1674 = vpack.c.b16 %v1002, %v995
    %v1675 = vpack.c.b16 %v1003, %v996
    %v1676 = vpack.c.b16 %v1004, %v997
    %v1677 = vpack.c.b16 %v1005, %v998
    %v1678 = vpack.c.b16 %v1006, %v999
    %v1679 = vpack.c.b16 %v1007, %v1000
    %v1680 = vpack.c.b16 %v1008, %v1001
    %v1681 = vpack.c.b16 %v1016, %v1009
    %v1682 = vpack.c.b16 %v1017, %v1010
    %v1683 = vpack.c.b16 %v1018, %v1011
    %v1684 = vpack.c.b16 %v1019, %v1012
    %v1685 = vpack.c.b16 %v1020, %v1013
    %v1686 = vpack.c.b16 %v1021, %v1014
    %v1687 = vpack.c.b16 %v1022, %v1015
    %v1688 = vpack.c.b16 %v1030, %v1023
    %v1689 = vpack.c.b16 %v1031, %v1024
    %v1690 = vpack.c.b16 %v1032, %v1025
    %v1691 = vpack.c.b16 %v1033, %v1026
    %v1692 = vpack.c.b16 %v1034, %v1027
    %v1693 = vpack.c.b16 %v1035, %v1028
    %v1694 = vpack.c.b16 %v1036, %v1029
    %v1695 = vpack.c.b16 %v1044, %v1037
    %v1696 = vpack.c.b16 %v1045, %v1038
    %v1697 = vpack.c.b16 %v1046, %v1039
    %v1698 = vpack.c.b16 %v1047, %v1040
    %v1699 = vpack.c.b16 %v1048, %v1041
    %v1700 = vpack.c.b16 %v1049, %v1042
    %v1701 = vpack.c.b16 %v1050, %v1043
    %v1702 = vpack.c.b16 %v1058, %v1051
    %v1703 = vpack.c.b16 %v1059, %v1052
    %v1704 = vpack.c.b16 %v1060, %v1053
    %v1705 = vpack.c.b16 %v1061, %v1054
    %v1706 = vpack.c.b16 %v1062, %v1055
    %v1707 = vpack.c.b16 %v1063, %v1056
    %v1708 = vpack.c.b16 %v1064, %v1057
    %v1709 = vpack.c.b16 %v1072, %v1065
    %v1710 = vpack.c.b16 %v1073, %v1066
    %v1711 = vpack.c.b16 %v1074, %v1067
    %v1712 = vpack.c.b16 %v1075, %v1068
    %v1713 = vpack.c.b16 %v1076, %v1069
    %v1714 = vpack.c.b16 %v1077, %v1070
    %v1715 = vpack.c.b16 %v1078, %v1071
    %v1716 = vpack.c.b16 %v1086, %v1079
    %v1717 = vpack.c.b16 %v1087, %v1080
    %v1718 = vpack.c.b16 %v1088, %v1081
    %v1719 = vpack.c.b16 %v1089, %v1082
    %v1720 = vpack.c.b16 %v1090, %v1083
    %v1721 = vpack.c.b16 %v1091, %v1084
    %v1722 = vpack.c.b16 %v1092, %v1085
    %v1723 = vpack.c.b16 %v1100, %v1093
    %v1724 = vpack.c.b16 %v1101, %v1094
    %v1725 = vpack.c.b16 %v1102, %v1095
    %v1726 = vpack.c.b16 %v1103, %v1096
    %v1727 = vpack.c.b16 %v1104, %v1097
    %v1728 = vpack.c.b16 %v1105, %v1098
    %v1729 = vpack.c.b16 %v1106, %v1099
    %v1730 = vpack.c.b16 %v1114, %v1107
    %v1731 = vpack.c.b16 %v1115, %v1108
    %v1732 = vpack.c.b16 %v1116, %v1109
    %v1733 = vpack.c.b16 %v1117, %v1110
    %v1734 = vpack.c.b16 %v1118, %v1111
    %v1735 = vpack.c.b16 %v1119, %v1112
    %v1736 = vpack.c.b16 %v1120, %v1113
    %v1737 = vpack.c.b16 %v1128, %v1121
    %v1738 = vpack.c.b16 %v1129, %v1122
    %v1739 = vpack.c.b16 %v1130, %v1123
    %v1740 = vpack.c.b16 %v1131, %v1124
    %v1741 = vpack.c.b16 %v1132, %v1125
    %v1742 = vpack.c.b16 %v1133, %v1126
    %v1743 = vpack.c.b16 %v1134, %v1127
    %v1744 = vpack.c.b16 %v1142, %v1135
    %v1745 = vpack.c.b16 %v1143, %v1136
    %v1746 = vpack.c.b16 %v1144, %v1137
    %v1747 = vpack.c.b16 %v1145, %v1138
    %v1748 = vpack.c.b16 %v1146, %v1139
    %v1749 = vpack.c.b16 %v1147, %v1140
    %v1750 = vpack.c.b16 %v1148, %v1141
    %v1751 = vpack.c.b16 %v1156, %v1149
    %v1752 = vpack.c.b16 %v1157, %v1150
    %v1753 = vpack.c.b16 %v1158, %v1151
    %v1754 = vpack.c.b16 %v1159, %v1152
    %v1755 = vpack.c.b16 %v1160, %v1153
    %v1756 = vpack.c.b16 %v1161, %v1154
    %v1757 = vpack.c.b16 %v1162, %v1155
    %v1758 = vpack.c.b16 %v1170, %v1163
    %v1759 = vpack.c.b16 %v1171, %v1164
    %v1760 = vpack.c.b16 %v1172, %v1165
    %v1761 = vpack.c.b16 %v1173, %v1166
    %v1762 = vpack.c.b16 %v1174, %v1167
    %v1763 = vpack.c.b16 %v1175, %v1168
    %v1764 = vpack.c.b16 %v1176, %v1169
    %v1765 = vpack.c.b16 %v1184, %v1177
    %v1766 = vpack.c.b16 %v1185, %v1178
    %v1767 = vpack.c.b16 %v1186, %v1179
    %v1768 = vpack.c.b16 %v1187, %v1180
    %v1769 = vpack.c.b16 %v1188, %v1181
    %v1770 = vpack.c.b16 %v1189, %v1182
    %v1771 = vpack.c.b16 %v1190, %v1183
    %v1772 = vpack.c.b16 %v1198, %v1191
    %v1773 = vpack.c.b16 %v1199, %v1192
    %v1774 = vpack.c.b16 %v1200, %v1193
    %v1775 = vpack.c.b16 %v1201, %v1194
    %v1776 = vpack.c.b16 %v1202, %v1195
    %v1777 = vpack.c.b16 %v1203, %v1196
    %v1778 = vpack.c.b16 %v1204, %v1197
    %v1779 = vpack.c.b16 %v1212, %v1205
    %v1780 = vpack.c.b16 %v1213, %v1206
    %v1781 = vpack.c.b16 %v1214, %v1207
    %v1782 = vpack.c.b16 %v1215, %v1208
    %v1783 = vpack.c.b16 %v1216, %v1209
    %v1784 = vpack.c.b16 %v1217, %v1210
    %v1785 = vpack.c.b16 %v1218, %v1211
    %v1786 = vpack.c.b16 %v1226, %v1219
    %v1787 = vpack.c.b16 %v1227, %v1220
    %v1788 = vpack.c.b16 %v1228, %v1221
    %v1789 = vpack.c.b16 %v1229, %v1222
    %v1790 = vpack.c.b16 %v1230, %v1223
    %v1791 = vpack.c.b16 %v1231, %v1224
    %v1792 = vpack.c.b16 %v1232, %v1225
    %v1793 = vpack.c.b16 %v1240, %v1233
    %v1794 = vpack.c.b16 %v1241, %v1234
    %v1795 = vpack.c.b16 %v1242, %v1235
    %v1796 = vpack.c.b16 %v1243, %v1236
    %v1797 = vpack.c.b16 %v1244, %v1237
    %v1798 = vpack.c.b16 %v1245, %v1238
    %v1799 = vpack.c.b16 %v1246, %v1239
    %v1800 = vpack.c.b16 %v1254, %v1247
    %v1801 = vpack.c.b16 %v1255, %v1248
    %v1802 = vpack.c.b16 %v1256, %v1249
    %v1803 = vpack.c.b16 %v1257, %v1250
    %v1804 = vpack.c.b16 %v1258, %v1251
    %v1805 = vpack.c.b16 %v1259, %v1252
    %v1806 = vpack.c.b16 %v1260, %v1253
    %v1807 = vpack.c.b16 %v1268, %v1261
    %v1808 = vpack.c.b16 %v1269, %v1262
    %v1809 = vpack.c.b16 %v1270, %v1263
    %v1810 = vpack.c.b16 %v1271, %v1264
    %v1811 = vpack.c.b16 %v1272, %v1265
    %v1812 = vpack.c.b16 %v1273, %v1266
    %v1813 = vpack.c.b16 %v1274, %v1267
    %v1814 = vpack.c.b16 %v1282, %v1275
    %v1815 = vpack.c.b16 %v1283, %v1276
    %v1816 = vpack.c.b16 %v1284, %v1277
    %v1817 = vpack.c.b16 %v1285, %v1278
    %v1818 = vpack.c.b16 %v1286, %v1279
    %v1819 = vpack.c.b16 %v1287, %v1280
    %v1820 = vpack.c.b16 %v1288, %v1281
    %v1821 = vpack.c.b16 %v1296, %v1289
    %v1822 = vpack.c.b16 %v1297, %v1290
    %v1823 = vpack.c.b16 %v1298, %v1291
    %v1824 = vpack.c.b16 %v1299, %v1292
    %v1825 = vpack.c.b16 %v1300, %v1293
    %v1826 = vpack.c.b16 %v1301, %v1294
    %v1827 = vpack.c.b16 %v1302, %v1295
    %v1828 = vpack.c.b16 %v1310, %v1303
    %v1829 = vpack.c.b16 %v1311, %v1304
    %v1830 = vpack.c.b16 %v1312, %v1305
    %v1831 = vpack.c.b16 %v1313, %v1306
    %v1832 = vpack.c.b16 %v1314, %v1307
    %v1833 = vpack.c.b16 %v1315, %v1308
    %v1834 = vpack.c.b16 %v1316, %v1309
    %v1835 = vpack.c.b16 %v1324, %v1317
    %v1836 = vpack.c.b16 %v1325, %v1318
    %v1837 = vpack.c.b16 %v1326, %v1319
    %v1838 = vpack.c.b16 %v1327, %v1320
    %v1839 = vpack.c.b16 %v1328, %v1321
    %v1840 = vpack.c.b16 %v1329, %v1322
    %v1841 = vpack.c.b16 %v1330, %v1323
    %v1842 = vpack.c.b16 %v1338, %v1331
    %v1843 = vpack.c.b16 %v1339, %v1332
    %v1844 = vpack.c.b16 %v1340, %v1333
    %v1845 = vpack.c.b16 %v1341, %v1334
    %v1846 = vpack.c.b16 %v1342, %v1335
    %v1847 = vpack.c.b16 %v1343, %v1336
    %v1848 = vpack.c.b16 %v1344, %v1337
    %v1849 = vpack.c.b16 %v1352, %v1345
    %v1850 = vpack.c.b16 %v1353, %v1346
    %v1851 = vpack.c.b16 %v1354, %v1347
    %v1852 = vpack.c.b16 %v1355, %v1348
    %v1853 = vpack.c.b16 %v1356, %v1349
    %v1854 = vpack.c.b16 %v1357, %v1350
    %v1855 = vpack.c.b16 %v1358, %v1351
    %v1856 = vpack.c.b16 %v1366, %v1359
    %v1857 = vpack.c.b16 %v1367, %v1360
    %v1858 = vpack.c.b16 %v1368, %v1361
    %v1859 = vpack.c.b16 %v1369, %v1362
    %v1860 = vpack.c.b16 %v1370, %v1363
    %v1861 = vpack.c.b16 %v1371, %v1364
    %v1862 = vpack.c.b16 %v1372, %v1365
    %v1863 = vpack.c.b16 %v1380, %v1373
    %v1864 = vpack.c.b16 %v1381, %v1374
    %v1865 = vpack.c.b16 %v1382, %v1375
    %v1866 = vpack.c.b16 %v1383, %v1376
    %v1867 = vpack.c.b16 %v1384, %v1377
    %v1868 = vpack.c.b16 %v1385, %v1378
    %v1869 = vpack.c.b16 %v1386, %v1379
    %v1870 = vpack.c.b16 %v1394, %v1387
    %v1871 = vpack.c.b16 %v1395, %v1388
    %v1872 = vpack.c.b16 %v1396, %v1389
    %v1873 = vpack.c.b16 %v1397, %v1390
    %v1874 = vpack.c.b16 %v1398, %v1391
    %v1875 = vpack.c.b16 %v1399, %v1392
    %v1876 = vpack.c.b16 %v1400, %v1393
    %v1877 = vpack.c.b16 %v1408, %v1401
    %v1878 = vpack.c.b16 %v1409, %v1402
    %v1879 = vpack.c.b16 %v1410, %v1403
    %v1880 = vpack.c.b16 %v1411, %v1404
    %v1881 = vpack.c.b16 %v1412, %v1405
    %v1882 = vpack.c.b16 %v1413, %v1406
    %v1883 = vpack.c.b16 %v1414, %v1407
    %v1884 = vpack.c.b16 %v1422, %v1415
    %v1885 = vpack.c.b16 %v1423, %v1416
    %v1886 = vpack.c.b16 %v1424, %v1417
    %v1887 = vpack.c.b16 %v1425, %v1418
    %v1888 = vpack.c.b16 %v1426, %v1419
    %v1889 = vpack.c.b16 %v1427, %v1420
    %v1890 = vpack.c.b16 %v1428, %v1421
    %v1891 = vpack.c.b16 %v1436, %v1429
    %v1892 = vpack.c.b16 %v1437, %v1430
    %v1893 = vpack.c.b16 %v1438, %v1431
    %v1894 = vpack.c.b16 %v1439, %v1432
    %v1895 = vpack.c.b16 %v1440, %v1433
    %v1896 = vpack.c.b16 %v1441, %v1434
    %v1897 = vpack.c.b16 %v1442, %v1435
    %v1898 = vpack.c.b16 %v1450, %v1443
    %v1899 = vpack.c.b16 %v1451, %v1444
    %v1900 = vpack.c.b16 %v1452, %v1445
    %v1901 = vpack.c.b16 %v1453, %v1446
    %v1902 = vpack.c.b16 %v1454, %v1447
    %v1903 = vpack.c.b16 %v1455, %v1448
    %v1904 = vpack.c.b16 %v1456, %v1449
    %v1905 = vpack.c.b16 %v1464, %v1457
    %v1906 = vpack.c.b16 %v1465, %v1458
    %v1907 = vpack.c.b16 %v1466, %v1459
    %v1908 = vpack.c.b16 %v1467, %v1460
    %v1909 = vpack.c.b16 %v1468, %v1461
    %v1910 = vpack.c.b16 %v1469, %v1462
    %v1911 = vpack.c.b16 %v1470, %v1463
    %v1912 = vpack.c.b16 %v1478, %v1471
    %v1913 = vpack.c.b16 %v1479, %v1472
    %v1914 = vpack.c.b16 %v1480, %v1473
    %v1915 = vpack.c.b16 %v1481, %v1474
    %v1916 = vpack.c.b16 %v1482, %v1475
    %v1917 = vpack.c.b16 %v1483, %v1476
    %v1918 = vpack.c.b16 %v1484, %v1477
    %v1919 = vpack.c.b16 %v1492, %v1485
    %v1920 = vpack.c.b16 %v1493, %v1486
    %v1921 = vpack.c.b16 %v1494, %v1487
    %v1922 = vpack.c.b16 %v1495, %v1488
    %v1923 = vpack.c.b16 %v1496, %v1489
    %v1924 = vpack.c.b16 %v1497, %v1490
    %v1925 = vpack.c.b16 %v1498, %v1491
    %v1926 = vpack.c.b16 %v1506, %v1499
    %v1927 = vpack.c.b16 %v1507, %v1500
    %v1928 = vpack.c.b16 %v1508, %v1501
    %v1929 = vpack.c.b16 %v1509, %v1502
    %v1930 = vpack.c.b16 %v1510, %v1503
    %v1931 = vpack.c.b16 %v1511, %v1504
    %v1932 = vpack.c.b16 %v1512, %v1505
    %v1933 = vpack.c.b16 %v1520, %v1513
    %v1934 = vpack.c.b16 %v1521, %v1514
    %v1935 = vpack.c.b16 %v1522, %v1515
    %v1936 = vpack.c.b16 %v1523, %v1516
    %v1937 = vpack.c.b16 %v1524, %v1517
    %v1938 = vpack.c.b16 %v1525, %v1518
    %v1939 = vpack.c.b16 %v1526, %v1519
    %v1940 = vpack.c.b16 %v1534, %v1527
    %v1941 = vpack.c.b16 %v1535, %v1528
    %v1942 = vpack.c.b16 %v1536, %v1529
    %v1943 = vpack.c.b16 %v1537, %v1530
    %v1944 = vpack.c.b16 %v1538, %v1531
    %v1945 = vpack.c.b16 %v1539, %v1532
    %v1946 = vpack.c.b16 %v1540, %v1533
    %v1947 = vpack.c.b16 %v1548, %v1541
    %v1948 = vpack.c.b16 %v1549, %v1542
    %v1949 = vpack.c.b16 %v1550, %v1543
    %v1950 = vpack.c.b16 %v1551, %v1544
    %v1951 = vpack.c.b16 %v1552, %v1545
    %v1952 = vpack.c.b16 %v1553, %v1546
    %v1953 = vpack.c.b16 %v1554, %v1547
    %v1954 = vpack.c.b16 %v1562, %v1555
    %v1955 = vpack.c.b16 %v1563, %v1556
    %v1956 = vpack.c.b16 %v1564, %v1557
    %v1957 = vpack.c.b16 %v1565, %v1558
    %v1958 = vpack.c.b16 %v1566, %v1559
    %v1959 = vpack.c.b16 %v1567, %v1560
    %v1960 = vpack.c.b16 %v1568, %v1561
    %v1961 = vpack.c.b16 %v1576, %v1569
    %v1962 = vpack.c.b16 %v1577, %v1570
    %v1963 = vpack.c.b16 %v1578, %v1571
    %v1964 = vpack.c.b16 %v1579, %v1572
    %v1965 = vpack.c.b16 %v1580, %v1573
    %v1966 = vpack.c.b16 %v1581, %v1574
    %v1967 = vpack.c.b16 %v1582, %v1575
    %v1968 = vpack.c.b16 %v1590, %v1583
    %v1969 = vpack.c.b16 %v1591, %v1584
    %v1970 = vpack.c.b16 %v1592, %v1585
    %v1971 = vpack.c.b16 %v1593, %v1586
    %v1972 = vpack.c.b16 %v1594, %v1587
    %v1973 = vpack.c.b16 %v1595, %v1588
    %v1974 = vpack.c.b16 %v1596, %v1589
    %v1975 = vpack.c.b16 %v1604, %v1597
    %v1976 = vpack.c.b16 %v1605, %v1598
    %v1977 = vpack.c.b16 %v1606, %v1599
    %v1978 = vpack.c.b16 %v1607, %v1600
    %v1979 = vpack.c.b16 %v1608, %v1601
    %v1980 = vpack.c.b16 %v1609, %v1602
    %v1981 = vpack.c.b16 %v1610, %v1603
    %v1982 = vpack.c.b16 %v1618, %v1611
    %v1983 = vpack.c.b16 %v1619, %v1612
    %v1984 = vpack.c.b16 %v1620, %v1613
    %v1985 = vpack.c.b16 %v1621, %v1614
    %v1986 = vpack.c.b16 %v1622, %v1615
    %v1987 = vpack.c.b16 %v1623, %v1616
    %v1988 = vpack.c.b16 %v1624, %v1617
    %v1989 = vpack.c.b16 %v1632, %v1625
    %v1990 = vpack.c.b16 %v1633, %v1626
    %v1991 = vpack.c.b16 %v1634, %v1627
    %v1992 = vpack.c.b16 %v1635, %v1628
    %v1993 = vpack.c.b16 %v1636, %v1629
    %v1994 = vpack.c.b16 %v1637, %v1630
    %v1995 = vpack.c.b16 %v1638, %v1631
    %v1996 = vpack.c.b16 %v1646, %v1639
    %v1997 = vpack.c.b16 %v1647, %v1640
    %v1998 = vpack.c.b16 %v1648, %v1641
    %v1999 = vpack.c.b16 %v1649, %v1642
    %v2000 = vpack.c.b16 %v1650, %v1643
    %v2001 = vpack.c.b16 %v1651, %v1644
    %v2002 = vpack.c.b16 %v1652, %v1645
    %v2003 = vpack.c.b16 %v1660, %v1653
    %v2004 = vpack.c.b16 %v1661, %v1654
    %v2005 = vpack.c.b16 %v1662, %v1655
    %v2006 = vpack.c.b16 %v1663, %v1656
    %v2007 = vpack.c.b16 %v1664, %v1657
    %v2008 = vpack.c.b16 %v1665, %v1658
    %v2009 = vpack.c.b16 %v1666, %v1659
    %vm2353 = vcmask 130048
    %v2355 = vsel %vm2353, %v582, 0
    %2357 = vmatprep.subr.bf16.mxu0 %v1717
    %2358 = vmatpush1.bf16.msra.mxu0 %v1716
    %2359 = vmatprep.subr.bf16.mxu0 %v1710
    %2360 = vmatpush1.bf16.msra.mxu0 %v1709
    %2361 = vmatprep.subr.bf16.mxu0 %v1703
    %2362 = vmatpush1.bf16.msra.mxu0 %v1702
    %2363 = vmatprep.subr.bf16.mxu0 %v1696
    %2364 = vmatpush1.bf16.msra.mxu0 %v1695
    %2365 = vmatprep.subr.bf16.mxu0 %v1689
    %2366 = vmatpush1.bf16.msra.mxu0 %v1688
    %2367 = vmatprep.subr.bf16.mxu0 %v1682
    %2368 = vmatpush1.bf16.msra.mxu0 %v1681
    %2369 = vmatprep.subr.bf16.mxu0 %v1675
    %2370 = vmatpush1.bf16.msra.mxu0 %v1674
    %2371 = vmatprep.subr.bf16.mxu0 %v1668
    %2372 = vmatpush1.bf16.msra.mxu0 %v1667
    %2373 = vmatprep.subr.bf16.mxu0 %v1773
    %2374 = vmatpush2.bf16.msra.mxu0 %v1772
    %2375 = vmatprep.subr.bf16.mxu0 %v1766
    %2376 = vmatpush2.bf16.msra.mxu0 %v1765
    %2377 = vmatprep.subr.bf16.mxu0 %v1759
    %2378 = vmatpush2.bf16.msra.mxu0 %v1758
    %2379 = vmatprep.subr.bf16.mxu0 %v1752
    %2380 = vmatpush2.bf16.msra.mxu0 %v1751
    %2381 = vmatprep.subr.bf16.mxu0 %v1745
    %2382 = vmatpush2.bf16.msra.mxu0 %v1744
    %2383 = vmatprep.subr.bf16.mxu0 %v1738
    %2384 = vmatpush2.bf16.msra.mxu0 %v1737
    %2385 = vmatprep.subr.bf16.mxu0 %v1731
    %2386 = vmatpush2.bf16.msra.mxu0 %v1730
    %2387 = vmatprep.subr.bf16.mxu0 %v1724
    %2388 = vmatpush2.bf16.msra.mxu0 %v1723
    %2389 = vmatprep.mubr.bf16.mxu0 %v577
    %2390 = vmatmul.mubr.bf16.gmra.mxu0 %v576
    %v2391 = vpop.f32.mrf.mxu0
    %v2392 = vadd.f32 %v522, %v2391
    %v2393 = vpop.f32.mrf.mxu0
    %v2394 = vadd.f32 %v526, %v2393
    %v2395 = vpop.f32.mrf.mxu0
    %v2396 = vadd.f32 %v522, %v2395
    %v2397 = vpop.f32.mrf.mxu0
    %v2398 = vadd.f32 %v526, %v2397
    %2399 = vdwg.mxu0
    %2400 = vmatprep.subr.bf16.mxu0 %v1829
    %2401 = vmatpush1.bf16.msra.mxu0 %v1828
    %2402 = vmatprep.subr.bf16.mxu0 %v1822
    %2403 = vmatpush1.bf16.msra.mxu0 %v1821
    %2404 = vmatprep.subr.bf16.mxu0 %v1815
    %2405 = vmatpush1.bf16.msra.mxu0 %v1814
    %2406 = vmatprep.subr.bf16.mxu0 %v1808
    %2407 = vmatpush1.bf16.msra.mxu0 %v1807
    %2408 = vmatprep.subr.bf16.mxu0 %v1801
    %2409 = vmatpush1.bf16.msra.mxu0 %v1800
    %2410 = vmatprep.subr.bf16.mxu0 %v1794
    %2411 = vmatpush1.bf16.msra.mxu0 %v1793
    %2412 = vmatprep.subr.bf16.mxu0 %v1787
    %2413 = vmatpush1.bf16.msra.mxu0 %v1786
    %2414 = vmatprep.subr.bf16.mxu0 %v1780
    %2415 = vmatpush1.bf16.msra.mxu0 %v1779
    %2416 = vmatprep.subr.bf16.mxu0 %v1885
    %2417 = vmatpush2.bf16.msra.mxu0 %v1884
    %2418 = vmatprep.subr.bf16.mxu0 %v1878
    %2419 = vmatpush2.bf16.msra.mxu0 %v1877
    %2420 = vmatprep.subr.bf16.mxu0 %v1871
    %2421 = vmatpush2.bf16.msra.mxu0 %v1870
    %2422 = vmatprep.subr.bf16.mxu0 %v1864
    %2423 = vmatpush2.bf16.msra.mxu0 %v1863
    %2424 = vmatprep.subr.bf16.mxu0 %v1857
    %2425 = vmatpush2.bf16.msra.mxu0 %v1856
    %2426 = vmatprep.subr.bf16.mxu0 %v1850
    %2427 = vmatpush2.bf16.msra.mxu0 %v1849
    %2428 = vmatprep.subr.bf16.mxu0 %v1843
    %2429 = vmatpush2.bf16.msra.mxu0 %v1842
    %2430 = vmatprep.subr.bf16.mxu0 %v1836
    %2431 = vmatpush2.bf16.msra.mxu0 %v1835
    %2432 = vmatprep.mubr.bf16.mxu0 %v579
    %2433 = vmatmul.mubr.bf16.gmra.mxu0 %v578
    %v2434 = vpop.f32.mrf.mxu0
    %v2435 = vadd.f32 %v2392, %v2434
    %v2436 = vpop.f32.mrf.mxu0
    %v2437 = vadd.f32 %v2394, %v2436
    %v2438 = vpop.f32.mrf.mxu0
    %v2439 = vadd.f32 %v2396, %v2438
    %v2440 = vpop.f32.mrf.mxu0
    %v2441 = vadd.f32 %v2398, %v2440
    %2442 = vdwg.mxu0
    %2443 = vmatprep.subr.bf16.mxu0 %v1941
    %2444 = vmatpush1.bf16.msra.mxu0 %v1940
    %2445 = vmatprep.subr.bf16.mxu0 %v1934
    %2446 = vmatpush1.bf16.msra.mxu0 %v1933
    %2447 = vmatprep.subr.bf16.mxu0 %v1927
    %2448 = vmatpush1.bf16.msra.mxu0 %v1926
    %2449 = vmatprep.subr.bf16.mxu0 %v1920
    %2450 = vmatpush1.bf16.msra.mxu0 %v1919
    %2451 = vmatprep.subr.bf16.mxu0 %v1913
    %2452 = vmatpush1.bf16.msra.mxu0 %v1912
    %2453 = vmatprep.subr.bf16.mxu0 %v1906
    %2454 = vmatpush1.bf16.msra.mxu0 %v1905
    %2455 = vmatprep.subr.bf16.mxu0 %v1899
    %2456 = vmatpush1.bf16.msra.mxu0 %v1898
    %2457 = vmatprep.subr.bf16.mxu0 %v1892
    %2458 = vmatpush1.bf16.msra.mxu0 %v1891
    %2459 = vmatprep.subr.bf16.mxu0 %v1997
    %2460 = vmatpush2.bf16.msra.mxu0 %v1996
    %2461 = vmatprep.subr.bf16.mxu0 %v1990
    %2462 = vmatpush2.bf16.msra.mxu0 %v1989
    %2463 = vmatprep.subr.bf16.mxu0 %v1983
    %2464 = vmatpush2.bf16.msra.mxu0 %v1982
    %2465 = vmatprep.subr.bf16.mxu0 %v1976
    %2466 = vmatpush2.bf16.msra.mxu0 %v1975
    %2467 = vmatprep.subr.bf16.mxu0 %v1969
    %2468 = vmatpush2.bf16.msra.mxu0 %v1968
    %2469 = vmatprep.subr.bf16.mxu0 %v1962
    %2470 = vmatpush2.bf16.msra.mxu0 %v1961
    %2471 = vmatprep.subr.bf16.mxu0 %v1955
    %2472 = vmatpush2.bf16.msra.mxu0 %v1954
    %2473 = vmatprep.subr.bf16.mxu0 %v1948
    %2474 = vmatpush2.bf16.msra.mxu0 %v1947
    %2475 = vmatprep.mubr.bf16.mxu0 %v581
    %2476 = vmatmul.mubr.bf16.gmra.mxu0 %v580
    %v2477 = vpop.f32.mrf.mxu0
    %v2478 = vadd.f32 %v2435, %v2477
    %v2479 = vpop.f32.mrf.mxu0
    %v2480 = vadd.f32 %v2437, %v2479
    %v2481 = vpop.f32.mrf.mxu0
    %v2482 = vadd.f32 %v2439, %v2481
    %v2483 = vpop.f32.mrf.mxu0
    %v2484 = vadd.f32 %v2441, %v2483
    %2485 = vdwg.mxu0
    %2486 = vmatprep.subr.bf16.mxu0 0
    %2487 = vmatpush1.bf16.msra.mxu0 0
    %2488 = vmatprep.subr.bf16.mxu0 0
    %2489 = vmatpush1.bf16.msra.mxu0 0
    %2490 = vmatprep.subr.bf16.mxu0 0
    %2491 = vmatpush1.bf16.msra.mxu0 0
    %2492 = vmatprep.subr.bf16.mxu0 0
    %2493 = vmatpush1.bf16.msra.mxu0 0
    %2494 = vmatprep.subr.bf16.mxu0 0
    %2495 = vmatpush1.bf16.msra.mxu0 0
    %2496 = vmatprep.subr.bf16.mxu0 0
    %2497 = vmatpush1.bf16.msra.mxu0 0
    %2498 = vmatprep.subr.bf16.mxu0 0
    %2499 = vmatpush1.bf16.msra.mxu0 0
    %2500 = vmatprep.subr.bf16.mxu0 %v2004
    %2501 = vmatpush1.bf16.msra.mxu0 %v2003
    %2502 = vmatprep.subr.bf16.mxu0 0
    %2503 = vmatpush2.bf16.msra.mxu0 0
    %2504 = vmatprep.subr.bf16.mxu0 0
    %2505 = vmatpush2.bf16.msra.mxu0 0
    %2506 = vmatprep.subr.bf16.mxu0 0
    %2507 = vmatpush2.bf16.msra.mxu0 0
    %2508 = vmatprep.subr.bf16.mxu0 0
    %2509 = vmatpush2.bf16.msra.mxu0 0
    %2510 = vmatprep.subr.bf16.mxu0 0
    %2511 = vmatpush2.bf16.msra.mxu0 0
    %2512 = vmatprep.subr.bf16.mxu0 0
    %2513 = vmatpush2.bf16.msra.mxu0 0
    %2514 = vmatprep.subr.bf16.mxu0 0
    %2515 = vmatpush2.bf16.msra.mxu0 0
    %2516 = vmatprep.subr.bf16.mxu0 0
    %2517 = vmatpush2.bf16.msra.mxu0 0
    %2518 = vmatprep.mubr.bf16.mxu0 0
    %2519 = vmatmul.mubr.bf16.gmra.mxu0 %v2355
    %v2520 = vpop.f32.mrf.mxu0
    %v2521 = vadd.f32 %v2478, %v2520
    %v2522 = vpop.f32.mrf.mxu0
    %v2523 = vadd.f32 %v2480, %v2522
    %v2524 = vpop.f32.mrf.mxu0
    %v2525 = vadd.f32 %v2482, %v2524
    %v2526 = vpop.f32.mrf.mxu0
    %v2527 = vadd.f32 %v2484, %v2526
    %2528 = vdwg.mxu0
    %2529 = vmatprep.subr.bf16.mxu0 %v1719
    %2530 = vmatpush1.bf16.msra.mxu0 %v1718
    %2531 = vmatprep.subr.bf16.mxu0 %v1712
    %2532 = vmatpush1.bf16.msra.mxu0 %v1711
    %2533 = vmatprep.subr.bf16.mxu0 %v1705
    %2534 = vmatpush1.bf16.msra.mxu0 %v1704
    %2535 = vmatprep.subr.bf16.mxu0 %v1698
    %2536 = vmatpush1.bf16.msra.mxu0 %v1697
    %2537 = vmatprep.subr.bf16.mxu0 %v1691
    %2538 = vmatpush1.bf16.msra.mxu0 %v1690
    %2539 = vmatprep.subr.bf16.mxu0 %v1684
    %2540 = vmatpush1.bf16.msra.mxu0 %v1683
    %2541 = vmatprep.subr.bf16.mxu0 %v1677
    %2542 = vmatpush1.bf16.msra.mxu0 %v1676
    %2543 = vmatprep.subr.bf16.mxu0 %v1670
    %2544 = vmatpush1.bf16.msra.mxu0 %v1669
    %2545 = vmatprep.subr.bf16.mxu0 %v1775
    %2546 = vmatpush2.bf16.msra.mxu0 %v1774
    %2547 = vmatprep.subr.bf16.mxu0 %v1768
    %2548 = vmatpush2.bf16.msra.mxu0 %v1767
    %2549 = vmatprep.subr.bf16.mxu0 %v1761
    %2550 = vmatpush2.bf16.msra.mxu0 %v1760
    %2551 = vmatprep.subr.bf16.mxu0 %v1754
    %2552 = vmatpush2.bf16.msra.mxu0 %v1753
    %2553 = vmatprep.subr.bf16.mxu0 %v1747
    %2554 = vmatpush2.bf16.msra.mxu0 %v1746
    %2555 = vmatprep.subr.bf16.mxu0 %v1740
    %2556 = vmatpush2.bf16.msra.mxu0 %v1739
    %2557 = vmatprep.subr.bf16.mxu0 %v1733
    %2558 = vmatpush2.bf16.msra.mxu0 %v1732
    %2559 = vmatprep.subr.bf16.mxu0 %v1726
    %2560 = vmatpush2.bf16.msra.mxu0 %v1725
    %2561 = vmatprep.mubr.bf16.mxu0 %v577
    %2562 = vmatmul.mubr.bf16.gmra.mxu0 %v576
    %v2563 = vpop.f32.mrf.mxu0
    %v2564 = vadd.f32 %v530, %v2563
    %v2565 = vpop.f32.mrf.mxu0
    %v2566 = vadd.f32 %v534, %v2565
    %v2567 = vpop.f32.mrf.mxu0
    %v2568 = vadd.f32 %v530, %v2567
    %v2569 = vpop.f32.mrf.mxu0
    %v2570 = vadd.f32 %v534, %v2569
    %2571 = vdwg.mxu0
    %2572 = vmatprep.subr.bf16.mxu0 %v1831
    %2573 = vmatpush1.bf16.msra.mxu0 %v1830
    %2574 = vmatprep.subr.bf16.mxu0 %v1824
    %2575 = vmatpush1.bf16.msra.mxu0 %v1823
    %2576 = vmatprep.subr.bf16.mxu0 %v1817
    %2577 = vmatpush1.bf16.msra.mxu0 %v1816
    %2578 = vmatprep.subr.bf16.mxu0 %v1810
    %2579 = vmatpush1.bf16.msra.mxu0 %v1809
    %2580 = vmatprep.subr.bf16.mxu0 %v1803
    %2581 = vmatpush1.bf16.msra.mxu0 %v1802
    %2582 = vmatprep.subr.bf16.mxu0 %v1796
    %2583 = vmatpush1.bf16.msra.mxu0 %v1795
    %2584 = vmatprep.subr.bf16.mxu0 %v1789
    %2585 = vmatpush1.bf16.msra.mxu0 %v1788
    %2586 = vmatprep.subr.bf16.mxu0 %v1782
    %2587 = vmatpush1.bf16.msra.mxu0 %v1781
    %2588 = vmatprep.subr.bf16.mxu0 %v1887
    %2589 = vmatpush2.bf16.msra.mxu0 %v1886
    %2590 = vmatprep.subr.bf16.mxu0 %v1880
    %2591 = vmatpush2.bf16.msra.mxu0 %v1879
    %2592 = vmatprep.subr.bf16.mxu0 %v1873
    %2593 = vmatpush2.bf16.msra.mxu0 %v1872
    %2594 = vmatprep.subr.bf16.mxu0 %v1866
    %2595 = vmatpush2.bf16.msra.mxu0 %v1865
    %2596 = vmatprep.subr.bf16.mxu0 %v1859
    %2597 = vmatpush2.bf16.msra.mxu0 %v1858
    %2598 = vmatprep.subr.bf16.mxu0 %v1852
    %2599 = vmatpush2.bf16.msra.mxu0 %v1851
    %2600 = vmatprep.subr.bf16.mxu0 %v1845
    %2601 = vmatpush2.bf16.msra.mxu0 %v1844
    %2602 = vmatprep.subr.bf16.mxu0 %v1838
    %2603 = vmatpush2.bf16.msra.mxu0 %v1837
    %2604 = vmatprep.mubr.bf16.mxu0 %v579
    %2605 = vmatmul.mubr.bf16.gmra.mxu0 %v578
    %v2606 = vpop.f32.mrf.mxu0
    %v2607 = vadd.f32 %v2564, %v2606
    %v2608 = vpop.f32.mrf.mxu0
    %v2609 = vadd.f32 %v2566, %v2608
    %v2610 = vpop.f32.mrf.mxu0
    %v2611 = vadd.f32 %v2568, %v2610
    %v2612 = vpop.f32.mrf.mxu0
    %v2613 = vadd.f32 %v2570, %v2612
    %2614 = vdwg.mxu0
    %2615 = vmatprep.subr.bf16.mxu0 %v1943
    %2616 = vmatpush1.bf16.msra.mxu0 %v1942
    %2617 = vmatprep.subr.bf16.mxu0 %v1936
    %2618 = vmatpush1.bf16.msra.mxu0 %v1935
    %2619 = vmatprep.subr.bf16.mxu0 %v1929
    %2620 = vmatpush1.bf16.msra.mxu0 %v1928
    %2621 = vmatprep.subr.bf16.mxu0 %v1922
    %2622 = vmatpush1.bf16.msra.mxu0 %v1921
    %2623 = vmatprep.subr.bf16.mxu0 %v1915
    %2624 = vmatpush1.bf16.msra.mxu0 %v1914
    %2625 = vmatprep.subr.bf16.mxu0 %v1908
    %2626 = vmatpush1.bf16.msra.mxu0 %v1907
    %2627 = vmatprep.subr.bf16.mxu0 %v1901
    %2628 = vmatpush1.bf16.msra.mxu0 %v1900
    %2629 = vmatprep.subr.bf16.mxu0 %v1894
    %2630 = vmatpush1.bf16.msra.mxu0 %v1893
    %2631 = vmatprep.subr.bf16.mxu0 %v1999
    %2632 = vmatpush2.bf16.msra.mxu0 %v1998
    %2633 = vmatprep.subr.bf16.mxu0 %v1992
    %2634 = vmatpush2.bf16.msra.mxu0 %v1991
    %2635 = vmatprep.subr.bf16.mxu0 %v1985
    %2636 = vmatpush2.bf16.msra.mxu0 %v1984
    %2637 = vmatprep.subr.bf16.mxu0 %v1978
    %2638 = vmatpush2.bf16.msra.mxu0 %v1977
    %2639 = vmatprep.subr.bf16.mxu0 %v1971
    %2640 = vmatpush2.bf16.msra.mxu0 %v1970
    %2641 = vmatprep.subr.bf16.mxu0 %v1964
    %2642 = vmatpush2.bf16.msra.mxu0 %v1963
    %2643 = vmatprep.subr.bf16.mxu0 %v1957
    %2644 = vmatpush2.bf16.msra.mxu0 %v1956
    %2645 = vmatprep.subr.bf16.mxu0 %v1950
    %2646 = vmatpush2.bf16.msra.mxu0 %v1949
    %2647 = vmatprep.mubr.bf16.mxu0 %v581
    %2648 = vmatmul.mubr.bf16.gmra.mxu0 %v580
    %v2649 = vpop.f32.mrf.mxu0
    %v2650 = vadd.f32 %v2607, %v2649
    %v2651 = vpop.f32.mrf.mxu0
    %v2652 = vadd.f32 %v2609, %v2651
    %v2653 = vpop.f32.mrf.mxu0
    %v2654 = vadd.f32 %v2611, %v2653
    %v2655 = vpop.f32.mrf.mxu0
    %v2656 = vadd.f32 %v2613, %v2655
    %2657 = vdwg.mxu0
    %2658 = vmatprep.subr.bf16.mxu0 0
    %2659 = vmatpush1.bf16.msra.mxu0 0
    %2660 = vmatprep.subr.bf16.mxu0 0
    %2661 = vmatpush1.bf16.msra.mxu0 0
    %2662 = vmatprep.subr.bf16.mxu0 0
    %2663 = vmatpush1.bf16.msra.mxu0 0
    %2664 = vmatprep.subr.bf16.mxu0 0
    %2665 = vmatpush1.bf16.msra.mxu0 0
    %2666 = vmatprep.subr.bf16.mxu0 0
    %2667 = vmatpush1.bf16.msra.mxu0 0
    %2668 = vmatprep.subr.bf16.mxu0 0
    %2669 = vmatpush1.bf16.msra.mxu0 0
    %2670 = vmatprep.subr.bf16.mxu0 0
    %2671 = vmatpush1.bf16.msra.mxu0 0
    %2672 = vmatprep.subr.bf16.mxu0 %v2006
    %2673 = vmatpush1.bf16.msra.mxu0 %v2005
    %2674 = vmatprep.subr.bf16.mxu0 0
    %2675 = vmatpush2.bf16.msra.mxu0 0
    %2676 = vmatprep.subr.bf16.mxu0 0
    %2677 = vmatpush2.bf16.msra.mxu0 0
    %2678 = vmatprep.subr.bf16.mxu0 0
    %2679 = vmatpush2.bf16.msra.mxu0 0
    %2680 = vmatprep.subr.bf16.mxu0 0
    %2681 = vmatpush2.bf16.msra.mxu0 0
    %2682 = vmatprep.subr.bf16.mxu0 0
    %2683 = vmatpush2.bf16.msra.mxu0 0
    %2684 = vmatprep.subr.bf16.mxu0 0
    %2685 = vmatpush2.bf16.msra.mxu0 0
    %2686 = vmatprep.subr.bf16.mxu0 0
    %2687 = vmatpush2.bf16.msra.mxu0 0
    %2688 = vmatprep.subr.bf16.mxu0 0
    %2689 = vmatpush2.bf16.msra.mxu0 0
    %2690 = vmatprep.mubr.bf16.mxu0 0
    %2691 = vmatmul.mubr.bf16.gmra.mxu0 %v2355
    %v2692 = vpop.f32.mrf.mxu0
    %v2693 = vadd.f32 %v2650, %v2692
    %v2694 = vpop.f32.mrf.mxu0
    %v2695 = vadd.f32 %v2652, %v2694
    %v2696 = vpop.f32.mrf.mxu0
    %v2697 = vadd.f32 %v2654, %v2696
    %v2698 = vpop.f32.mrf.mxu0
    %v2699 = vadd.f32 %v2656, %v2698
    %2700 = vdwg.mxu0
    %2701 = vmatprep.subr.bf16.mxu0 %v1721
    %2702 = vmatpush1.bf16.msra.mxu0 %v1720
    %2703 = vmatprep.subr.bf16.mxu0 %v1714
    %2704 = vmatpush1.bf16.msra.mxu0 %v1713
    %2705 = vmatprep.subr.bf16.mxu0 %v1707
    %2706 = vmatpush1.bf16.msra.mxu0 %v1706
    %2707 = vmatprep.subr.bf16.mxu0 %v1700
    %2708 = vmatpush1.bf16.msra.mxu0 %v1699
    %2709 = vmatprep.subr.bf16.mxu0 %v1693
    %2710 = vmatpush1.bf16.msra.mxu0 %v1692
    %2711 = vmatprep.subr.bf16.mxu0 %v1686
    %2712 = vmatpush1.bf16.msra.mxu0 %v1685
    %2713 = vmatprep.subr.bf16.mxu0 %v1679
    %2714 = vmatpush1.bf16.msra.mxu0 %v1678
    %2715 = vmatprep.subr.bf16.mxu0 %v1672
    %2716 = vmatpush1.bf16.msra.mxu0 %v1671
    %2717 = vmatprep.subr.bf16.mxu0 %v1777
    %2718 = vmatpush2.bf16.msra.mxu0 %v1776
    %2719 = vmatprep.subr.bf16.mxu0 %v1770
    %2720 = vmatpush2.bf16.msra.mxu0 %v1769
    %2721 = vmatprep.subr.bf16.mxu0 %v1763
    %2722 = vmatpush2.bf16.msra.mxu0 %v1762
    %2723 = vmatprep.subr.bf16.mxu0 %v1756
    %2724 = vmatpush2.bf16.msra.mxu0 %v1755
    %2725 = vmatprep.subr.bf16.mxu0 %v1749
    %2726 = vmatpush2.bf16.msra.mxu0 %v1748
    %2727 = vmatprep.subr.bf16.mxu0 %v1742
    %2728 = vmatpush2.bf16.msra.mxu0 %v1741
    %2729 = vmatprep.subr.bf16.mxu0 %v1735
    %2730 = vmatpush2.bf16.msra.mxu0 %v1734
    %2731 = vmatprep.subr.bf16.mxu0 %v1728
    %2732 = vmatpush2.bf16.msra.mxu0 %v1727
    %2733 = vmatprep.mubr.bf16.mxu0 %v577
    %2734 = vmatmul.mubr.bf16.gmra.mxu0 %v576
    %v2735 = vpop.f32.mrf.mxu0
    %v2736 = vadd.f32 %v538, %v2735
    %v2737 = vpop.f32.mrf.mxu0
    %v2738 = vadd.f32 %v542, %v2737
    %v2739 = vpop.f32.mrf.mxu0
    %v2740 = vadd.f32 %v538, %v2739
    %v2741 = vpop.f32.mrf.mxu0
    %v2742 = vadd.f32 %v542, %v2741
    %2743 = vdwg.mxu0
    %2744 = vmatprep.subr.bf16.mxu0 %v1833
    %2745 = vmatpush1.bf16.msra.mxu0 %v1832
    %2746 = vmatprep.subr.bf16.mxu0 %v1826
    %2747 = vmatpush1.bf16.msra.mxu0 %v1825
    %2748 = vmatprep.subr.bf16.mxu0 %v1819
    %2749 = vmatpush1.bf16.msra.mxu0 %v1818
    %2750 = vmatprep.subr.bf16.mxu0 %v1812
    %2751 = vmatpush1.bf16.msra.mxu0 %v1811
    %2752 = vmatprep.subr.bf16.mxu0 %v1805
    %2753 = vmatpush1.bf16.msra.mxu0 %v1804
    %2754 = vmatprep.subr.bf16.mxu0 %v1798
    %2755 = vmatpush1.bf16.msra.mxu0 %v1797
    %2756 = vmatprep.subr.bf16.mxu0 %v1791
    %2757 = vmatpush1.bf16.msra.mxu0 %v1790
    %2758 = vmatprep.subr.bf16.mxu0 %v1784
    %2759 = vmatpush1.bf16.msra.mxu0 %v1783
    %2760 = vmatprep.subr.bf16.mxu0 %v1889
    %2761 = vmatpush2.bf16.msra.mxu0 %v1888
    %2762 = vmatprep.subr.bf16.mxu0 %v1882
    %2763 = vmatpush2.bf16.msra.mxu0 %v1881
    %2764 = vmatprep.subr.bf16.mxu0 %v1875
    %2765 = vmatpush2.bf16.msra.mxu0 %v1874
    %2766 = vmatprep.subr.bf16.mxu0 %v1868
    %2767 = vmatpush2.bf16.msra.mxu0 %v1867
    %2768 = vmatprep.subr.bf16.mxu0 %v1861
    %2769 = vmatpush2.bf16.msra.mxu0 %v1860
    %2770 = vmatprep.subr.bf16.mxu0 %v1854
    %2771 = vmatpush2.bf16.msra.mxu0 %v1853
    %2772 = vmatprep.subr.bf16.mxu0 %v1847
    %2773 = vmatpush2.bf16.msra.mxu0 %v1846
    %2774 = vmatprep.subr.bf16.mxu0 %v1840
    %2775 = vmatpush2.bf16.msra.mxu0 %v1839
    %2776 = vmatprep.mubr.bf16.mxu0 %v579
    %2777 = vmatmul.mubr.bf16.gmra.mxu0 %v578
    %v2778 = vpop.f32.mrf.mxu0
    %v2779 = vadd.f32 %v2736, %v2778
    %v2780 = vpop.f32.mrf.mxu0
    %v2781 = vadd.f32 %v2738, %v2780
    %v2782 = vpop.f32.mrf.mxu0
    %v2783 = vadd.f32 %v2740, %v2782
    %v2784 = vpop.f32.mrf.mxu0
    %v2785 = vadd.f32 %v2742, %v2784
    %2786 = vdwg.mxu0
    %2787 = vmatprep.subr.bf16.mxu0 %v1945
    %2788 = vmatpush1.bf16.msra.mxu0 %v1944
    %2789 = vmatprep.subr.bf16.mxu0 %v1938
    %2790 = vmatpush1.bf16.msra.mxu0 %v1937
    %2791 = vmatprep.subr.bf16.mxu0 %v1931
    %2792 = vmatpush1.bf16.msra.mxu0 %v1930
    %2793 = vmatprep.subr.bf16.mxu0 %v1924
    %2794 = vmatpush1.bf16.msra.mxu0 %v1923
    %2795 = vmatprep.subr.bf16.mxu0 %v1917
    %2796 = vmatpush1.bf16.msra.mxu0 %v1916
    %2797 = vmatprep.subr.bf16.mxu0 %v1910
    %2798 = vmatpush1.bf16.msra.mxu0 %v1909
    %2799 = vmatprep.subr.bf16.mxu0 %v1903
    %2800 = vmatpush1.bf16.msra.mxu0 %v1902
    %2801 = vmatprep.subr.bf16.mxu0 %v1896
    %2802 = vmatpush1.bf16.msra.mxu0 %v1895
    %2803 = vmatprep.subr.bf16.mxu0 %v2001
    %2804 = vmatpush2.bf16.msra.mxu0 %v2000
    %2805 = vmatprep.subr.bf16.mxu0 %v1994
    %2806 = vmatpush2.bf16.msra.mxu0 %v1993
    %2807 = vmatprep.subr.bf16.mxu0 %v1987
    %2808 = vmatpush2.bf16.msra.mxu0 %v1986
    %2809 = vmatprep.subr.bf16.mxu0 %v1980
    %2810 = vmatpush2.bf16.msra.mxu0 %v1979
    %2811 = vmatprep.subr.bf16.mxu0 %v1973
    %2812 = vmatpush2.bf16.msra.mxu0 %v1972
    %2813 = vmatprep.subr.bf16.mxu0 %v1966
    %2814 = vmatpush2.bf16.msra.mxu0 %v1965
    %2815 = vmatprep.subr.bf16.mxu0 %v1959
    %2816 = vmatpush2.bf16.msra.mxu0 %v1958
    %2817 = vmatprep.subr.bf16.mxu0 %v1952
    %2818 = vmatpush2.bf16.msra.mxu0 %v1951
    %2819 = vmatprep.mubr.bf16.mxu0 %v581
    %2820 = vmatmul.mubr.bf16.gmra.mxu0 %v580
    %v2821 = vpop.f32.mrf.mxu0
    %v2822 = vadd.f32 %v2779, %v2821
    %v2823 = vpop.f32.mrf.mxu0
    %v2824 = vadd.f32 %v2781, %v2823
    %v2825 = vpop.f32.mrf.mxu0
    %v2826 = vadd.f32 %v2783, %v2825
    %v2827 = vpop.f32.mrf.mxu0
    %v2828 = vadd.f32 %v2785, %v2827
    %2829 = vdwg.mxu0
    %2830 = vmatprep.subr.bf16.mxu0 0
    %2831 = vmatpush1.bf16.msra.mxu0 0
    %2832 = vmatprep.subr.bf16.mxu0 0
    %2833 = vmatpush1.bf16.msra.mxu0 0
    %2834 = vmatprep.subr.bf16.mxu0 0
    %2835 = vmatpush1.bf16.msra.mxu0 0
    %2836 = vmatprep.subr.bf16.mxu0 0
    %2837 = vmatpush1.bf16.msra.mxu0 0
    %2838 = vmatprep.subr.bf16.mxu0 0
    %2839 = vmatpush1.bf16.msra.mxu0 0
    %2840 = vmatprep.subr.bf16.mxu0 0
    %2841 = vmatpush1.bf16.msra.mxu0 0
    %2842 = vmatprep.subr.bf16.mxu0 0
    %2843 = vmatpush1.bf16.msra.mxu0 0
    %2844 = vmatprep.subr.bf16.mxu0 %v2008
    %2845 = vmatpush1.bf16.msra.mxu0 %v2007
    %2846 = vmatprep.subr.bf16.mxu0 0
    %2847 = vmatpush2.bf16.msra.mxu0 0
    %2848 = vmatprep.subr.bf16.mxu0 0
    %2849 = vmatpush2.bf16.msra.mxu0 0
    %2850 = vmatprep.subr.bf16.mxu0 0
    %2851 = vmatpush2.bf16.msra.mxu0 0
    %2852 = vmatprep.subr.bf16.mxu0 0
    %2853 = vmatpush2.bf16.msra.mxu0 0
    %2854 = vmatprep.subr.bf16.mxu0 0
    %2855 = vmatpush2.bf16.msra.mxu0 0
    %2856 = vmatprep.subr.bf16.mxu0 0
    %2857 = vmatpush2.bf16.msra.mxu0 0
    %2858 = vmatprep.subr.bf16.mxu0 0
    %2859 = vmatpush2.bf16.msra.mxu0 0
    %2860 = vmatprep.subr.bf16.mxu0 0
    %2861 = vmatpush2.bf16.msra.mxu0 0
    %2862 = vmatprep.mubr.bf16.mxu0 0
    %2863 = vmatmul.mubr.bf16.gmra.mxu0 %v2355
    %v2864 = vpop.f32.mrf.mxu0
    %v2865 = vadd.f32 %v2822, %v2864
    %v2866 = vpop.f32.mrf.mxu0
    %v2867 = vadd.f32 %v2824, %v2866
    %v2868 = vpop.f32.mrf.mxu0
    %v2869 = vadd.f32 %v2826, %v2868
    %v2870 = vpop.f32.mrf.mxu0
    %v2871 = vadd.f32 %v2828, %v2870
    %2872 = vdwg.mxu0
    %2873 = vmatprep.subr.bf16.mxu0 0
    %2874 = vmatpush1.bf16.msra.mxu0 %v1722
    %2875 = vmatprep.subr.bf16.mxu0 0
    %2876 = vmatpush1.bf16.msra.mxu0 %v1715
    %2877 = vmatprep.subr.bf16.mxu0 0
    %2878 = vmatpush1.bf16.msra.mxu0 %v1708
    %2879 = vmatprep.subr.bf16.mxu0 0
    %2880 = vmatpush1.bf16.msra.mxu0 %v1701
    %2881 = vmatprep.subr.bf16.mxu0 0
    %2882 = vmatpush1.bf16.msra.mxu0 %v1694
    %2883 = vmatprep.subr.bf16.mxu0 0
    %2884 = vmatpush1.bf16.msra.mxu0 %v1687
    %2885 = vmatprep.subr.bf16.mxu0 0
    %2886 = vmatpush1.bf16.msra.mxu0 %v1680
    %2887 = vmatprep.subr.bf16.mxu0 0
    %2888 = vmatpush1.bf16.msra.mxu0 %v1673
    %2889 = vmatprep.subr.bf16.mxu0 0
    %2890 = vmatpush2.bf16.msra.mxu0 %v1778
    %2891 = vmatprep.subr.bf16.mxu0 0
    %2892 = vmatpush2.bf16.msra.mxu0 %v1771
    %2893 = vmatprep.subr.bf16.mxu0 0
    %2894 = vmatpush2.bf16.msra.mxu0 %v1764
    %2895 = vmatprep.subr.bf16.mxu0 0
    %2896 = vmatpush2.bf16.msra.mxu0 %v1757
    %2897 = vmatprep.subr.bf16.mxu0 0
    %2898 = vmatpush2.bf16.msra.mxu0 %v1750
    %2899 = vmatprep.subr.bf16.mxu0 0
    %2900 = vmatpush2.bf16.msra.mxu0 %v1743
    %2901 = vmatprep.subr.bf16.mxu0 0
    %2902 = vmatpush2.bf16.msra.mxu0 %v1736
    %2903 = vmatprep.subr.bf16.mxu0 0
    %2904 = vmatpush2.bf16.msra.mxu0 %v1729
    %2905 = vmatprep.mubr.bf16.mxu0 %v577
    %2906 = vmatmul.mubr.bf16.gmra.mxu0 %v576
    %v2907 = vpop.f32.mrf.mxu0
    %v2908 = vadd.f32 %v546, %v2907
    %v2909 = vpop.f32.mrf.mxu0
    %v2910 = vpop.f32.mrf.mxu0
    %v2911 = vadd.f32 %v546, %v2910
    %v2912 = vpop.f32.mrf.mxu0
    %2913 = vdwg.mxu0
    %2914 = vmatprep.subr.bf16.mxu0 0
    %2915 = vmatpush1.bf16.msra.mxu0 %v1834
    %2916 = vmatprep.subr.bf16.mxu0 0
    %2917 = vmatpush1.bf16.msra.mxu0 %v1827
    %2918 = vmatprep.subr.bf16.mxu0 0
    %2919 = vmatpush1.bf16.msra.mxu0 %v1820
    %2920 = vmatprep.subr.bf16.mxu0 0
    %2921 = vmatpush1.bf16.msra.mxu0 %v1813
    %2922 = vmatprep.subr.bf16.mxu0 0
    %2923 = vmatpush1.bf16.msra.mxu0 %v1806
    %2924 = vmatprep.subr.bf16.mxu0 0
    %2925 = vmatpush1.bf16.msra.mxu0 %v1799
    %2926 = vmatprep.subr.bf16.mxu0 0
    %2927 = vmatpush1.bf16.msra.mxu0 %v1792
    %2928 = vmatprep.subr.bf16.mxu0 0
    %2929 = vmatpush1.bf16.msra.mxu0 %v1785
    %2930 = vmatprep.subr.bf16.mxu0 0
    %2931 = vmatpush2.bf16.msra.mxu0 %v1890
    %2932 = vmatprep.subr.bf16.mxu0 0
    %2933 = vmatpush2.bf16.msra.mxu0 %v1883
    %2934 = vmatprep.subr.bf16.mxu0 0
    %2935 = vmatpush2.bf16.msra.mxu0 %v1876
    %2936 = vmatprep.subr.bf16.mxu0 0
    %2937 = vmatpush2.bf16.msra.mxu0 %v1869
    %2938 = vmatprep.subr.bf16.mxu0 0
    %2939 = vmatpush2.bf16.msra.mxu0 %v1862
    %2940 = vmatprep.subr.bf16.mxu0 0
    %2941 = vmatpush2.bf16.msra.mxu0 %v1855
    %2942 = vmatprep.subr.bf16.mxu0 0
    %2943 = vmatpush2.bf16.msra.mxu0 %v1848
    %2944 = vmatprep.subr.bf16.mxu0 0
    %2945 = vmatpush2.bf16.msra.mxu0 %v1841
    %2946 = vmatprep.mubr.bf16.mxu0 %v579
    %2947 = vmatmul.mubr.bf16.gmra.mxu0 %v578
    %v2948 = vpop.f32.mrf.mxu0
    %v2949 = vadd.f32 %v2908, %v2948
    %v2950 = vpop.f32.mrf.mxu0
    %v2951 = vpop.f32.mrf.mxu0
    %v2952 = vadd.f32 %v2911, %v2951
    %v2953 = vpop.f32.mrf.mxu0
    %2954 = vdwg.mxu0
    %2955 = vmatprep.subr.bf16.mxu0 0
    %2956 = vmatpush1.bf16.msra.mxu0 %v1946
    %2957 = vmatprep.subr.bf16.mxu0 0
    %2958 = vmatpush1.bf16.msra.mxu0 %v1939
    %2959 = vmatprep.subr.bf16.mxu0 0
    %2960 = vmatpush1.bf16.msra.mxu0 %v1932
    %2961 = vmatprep.subr.bf16.mxu0 0
    %2962 = vmatpush1.bf16.msra.mxu0 %v1925
    %2963 = vmatprep.subr.bf16.mxu0 0
    %2964 = vmatpush1.bf16.msra.mxu0 %v1918
    %2965 = vmatprep.subr.bf16.mxu0 0
    %2966 = vmatpush1.bf16.msra.mxu0 %v1911
    %2967 = vmatprep.subr.bf16.mxu0 0
    %2968 = vmatpush1.bf16.msra.mxu0 %v1904
    %2969 = vmatprep.subr.bf16.mxu0 0
    %2970 = vmatpush1.bf16.msra.mxu0 %v1897
    %2971 = vmatprep.subr.bf16.mxu0 0
    %2972 = vmatpush2.bf16.msra.mxu0 %v2002
    %2973 = vmatprep.subr.bf16.mxu0 0
    %2974 = vmatpush2.bf16.msra.mxu0 %v1995
    %2975 = vmatprep.subr.bf16.mxu0 0
    %2976 = vmatpush2.bf16.msra.mxu0 %v1988
    %2977 = vmatprep.subr.bf16.mxu0 0
    %2978 = vmatpush2.bf16.msra.mxu0 %v1981
    %2979 = vmatprep.subr.bf16.mxu0 0
    %2980 = vmatpush2.bf16.msra.mxu0 %v1974
    %2981 = vmatprep.subr.bf16.mxu0 0
    %2982 = vmatpush2.bf16.msra.mxu0 %v1967
    %2983 = vmatprep.subr.bf16.mxu0 0
    %2984 = vmatpush2.bf16.msra.mxu0 %v1960
    %2985 = vmatprep.subr.bf16.mxu0 0
    %2986 = vmatpush2.bf16.msra.mxu0 %v1953
    %2987 = vmatprep.mubr.bf16.mxu0 %v581
    %2988 = vmatmul.mubr.bf16.gmra.mxu0 %v580
    %v2989 = vpop.f32.mrf.mxu0
    %v2990 = vadd.f32 %v2949, %v2989
    %v2991 = vpop.f32.mrf.mxu0
    %v2992 = vpop.f32.mrf.mxu0
    %v2993 = vadd.f32 %v2952, %v2992
    %v2994 = vpop.f32.mrf.mxu0
    %2995 = vdwg.mxu0
    %2996 = vmatprep.subr.bf16.mxu0 0
    %2997 = vmatpush1.bf16.msra.mxu0 0
    %2998 = vmatprep.subr.bf16.mxu0 0
    %2999 = vmatpush1.bf16.msra.mxu0 0
    %3000 = vmatprep.subr.bf16.mxu0 0
    %3001 = vmatpush1.bf16.msra.mxu0 0
    %3002 = vmatprep.subr.bf16.mxu0 0
    %3003 = vmatpush1.bf16.msra.mxu0 0
    %3004 = vmatprep.subr.bf16.mxu0 0
    %3005 = vmatpush1.bf16.msra.mxu0 0
    %3006 = vmatprep.subr.bf16.mxu0 0
    %3007 = vmatpush1.bf16.msra.mxu0 0
    %3008 = vmatprep.subr.bf16.mxu0 0
    %3009 = vmatpush1.bf16.msra.mxu0 0
    %3010 = vmatprep.subr.bf16.mxu0 0
    %3011 = vmatpush1.bf16.msra.mxu0 %v2009
    %3012 = vmatprep.subr.bf16.mxu0 0
    %3013 = vmatpush2.bf16.msra.mxu0 0
    %3014 = vmatprep.subr.bf16.mxu0 0
    %3015 = vmatpush2.bf16.msra.mxu0 0
    %3016 = vmatprep.subr.bf16.mxu0 0
    %3017 = vmatpush2.bf16.msra.mxu0 0
    %3018 = vmatprep.subr.bf16.mxu0 0
    %3019 = vmatpush2.bf16.msra.mxu0 0
    %3020 = vmatprep.subr.bf16.mxu0 0
    %3021 = vmatpush2.bf16.msra.mxu0 0
    %3022 = vmatprep.subr.bf16.mxu0 0
    %3023 = vmatpush2.bf16.msra.mxu0 0
    %3024 = vmatprep.subr.bf16.mxu0 0
    %3025 = vmatpush2.bf16.msra.mxu0 0
    %3026 = vmatprep.subr.bf16.mxu0 0
    %3027 = vmatpush2.bf16.msra.mxu0 0
    %3028 = vmatprep.mubr.bf16.mxu0 0
    %3029 = vmatmul.mubr.bf16.gmra.mxu0 %v2355
    %v3030 = vpop.f32.mrf.mxu0
    %v3031 = vadd.f32 %v2990, %v3030
    %v3032 = vpop.f32.mrf.mxu0
    %v3033 = vpop.f32.mrf.mxu0
    %v3034 = vadd.f32 %v2993, %v3033
    %v3035 = vpop.f32.mrf.mxu0
    %3036 = vdwg.mxu0
    %v3037 = vmax.f32 %v2521, 0.0
    %v3038 = vmax.f32 %v2523, 0.0
    %v3039 = vmax.f32 %v2693, 0.0
    %v3040 = vmax.f32 %v2695, 0.0
    %v3041 = vmax.f32 %v2865, 0.0
    %v3042 = vmax.f32 %v2867, 0.0
    %v3043 = vmax.f32 %v3031, 0.0
    %v3044 = vmax.f32 %v2525, 0.0
    %v3045 = vmax.f32 %v2527, 0.0
    %v3046 = vmax.f32 %v2697, 0.0
    %v3047 = vmax.f32 %v2699, 0.0
    %v3048 = vmax.f32 %v2869, 0.0
    %v3049 = vmax.f32 %v2871, 0.0
    %v3050 = vmax.f32 %v3034, 0.0
    %v3051 = vpack.c.bf16 %v3044, %v3037
    %v3052 = vpack.c.bf16 %v3045, %v3038
    %v3053 = vpack.c.bf16 %v3046, %v3039
    %v3054 = vpack.c.bf16 %v3047, %v3040
    %v3055 = vpack.c.bf16 %v3048, %v3041
    %v3056 = vpack.c.bf16 %v3049, %v3042
    %v3057 = vpack.c.bf16 %v3050, %v3043
    %v3058 = vld [vmem:[#allocation8] sm:$0xff]
    %v3059 = vld [vmem:[#allocation8 + $0x8] sm:$0xff]
    %v3060 = vld [vmem:[#allocation8 + $0x10] sm:$0xff]
    %v3061 = vld [vmem:[#allocation8 + $0x18] sm:$0xf]
    %v3062 = vld [vmem:[#allocation8 + $0x1c] sm:$0xff]
    %v3063 = vld [vmem:[#allocation8 + $0x24] sm:$0xff]
    %v3064 = vld [vmem:[#allocation8 + $0x2c] sm:$0xff]
    %v3065 = vld [vmem:[#allocation8 + $0x34] sm:$0xf]
    %v3066 = vld [vmem:[#allocation8 + $0x38] sm:$0xff]
    %v3067 = vld [vmem:[#allocation8 + $0x40] sm:$0xff]
    %v3068 = vld [vmem:[#allocation8 + $0x48] sm:$0xff]
    %v3069 = vld [vmem:[#allocation8 + $0x50] sm:$0xf]
    %v3070 = vld [vmem:[#allocation8 + $0x54] sm:$0xff]
    %v3071 = vld [vmem:[#allocation8 + $0x5c] sm:$0xff]
    %v3072 = vld [vmem:[#allocation8 + $0x64] sm:$0xff]
    %v3073 = vld [vmem:[#allocation8 + $0x6c] sm:$0xf]
    %v3074 = vld [vmem:[#allocation8 + $0x70] sm:$0xff]
    %v3075 = vld [vmem:[#allocation8 + $0x78] sm:$0xff]
    %v3076 = vld [vmem:[#allocation8 + $0x80] sm:$0xff]
    %v3077 = vld [vmem:[#allocation8 + $0x88] sm:$0xf]
    %v3078 = vld [vmem:[#allocation8 + $0x8c] sm:$0xff]
    %v3079 = vld [vmem:[#allocation8 + $0x94] sm:$0xff]
    %v3080 = vld [vmem:[#allocation8 + $0x9c] sm:$0xff]
    %v3081 = vld [vmem:[#allocation8 + $0xa4] sm:$0xf]
    %v3082 = vld [vmem:[#allocation8 + $0xa8] sm:$0xff]
    %v3083 = vld [vmem:[#allocation8 + $0xb0] sm:$0xff]
    %v3084 = vld [vmem:[#allocation8 + $0xb8] sm:$0xff]
    %v3085 = vld [vmem:[#allocation8 + $0xc0] sm:$0xf]
    %v3086 = vld [vmem:[#allocation8 + $0xc4] sm:$0xff]
    %v3087 = vld [vmem:[#allocation8 + $0xcc] sm:$0xff]
    %v3088 = vld [vmem:[#allocation8 + $0xd4] sm:$0xff]
    %v3089 = vld [vmem:[#allocation8 + $0xdc] sm:$0xf]
    %v3090 = vld [vmem:[#allocation8 + $0xe0] sm:$0xff]
    %v3091 = vld [vmem:[#allocation8 + $0xe8] sm:$0xff]
    %v3092 = vld [vmem:[#allocation8 + $0xf0] sm:$0xff]
    %v3093 = vld [vmem:[#allocation8 + $0xf8] sm:$0xf]
    %v3094 = vld [vmem:[#allocation8 + $0xfc] sm:$0xff]
    %v3095 = vld [vmem:[#allocation8 + $0x104] sm:$0xff]
    %v3096 = vld [vmem:[#allocation8 + $0x10c] sm:$0xff]
    %v3097 = vld [vmem:[#allocation8 + $0x114] sm:$0xf]
    %v3098 = vld [vmem:[#allocation8 + $0x118] sm:$0xff]
    %v3099 = vld [vmem:[#allocation8 + $0x120] sm:$0xff]
    %v3100 = vld [vmem:[#allocation8 + $0x128] sm:$0xff]
    %v3101 = vld [vmem:[#allocation8 + $0x130] sm:$0xf]
    %v3102 = vld [vmem:[#allocation8 + $0x134] sm:$0xff]
    %v3103 = vld [vmem:[#allocation8 + $0x13c] sm:$0xff]
    %v3104 = vld [vmem:[#allocation8 + $0x144] sm:$0xff]
    %v3105 = vld [vmem:[#allocation8 + $0x14c] sm:$0xf]
    %v3106 = vld [vmem:[#allocation8 + $0x150] sm:$0xff]
    %v3107 = vld [vmem:[#allocation8 + $0x158] sm:$0xff]
    %v3108 = vld [vmem:[#allocation8 + $0x160] sm:$0xff]
    %v3109 = vld [vmem:[#allocation8 + $0x168] sm:$0xf]
    %v3110 = vld [vmem:[#allocation8 + $0x16c] sm:$0xff]
    %v3111 = vld [vmem:[#allocation8 + $0x174] sm:$0xff]
    %v3112 = vld [vmem:[#allocation8 + $0x17c] sm:$0xff]
    %v3113 = vld [vmem:[#allocation8 + $0x184] sm:$0xf]
    %v3114 = vld [vmem:[#allocation8 + $0x188] sm:$0xff]
    %v3115 = vld [vmem:[#allocation8 + $0x190] sm:$0xff]
    %v3116 = vld [vmem:[#allocation8 + $0x198] sm:$0xff]
    %v3117 = vld [vmem:[#allocation8 + $0x1a0] sm:$0xf]
    %v3118 = vld [vmem:[#allocation8 + $0x1a4] sm:$0xff]
    %v3119 = vld [vmem:[#allocation8 + $0x1ac] sm:$0xff]
    %v3120 = vld [vmem:[#allocation8 + $0x1b4] sm:$0xff]
    %v3121 = vld [vmem:[#allocation8 + $0x1bc] sm:$0xf]
    %v3122 = vld [vmem:[#allocation8 + $0x1c0] sm:$0xff]
    %v3123 = vld [vmem:[#allocation8 + $0x1c8] sm:$0xff]
    %v3124 = vld [vmem:[#allocation8 + $0x1d0] sm:$0xff]
    %v3125 = vld [vmem:[#allocation8 + $0x1d8] sm:$0xf]
    %v3126 = vld [vmem:[#allocation8 + $0x1dc] sm:$0xff]
    %v3127 = vld [vmem:[#allocation8 + $0x1e4] sm:$0xff]
    %v3128 = vld [vmem:[#allocation8 + $0x1ec] sm:$0xff]
    %v3129 = vld [vmem:[#allocation8 + $0x1f4] sm:$0xf]
    %v3130 = vld [vmem:[#allocation8 + $0x1f8] sm:$0xff]
    %v3131 = vld [vmem:[#allocation8 + $0x200] sm:$0xff]
    %v3132 = vld [vmem:[#allocation8 + $0x208] sm:$0xff]
    %v3133 = vld [vmem:[#allocation8 + $0x210] sm:$0xf]
    %v3134 = vld [vmem:[#allocation8 + $0x214] sm:$0xff]
    %v3135 = vld [vmem:[#allocation8 + $0x21c] sm:$0xff]
    %v3136 = vld [vmem:[#allocation8 + $0x224] sm:$0xff]
    %v3137 = vld [vmem:[#allocation8 + $0x22c] sm:$0xf]
    %v3138 = vld [vmem:[#allocation8 + $0x230] sm:$0xff]
    %v3139 = vld [vmem:[#allocation8 + $0x238] sm:$0xff]
    %v3140 = vld [vmem:[#allocation8 + $0x240] sm:$0xff]
    %v3141 = vld [vmem:[#allocation8 + $0x248] sm:$0xf]
    %v3142 = vld [vmem:[#allocation8 + $0x24c] sm:$0xff]
    %v3143 = vld [vmem:[#allocation8 + $0x254] sm:$0xff]
    %v3144 = vld [vmem:[#allocation8 + $0x25c] sm:$0xff]
    %v3145 = vld [vmem:[#allocation8 + $0x264] sm:$0xf]
    %v3146 = vld [vmem:[#allocation8 + $0x268] sm:$0xff]
    %v3147 = vld [vmem:[#allocation8 + $0x270] sm:$0xff]
    %v3148 = vld [vmem:[#allocation8 + $0x278] sm:$0xff]
    %v3149 = vld [vmem:[#allocation8 + $0x280] sm:$0xf]
    %v3150 = vld [vmem:[#allocation8 + $0x284] sm:$0xff]
    %v3151 = vld [vmem:[#allocation8 + $0x28c] sm:$0xff]
    %v3152 = vld [vmem:[#allocation8 + $0x294] sm:$0xff]
    %v3153 = vld [vmem:[#allocation8 + $0x29c] sm:$0xf]
    %v3154 = vld [vmem:[#allocation8 + $0x2a0] sm:$0xff]
    %v3155 = vld [vmem:[#allocation8 + $0x2a8] sm:$0xff]
    %v3156 = vld [vmem:[#allocation8 + $0x2b0] sm:$0xff]
    %v3157 = vld [vmem:[#allocation8 + $0x2b8] sm:$0xf]
    %v3158 = vld [vmem:[#allocation8 + $0x2bc] sm:$0xff]
    %v3159 = vld [vmem:[#allocation8 + $0x2c4] sm:$0xff]
    %v3160 = vld [vmem:[#allocation8 + $0x2cc] sm:$0xff]
    %v3161 = vld [vmem:[#allocation8 + $0x2d4] sm:$0xf]
    %v3162 = vld [vmem:[#allocation8 + $0x2d8] sm:$0xff]
    %v3163 = vld [vmem:[#allocation8 + $0x2e0] sm:$0xff]
    %v3164 = vld [vmem:[#allocation8 + $0x2e8] sm:$0xff]
    %v3165 = vld [vmem:[#allocation8 + $0x2f0] sm:$0xf]
    %v3166 = vld [vmem:[#allocation8 + $0x2f4] sm:$0xff]
    %v3167 = vld [vmem:[#allocation8 + $0x2fc] sm:$0xff]
    %v3168 = vld [vmem:[#allocation8 + $0x304] sm:$0xff]
    %v3169 = vld [vmem:[#allocation8 + $0x30c] sm:$0xf]
    %v3170 = vld [vmem:[#allocation8 + $0x310] sm:$0xff]
    %v3171 = vld [vmem:[#allocation8 + $0x318] sm:$0xff]
    %v3172 = vld [vmem:[#allocation8 + $0x320] sm:$0xff]
    %v3173 = vld [vmem:[#allocation8 + $0x328] sm:$0xf]
    %v3174 = vld [vmem:[#allocation8 + $0x32c] sm:$0xff]
    %v3175 = vld [vmem:[#allocation8 + $0x334] sm:$0xff]
    %v3176 = vld [vmem:[#allocation8 + $0x33c] sm:$0xff]
    %v3177 = vld [vmem:[#allocation8 + $0x344] sm:$0xf]
    %v3178 = vld [vmem:[#allocation8 + $0x348] sm:$0xff]
    %v3179 = vld [vmem:[#allocation8 + $0x350] sm:$0xff]
    %v3180 = vld [vmem:[#allocation8 + $0x358] sm:$0xff]
    %v3181 = vld [vmem:[#allocation8 + $0x360] sm:$0xf]
    %v3182 = vld [vmem:[#allocation8 + $0x364] sm:$0xff]
    %v3183 = vld [vmem:[#allocation8 + $0x36c] sm:$0xff]
    %v3184 = vld [vmem:[#allocation8 + $0x374] sm:$0xff]
    %v3185 = vld [vmem:[#allocation8 + $0x37c] sm:$0xf]
    %v3186 = vld [vmem:[#allocation8 + $0x380] sm:$0xff]
    %v3187 = vld [vmem:[#allocation8 + $0x388] sm:$0xff]
    %v3188 = vld [vmem:[#allocation8 + $0x390] sm:$0xff]
    %v3189 = vld [vmem:[#allocation8 + $0x398] sm:$0xf]
    %v3190 = vld [vmem:[#allocation8 + $0x39c] sm:$0xff]
    %v3191 = vld [vmem:[#allocation8 + $0x3a4] sm:$0xff]
    %v3192 = vld [vmem:[#allocation8 + $0x3ac] sm:$0xff]
    %v3193 = vld [vmem:[#allocation8 + $0x3b4] sm:$0xf]
    %v3194 = vld [vmem:[#allocation8 + $0x3b8] sm:$0xff]
    %v3195 = vld [vmem:[#allocation8 + $0x3c0] sm:$0xff]
    %v3196 = vld [vmem:[#allocation8 + $0x3c8] sm:$0xff]
    %v3197 = vld [vmem:[#allocation8 + $0x3d0] sm:$0xf]
    %v3198 = vld [vmem:[#allocation8 + $0x3d4] sm:$0xff]
    %v3199 = vld [vmem:[#allocation8 + $0x3dc] sm:$0xff]
    %v3200 = vld [vmem:[#allocation8 + $0x3e4] sm:$0xff]
    %v3201 = vld [vmem:[#allocation8 + $0x3ec] sm:$0xf]
    %v3202 = vld [vmem:[#allocation8 + $0x3f0] sm:$0xff]
    %v3203 = vld [vmem:[#allocation8 + $0x3f8] sm:$0xff]
    %v3204 = vld [vmem:[#allocation8 + $0x400] sm:$0xff]
    %v3205 = vld [vmem:[#allocation8 + $0x408] sm:$0xf]
    %v3206 = vld [vmem:[#allocation8 + $0x40c] sm:$0xff]
    %v3207 = vld [vmem:[#allocation8 + $0x414] sm:$0xff]
    %v3208 = vld [vmem:[#allocation8 + $0x41c] sm:$0xff]
    %v3209 = vld [vmem:[#allocation8 + $0x424] sm:$0xf]
    %v3210 = vld [vmem:[#allocation8 + $0x428] sm:$0xff]
    %v3211 = vld [vmem:[#allocation8 + $0x430] sm:$0xff]
    %v3212 = vld [vmem:[#allocation8 + $0x438] sm:$0xff]
    %v3213 = vld [vmem:[#allocation8 + $0x440] sm:$0xf]
    %v3214 = vld [vmem:[#allocation8 + $0x444] sm:$0xff]
    %v3215 = vld [vmem:[#allocation8 + $0x44c] sm:$0xff]
    %v3216 = vld [vmem:[#allocation8 + $0x454] sm:$0xff]
    %v3217 = vld [vmem:[#allocation8 + $0x45c] sm:$0xf]
    %v3218 = vld [vmem:[#allocation8 + $0x460] sm:$0xff]
    %v3219 = vld [vmem:[#allocation8 + $0x468] sm:$0xff]
    %v3220 = vld [vmem:[#allocation8 + $0x470] sm:$0xff]
    %v3221 = vld [vmem:[#allocation8 + $0x478] sm:$0xf]
    %v3222 = vld [vmem:[#allocation8 + $0x47c] sm:$0xff]
    %v3223 = vld [vmem:[#allocation8 + $0x484] sm:$0xff]
    %v3224 = vld [vmem:[#allocation8 + $0x48c] sm:$0xff]
    %v3225 = vld [vmem:[#allocation8 + $0x494] sm:$0xf]
    %v3226 = vld [vmem:[#allocation8 + $0x498] sm:$0xff]
    %v3227 = vld [vmem:[#allocation8 + $0x4a0] sm:$0xff]
    %v3228 = vld [vmem:[#allocation8 + $0x4a8] sm:$0xff]
    %v3229 = vld [vmem:[#allocation8 + $0x4b0] sm:$0xf]
    %v3230 = vld [vmem:[#allocation8 + $0x4b4] sm:$0xff]
    %v3231 = vld [vmem:[#allocation8 + $0x4bc] sm:$0xff]
    %v3232 = vld [vmem:[#allocation8 + $0x4c4] sm:$0xff]
    %v3233 = vld [vmem:[#allocation8 + $0x4cc] sm:$0xf]
    %v3234 = vld [vmem:[#allocation8 + $0x4d0] sm:$0xff]
    %v3235 = vld [vmem:[#allocation8 + $0x4d8] sm:$0xff]
    %v3236 = vld [vmem:[#allocation8 + $0x4e0] sm:$0xff]
    %v3237 = vld [vmem:[#allocation8 + $0x4e8] sm:$0xf]
    %v3238 = vld [vmem:[#allocation8 + $0x4ec] sm:$0xff]
    %v3239 = vld [vmem:[#allocation8 + $0x4f4] sm:$0xff]
    %v3240 = vld [vmem:[#allocation8 + $0x4fc] sm:$0xff]
    %v3241 = vld [vmem:[#allocation8 + $0x504] sm:$0xf]
    %v3242 = vld [vmem:[#allocation8 + $0x508] sm:$0xff]
    %v3243 = vld [vmem:[#allocation8 + $0x510] sm:$0xff]
    %v3244 = vld [vmem:[#allocation8 + $0x518] sm:$0xff]
    %v3245 = vld [vmem:[#allocation8 + $0x520] sm:$0xf]
    %v3246 = vld [vmem:[#allocation8 + $0x524] sm:$0xff]
    %v3247 = vld [vmem:[#allocation8 + $0x52c] sm:$0xff]
    %v3248 = vld [vmem:[#allocation8 + $0x534] sm:$0xff]
    %v3249 = vld [vmem:[#allocation8 + $0x53c] sm:$0xf]
    %v3250 = vld [vmem:[#allocation8 + $0x540] sm:$0xff]
    %v3251 = vld [vmem:[#allocation8 + $0x548] sm:$0xff]
    %v3252 = vld [vmem:[#allocation8 + $0x550] sm:$0xff]
    %v3253 = vld [vmem:[#allocation8 + $0x558] sm:$0xf]
    %v3254 = vld [vmem:[#allocation8 + $0x55c] sm:$0xff]
    %v3255 = vld [vmem:[#allocation8 + $0x564] sm:$0xff]
    %v3256 = vld [vmem:[#allocation8 + $0x56c] sm:$0xff]
    %v3257 = vld [vmem:[#allocation8 + $0x574] sm:$0xf]
    %v3258 = vld [vmem:[#allocation8 + $0x578] sm:$0xff]
    %v3259 = vld [vmem:[#allocation8 + $0x580] sm:$0xff]
    %v3260 = vld [vmem:[#allocation8 + $0x588] sm:$0xff]
    %v3261 = vld [vmem:[#allocation8 + $0x590] sm:$0xf]
    %v3262 = vld [vmem:[#allocation8 + $0x594] sm:$0xff]
    %v3263 = vld [vmem:[#allocation8 + $0x59c] sm:$0xff]
    %v3264 = vld [vmem:[#allocation8 + $0x5a4] sm:$0xff]
    %v3265 = vld [vmem:[#allocation8 + $0x5ac] sm:$0xf]
    %v3266 = vld [vmem:[#allocation8 + $0x5b0] sm:$0xff]
    %v3267 = vld [vmem:[#allocation8 + $0x5b8] sm:$0xff]
    %v3268 = vld [vmem:[#allocation8 + $0x5c0] sm:$0xff]
    %v3269 = vld [vmem:[#allocation8 + $0x5c8] sm:$0xf]
    %v3270 = vld [vmem:[#allocation8 + $0x5cc] sm:$0xff]
    %v3271 = vld [vmem:[#allocation8 + $0x5d4] sm:$0xff]
    %v3272 = vld [vmem:[#allocation8 + $0x5dc] sm:$0xff]
    %v3273 = vld [vmem:[#allocation8 + $0x5e4] sm:$0xf]
    %v3274 = vld [vmem:[#allocation8 + $0x5e8] sm:$0xff]
    %v3275 = vld [vmem:[#allocation8 + $0x5f0] sm:$0xff]
    %v3276 = vld [vmem:[#allocation8 + $0x5f8] sm:$0xff]
    %v3277 = vld [vmem:[#allocation8 + $0x600] sm:$0xf]
    %v3278 = vld [vmem:[#allocation8 + $0x604] sm:$0xff]
    %v3279 = vld [vmem:[#allocation8 + $0x60c] sm:$0xff]
    %v3280 = vld [vmem:[#allocation8 + $0x614] sm:$0xff]
    %v3281 = vld [vmem:[#allocation8 + $0x61c] sm:$0xf]
    %v3282 = vld [vmem:[#allocation8 + $0x620] sm:$0xff]
    %v3283 = vld [vmem:[#allocation8 + $0x628] sm:$0xff]
    %v3284 = vld [vmem:[#allocation8 + $0x630] sm:$0xff]
    %v3285 = vld [vmem:[#allocation8 + $0x638] sm:$0xf]
    %v3286 = vld [vmem:[#allocation8 + $0x63c] sm:$0xff]
    %v3287 = vld [vmem:[#allocation8 + $0x644] sm:$0xff]
    %v3288 = vld [vmem:[#allocation8 + $0x64c] sm:$0xff]
    %v3289 = vld [vmem:[#allocation8 + $0x654] sm:$0xf]
    %v3290 = vld [vmem:[#allocation8 + $0x658] sm:$0xff]
    %v3291 = vld [vmem:[#allocation8 + $0x660] sm:$0xff]
    %v3292 = vld [vmem:[#allocation8 + $0x668] sm:$0xff]
    %v3293 = vld [vmem:[#allocation8 + $0x670] sm:$0xf]
    %v3294 = vld [vmem:[#allocation8 + $0x674] sm:$0xff]
    %v3295 = vld [vmem:[#allocation8 + $0x67c] sm:$0xff]
    %v3296 = vld [vmem:[#allocation8 + $0x684] sm:$0xff]
    %v3297 = vld [vmem:[#allocation8 + $0x68c] sm:$0xf]
    %v3298 = vld [vmem:[#allocation8 + $0x690] sm:$0xff]
    %v3299 = vld [vmem:[#allocation8 + $0x698] sm:$0xff]
    %v3300 = vld [vmem:[#allocation8 + $0x6a0] sm:$0xff]
    %v3301 = vld [vmem:[#allocation8 + $0x6a8] sm:$0xf]
    %v3302 = vld [vmem:[#allocation8 + $0x6ac] sm:$0xff]
    %v3303 = vld [vmem:[#allocation8 + $0x6b4] sm:$0xff]
    %v3304 = vld [vmem:[#allocation8 + $0x6bc] sm:$0xff]
    %v3305 = vld [vmem:[#allocation8 + $0x6c4] sm:$0xf]
    %v3306 = vld [vmem:[#allocation8 + $0x6c8] sm:$0xff]
    %v3307 = vld [vmem:[#allocation8 + $0x6d0] sm:$0xff]
    %v3308 = vld [vmem:[#allocation8 + $0x6d8] sm:$0xff]
    %v3309 = vld [vmem:[#allocation8 + $0x6e0] sm:$0xf]
    %v3310 = vld [vmem:[#allocation8 + $0x6e4] sm:$0xff]
    %v3311 = vld [vmem:[#allocation8 + $0x6ec] sm:$0xff]
    %v3312 = vld [vmem:[#allocation8 + $0x6f4] sm:$0xff]
    %v3313 = vld [vmem:[#allocation8 + $0x6fc] sm:$0xf]
    %v3314 = vld [vmem:[#allocation8 + $0x700] sm:$0xff]
    %v3315 = vld [vmem:[#allocation8 + $0x708] sm:$0xff]
    %v3316 = vld [vmem:[#allocation8 + $0x710] sm:$0xff]
    %v3317 = vld [vmem:[#allocation8 + $0x718] sm:$0xf]
    %v3318 = vld [vmem:[#allocation8 + $0x71c] sm:$0xff]
    %v3319 = vld [vmem:[#allocation8 + $0x724] sm:$0xff]
    %v3320 = vld [vmem:[#allocation8 + $0x72c] sm:$0xff]
    %v3321 = vld [vmem:[#allocation8 + $0x734] sm:$0xf]
    %v3322 = vld [vmem:[#allocation8 + $0x738] sm:$0xff]
    %v3323 = vld [vmem:[#allocation8 + $0x740] sm:$0xff]
    %v3324 = vld [vmem:[#allocation8 + $0x748] sm:$0xff]
    %v3325 = vld [vmem:[#allocation8 + $0x750] sm:$0xf]
    %v3326 = vld [vmem:[#allocation8 + $0x754] sm:$0xff]
    %v3327 = vld [vmem:[#allocation8 + $0x75c] sm:$0xff]
    %v3328 = vld [vmem:[#allocation8 + $0x764] sm:$0xff]
    %v3329 = vld [vmem:[#allocation8 + $0x76c] sm:$0xf]
    %v3330 = vld [vmem:[#allocation8 + $0x770] sm:$0xff]
    %v3331 = vld [vmem:[#allocation8 + $0x778] sm:$0xff]
    %v3332 = vld [vmem:[#allocation8 + $0x780] sm:$0xff]
    %v3333 = vld [vmem:[#allocation8 + $0x788] sm:$0xf]
    %v3334 = vld [vmem:[#allocation8 + $0x78c] sm:$0xff]
    %v3335 = vld [vmem:[#allocation8 + $0x794] sm:$0xff]
    %v3336 = vld [vmem:[#allocation8 + $0x79c] sm:$0xff]
    %v3337 = vld [vmem:[#allocation8 + $0x7a4] sm:$0xf]
    %v3338 = vld [vmem:[#allocation8 + $0x7a8] sm:$0xff]
    %v3339 = vld [vmem:[#allocation8 + $0x7b0] sm:$0xff]
    %v3340 = vld [vmem:[#allocation8 + $0x7b8] sm:$0xff]
    %v3341 = vld [vmem:[#allocation8 + $0x7c0] sm:$0xf]
    %v3342 = vld [vmem:[#allocation8 + $0x7c4] sm:$0xff]
    %v3343 = vld [vmem:[#allocation8 + $0x7cc] sm:$0xff]
    %v3344 = vld [vmem:[#allocation8 + $0x7d4] sm:$0xff]
    %v3345 = vld [vmem:[#allocation8 + $0x7dc] sm:$0xf]
    %v3346 = vld [vmem:[#allocation8 + $0x7e0] sm:$0xff]
    %v3347 = vld [vmem:[#allocation8 + $0x7e8] sm:$0xff]
    %v3348 = vld [vmem:[#allocation8 + $0x7f0] sm:$0xff]
    %v3349 = vld [vmem:[#allocation8 + $0x7f8] sm:$0xf]
    %v3350 = vld [vmem:[#allocation8 + $0x7fc] sm:$0xff]
    %v3351 = vld [vmem:[#allocation8 + $0x804] sm:$0xff]
    %v3352 = vld [vmem:[#allocation8 + $0x80c] sm:$0xff]
    %v3353 = vld [vmem:[#allocation8 + $0x814] sm:$0xf]
    %v3354 = vld [vmem:[#allocation8 + $0x818] sm:$0xff]
    %v3355 = vld [vmem:[#allocation8 + $0x820] sm:$0xff]
    %v3356 = vld [vmem:[#allocation8 + $0x828] sm:$0xff]
    %v3357 = vld [vmem:[#allocation8 + $0x830] sm:$0xf]
    %v3358 = vld [vmem:[#allocation8 + $0x834] sm:$0xff]
    %v3359 = vld [vmem:[#allocation8 + $0x83c] sm:$0xff]
    %v3360 = vld [vmem:[#allocation8 + $0x844] sm:$0xff]
    %v3361 = vld [vmem:[#allocation8 + $0x84c] sm:$0xf]
    %v3362 = vld [vmem:[#allocation8 + $0x850] sm:$0xff]
    %v3363 = vld [vmem:[#allocation8 + $0x858] sm:$0xff]
    %v3364 = vld [vmem:[#allocation8 + $0x860] sm:$0xff]
    %v3365 = vld [vmem:[#allocation8 + $0x868] sm:$0xf]
    %v3366 = vld [vmem:[#allocation8 + $0x86c] sm:$0xff]
    %v3367 = vld [vmem:[#allocation8 + $0x874] sm:$0xff]
    %v3368 = vld [vmem:[#allocation8 + $0x87c] sm:$0xff]
    %v3369 = vld [vmem:[#allocation8 + $0x884] sm:$0xf]
    %v3370 = vld [vmem:[#allocation8 + $0x888] sm:$0xff]
    %v3371 = vld [vmem:[#allocation8 + $0x890] sm:$0xff]
    %v3372 = vld [vmem:[#allocation8 + $0x898] sm:$0xff]
    %v3373 = vld [vmem:[#allocation8 + $0x8a0] sm:$0xf]
    %v3374 = vld [vmem:[#allocation8 + $0x8a4] sm:$0xff]
    %v3375 = vld [vmem:[#allocation8 + $0x8ac] sm:$0xff]
    %v3376 = vld [vmem:[#allocation8 + $0x8b4] sm:$0xff]
    %v3377 = vld [vmem:[#allocation8 + $0x8bc] sm:$0xf]
    %v3378 = vld [vmem:[#allocation8 + $0x8c0] sm:$0xff]
    %v3379 = vld [vmem:[#allocation8 + $0x8c8] sm:$0xff]
    %v3380 = vld [vmem:[#allocation8 + $0x8d0] sm:$0xff]
    %v3381 = vld [vmem:[#allocation8 + $0x8d8] sm:$0xf]
    %v3382 = vld [vmem:[#allocation8 + $0x8dc] sm:$0xff]
    %v3383 = vld [vmem:[#allocation8 + $0x8e4] sm:$0xff]
    %v3384 = vld [vmem:[#allocation8 + $0x8ec] sm:$0xff]
    %v3385 = vld [vmem:[#allocation8 + $0x8f4] sm:$0xf]
    %v3386 = vld [vmem:[#allocation8 + $0x8f8] sm:$0xff]
    %v3387 = vld [vmem:[#allocation8 + $0x900] sm:$0xff]
    %v3388 = vld [vmem:[#allocation8 + $0x908] sm:$0xff]
    %v3389 = vld [vmem:[#allocation8 + $0x910] sm:$0xf]
    %v3390 = vld [vmem:[#allocation8 + $0x914] sm:$0xff]
    %v3391 = vld [vmem:[#allocation8 + $0x91c] sm:$0xff]
    %v3392 = vld [vmem:[#allocation8 + $0x924] sm:$0xff]
    %v3393 = vld [vmem:[#allocation8 + $0x92c] sm:$0xf]
    %v3394 = vld [vmem:[#allocation8 + $0x930] sm:$0xff]
    %v3395 = vld [vmem:[#allocation8 + $0x938] sm:$0xff]
    %v3396 = vld [vmem:[#allocation8 + $0x940] sm:$0xff]
    %v3397 = vld [vmem:[#allocation8 + $0x948] sm:$0xf]
    %v3398 = vld [vmem:[#allocation8 + $0x94c] sm:$0xff]
    %v3399 = vld [vmem:[#allocation8 + $0x954] sm:$0xff]
    %v3400 = vld [vmem:[#allocation8 + $0x95c] sm:$0xff]
    %v3401 = vld [vmem:[#allocation8 + $0x964] sm:$0xf]
    %v3402 = vld [vmem:[#allocation8 + $0x968] sm:$0xff]
    %v3403 = vld [vmem:[#allocation8 + $0x970] sm:$0xff]
    %v3404 = vld [vmem:[#allocation8 + $0x978] sm:$0xff]
    %v3405 = vld [vmem:[#allocation8 + $0x980] sm:$0xf]
    %v3406 = vld [vmem:[#allocation8 + $0x984] sm:$0xff]
    %v3407 = vld [vmem:[#allocation8 + $0x98c] sm:$0xff]
    %v3408 = vld [vmem:[#allocation8 + $0x994] sm:$0xff]
    %v3409 = vld [vmem:[#allocation8 + $0x99c] sm:$0xf]
    %v3410 = vld [vmem:[#allocation8 + $0x9a0] sm:$0xff]
    %v3411 = vld [vmem:[#allocation8 + $0x9a8] sm:$0xff]
    %v3412 = vld [vmem:[#allocation8 + $0x9b0] sm:$0xff]
    %v3413 = vld [vmem:[#allocation8 + $0x9b8] sm:$0xf]
    %v3414 = vld [vmem:[#allocation8 + $0x9bc] sm:$0xff]
    %v3415 = vld [vmem:[#allocation8 + $0x9c4] sm:$0xff]
    %v3416 = vld [vmem:[#allocation8 + $0x9cc] sm:$0xff]
    %v3417 = vld [vmem:[#allocation8 + $0x9d4] sm:$0xf]
    %v3418 = vld [vmem:[#allocation8 + $0x9d8] sm:$0xff]
    %v3419 = vld [vmem:[#allocation8 + $0x9e0] sm:$0xff]
    %v3420 = vld [vmem:[#allocation8 + $0x9e8] sm:$0xff]
    %v3421 = vld [vmem:[#allocation8 + $0x9f0] sm:$0xf]
    %v3422 = vld [vmem:[#allocation8 + $0x9f4] sm:$0xff]
    %v3423 = vld [vmem:[#allocation8 + $0x9fc] sm:$0xff]
    %v3424 = vld [vmem:[#allocation8 + $0xa04] sm:$0xff]
    %v3425 = vld [vmem:[#allocation8 + $0xa0c] sm:$0xf]
    %v3426 = vld [vmem:[#allocation8 + $0xa10] sm:$0xff]
    %v3427 = vld [vmem:[#allocation8 + $0xa18] sm:$0xff]
    %v3428 = vld [vmem:[#allocation8 + $0xa20] sm:$0xff]
    %v3429 = vld [vmem:[#allocation8 + $0xa28] sm:$0xf]
    %v3430 = vld [vmem:[#allocation8 + $0xa2c] sm:$0xff]
    %v3431 = vld [vmem:[#allocation8 + $0xa34] sm:$0xff]
    %v3432 = vld [vmem:[#allocation8 + $0xa3c] sm:$0xff]
    %v3433 = vld [vmem:[#allocation8 + $0xa44] sm:$0xf]
    %v3434 = vld [vmem:[#allocation8 + $0xa48] sm:$0xff]
    %v3435 = vld [vmem:[#allocation8 + $0xa50] sm:$0xff]
    %v3436 = vld [vmem:[#allocation8 + $0xa58] sm:$0xff]
    %v3437 = vld [vmem:[#allocation8 + $0xa60] sm:$0xf]
    %v3438 = vld [vmem:[#allocation8 + $0xa64] sm:$0xff]
    %v3439 = vld [vmem:[#allocation8 + $0xa6c] sm:$0xff]
    %v3440 = vld [vmem:[#allocation8 + $0xa74] sm:$0xff]
    %v3441 = vld [vmem:[#allocation8 + $0xa7c] sm:$0xf]
    %v3442 = vld [vmem:[#allocation8 + $0xa80] sm:$0xff]
    %v3443 = vld [vmem:[#allocation8 + $0xa88] sm:$0xff]
    %v3444 = vld [vmem:[#allocation8 + $0xa90] sm:$0xff]
    %v3445 = vld [vmem:[#allocation8 + $0xa98] sm:$0xf]
    %v3446 = vld [vmem:[#allocation8 + $0xa9c] sm:$0xff]
    %v3447 = vld [vmem:[#allocation8 + $0xaa4] sm:$0xff]
    %v3448 = vld [vmem:[#allocation8 + $0xaac] sm:$0xff]
    %v3449 = vld [vmem:[#allocation8 + $0xab4] sm:$0xf]
    %v3450 = vld [vmem:[#allocation8 + $0xab8] sm:$0xff]
    %v3451 = vld [vmem:[#allocation8 + $0xac0] sm:$0xff]
    %v3452 = vld [vmem:[#allocation8 + $0xac8] sm:$0xff]
    %v3453 = vld [vmem:[#allocation8 + $0xad0] sm:$0xf]
    %v3454 = vld [vmem:[#allocation8 + $0xad4] sm:$0xff]
    %v3455 = vld [vmem:[#allocation8 + $0xadc] sm:$0xff]
    %v3456 = vld [vmem:[#allocation8 + $0xae4] sm:$0xff]
    %v3457 = vld [vmem:[#allocation8 + $0xaec] sm:$0xf]
    %v3458 = vld [vmem:[#allocation10] sm:$0x7f]
    %v3460 = vlaneseq
    %v3461 = vshrl.u32 %v3460, 7
    %v3462 = vsub.s32 0, %v3461
    %v3463 = vrot.slane %v3458, %v3462
    %v3464 = vlaneseq
    %v3465 = vshrl.u32 %v3464, 7
    %v3466 = vsub.s32 1, %v3465
    %v3467 = vrot.slane %v3458, %v3466
    %v3468 = vlaneseq
    %v3469 = vshrl.u32 %v3468, 7
    %v3470 = vsub.s32 2, %v3469
    %v3471 = vrot.slane %v3458, %v3470
    %v3472 = vlaneseq
    %v3473 = vshrl.u32 %v3472, 7
    %v3474 = vsub.s32 3, %v3473
    %v3475 = vrot.slane %v3458, %v3474
    %v3476 = vlaneseq
    %v3477 = vshrl.u32 %v3476, 7
    %v3478 = vsub.s32 4, %v3477
    %v3479 = vrot.slane %v3458, %v3478
    %v3480 = vlaneseq
    %v3481 = vshrl.u32 %v3480, 7
    %v3482 = vsub.s32 5, %v3481
    %v3483 = vrot.slane %v3458, %v3482
    %v3484 = vlaneseq
    %v3485 = vshrl.u32 %v3484, 7
    %v3486 = vsub.s32 6, %v3485
    %v3487 = vrot.slane %v3458, %v3486
    %v3895 = vunpack.c.l.b16 %v3058
    %v3896 = vunpack.c.h.b16 %v3058
    %v3897 = vunpack.c.l.b16 %v3059
    %v3898 = vunpack.c.h.b16 %v3059
    %v3899 = vunpack.c.l.b16 %v3060
    %v3900 = vunpack.c.h.b16 %v3060
    %v3901 = vunpack.c.l.b16 %v3061
    %v3902 = vunpack.c.l.b16 %v3062
    %v3903 = vunpack.c.h.b16 %v3062
    %v3904 = vunpack.c.l.b16 %v3063
    %v3905 = vunpack.c.h.b16 %v3063
    %v3906 = vunpack.c.l.b16 %v3064
    %v3907 = vunpack.c.h.b16 %v3064
    %v3908 = vunpack.c.l.b16 %v3065
    %v3909 = vunpack.c.l.b16 %v3066
    %v3910 = vunpack.c.h.b16 %v3066
    %v3911 = vunpack.c.l.b16 %v3067
    %v3912 = vunpack.c.h.b16 %v3067
    %v3913 = vunpack.c.l.b16 %v3068
    %v3914 = vunpack.c.h.b16 %v3068
    %v3915 = vunpack.c.l.b16 %v3069
    %v3916 = vunpack.c.l.b16 %v3070
    %v3917 = vunpack.c.h.b16 %v3070
    %v3918 = vunpack.c.l.b16 %v3071
    %v3919 = vunpack.c.h.b16 %v3071
    %v3920 = vunpack.c.l.b16 %v3072
    %v3921 = vunpack.c.h.b16 %v3072
    %v3922 = vunpack.c.l.b16 %v3073
    %v3923 = vunpack.c.l.b16 %v3074
    %v3924 = vunpack.c.h.b16 %v3074
    %v3925 = vunpack.c.l.b16 %v3075
    %v3926 = vunpack.c.h.b16 %v3075
    %v3927 = vunpack.c.l.b16 %v3076
    %v3928 = vunpack.c.h.b16 %v3076
    %v3929 = vunpack.c.l.b16 %v3077
    %v3930 = vunpack.c.l.b16 %v3078
    %v3931 = vunpack.c.h.b16 %v3078
    %v3932 = vunpack.c.l.b16 %v3079
    %v3933 = vunpack.c.h.b16 %v3079
    %v3934 = vunpack.c.l.b16 %v3080
    %v3935 = vunpack.c.h.b16 %v3080
    %v3936 = vunpack.c.l.b16 %v3081
    %v3937 = vunpack.c.l.b16 %v3082
    %v3938 = vunpack.c.h.b16 %v3082
    %v3939 = vunpack.c.l.b16 %v3083
    %v3940 = vunpack.c.h.b16 %v3083
    %v3941 = vunpack.c.l.b16 %v3084
    %v3942 = vunpack.c.h.b16 %v3084
    %v3943 = vunpack.c.l.b16 %v3085
    %v3944 = vunpack.c.l.b16 %v3086
    %v3945 = vunpack.c.h.b16 %v3086
    %v3946 = vunpack.c.l.b16 %v3087
    %v3947 = vunpack.c.h.b16 %v3087
    %v3948 = vunpack.c.l.b16 %v3088
    %v3949 = vunpack.c.h.b16 %v3088
    %v3950 = vunpack.c.l.b16 %v3089
    %v3951 = vunpack.c.l.b16 %v3090
    %v3952 = vunpack.c.h.b16 %v3090
    %v3953 = vunpack.c.l.b16 %v3091
    %v3954 = vunpack.c.h.b16 %v3091
    %v3955 = vunpack.c.l.b16 %v3092
    %v3956 = vunpack.c.h.b16 %v3092
    %v3957 = vunpack.c.l.b16 %v3093
    %v3958 = vunpack.c.l.b16 %v3094
    %v3959 = vunpack.c.h.b16 %v3094
    %v3960 = vunpack.c.l.b16 %v3095
    %v3961 = vunpack.c.h.b16 %v3095
    %v3962 = vunpack.c.l.b16 %v3096
    %v3963 = vunpack.c.h.b16 %v3096
    %v3964 = vunpack.c.l.b16 %v3097
    %v3965 = vunpack.c.l.b16 %v3098
    %v3966 = vunpack.c.h.b16 %v3098
    %v3967 = vunpack.c.l.b16 %v3099
    %v3968 = vunpack.c.h.b16 %v3099
    %v3969 = vunpack.c.l.b16 %v3100
    %v3970 = vunpack.c.h.b16 %v3100
    %v3971 = vunpack.c.l.b16 %v3101
    %v3972 = vunpack.c.l.b16 %v3102
    %v3973 = vunpack.c.h.b16 %v3102
    %v3974 = vunpack.c.l.b16 %v3103
    %v3975 = vunpack.c.h.b16 %v3103
    %v3976 = vunpack.c.l.b16 %v3104
    %v3977 = vunpack.c.h.b16 %v3104
    %v3978 = vunpack.c.l.b16 %v3105
    %v3979 = vunpack.c.l.b16 %v3106
    %v3980 = vunpack.c.h.b16 %v3106
    %v3981 = vunpack.c.l.b16 %v3107
    %v3982 = vunpack.c.h.b16 %v3107
    %v3983 = vunpack.c.l.b16 %v3108
    %v3984 = vunpack.c.h.b16 %v3108
    %v3985 = vunpack.c.l.b16 %v3109
    %v3986 = vunpack.c.l.b16 %v3110
    %v3987 = vunpack.c.h.b16 %v3110
    %v3988 = vunpack.c.l.b16 %v3111
    %v3989 = vunpack.c.h.b16 %v3111
    %v3990 = vunpack.c.l.b16 %v3112
    %v3991 = vunpack.c.h.b16 %v3112
    %v3992 = vunpack.c.l.b16 %v3113
    %v3993 = vunpack.c.l.b16 %v3114
    %v3994 = vunpack.c.h.b16 %v3114
    %v3995 = vunpack.c.l.b16 %v3115
    %v3996 = vunpack.c.h.b16 %v3115
    %v3997 = vunpack.c.l.b16 %v3116
    %v3998 = vunpack.c.h.b16 %v3116
    %v3999 = vunpack.c.l.b16 %v3117
    %v4000 = vunpack.c.l.b16 %v3118
    %v4001 = vunpack.c.h.b16 %v3118
    %v4002 = vunpack.c.l.b16 %v3119
    %v4003 = vunpack.c.h.b16 %v3119
    %v4004 = vunpack.c.l.b16 %v3120
    %v4005 = vunpack.c.h.b16 %v3120
    %v4006 = vunpack.c.l.b16 %v3121
    %v4007 = vunpack.c.l.b16 %v3122
    %v4008 = vunpack.c.h.b16 %v3122
    %v4009 = vunpack.c.l.b16 %v3123
    %v4010 = vunpack.c.h.b16 %v3123
    %v4011 = vunpack.c.l.b16 %v3124
    %v4012 = vunpack.c.h.b16 %v3124
    %v4013 = vunpack.c.l.b16 %v3125
    %v4014 = vunpack.c.l.b16 %v3126
    %v4015 = vunpack.c.h.b16 %v3126
    %v4016 = vunpack.c.l.b16 %v3127
    %v4017 = vunpack.c.h.b16 %v3127
    %v4018 = vunpack.c.l.b16 %v3128
    %v4019 = vunpack.c.h.b16 %v3128
    %v4020 = vunpack.c.l.b16 %v3129
    %v4021 = vunpack.c.l.b16 %v3130
    %v4022 = vunpack.c.h.b16 %v3130
    %v4023 = vunpack.c.l.b16 %v3131
    %v4024 = vunpack.c.h.b16 %v3131
    %v4025 = vunpack.c.l.b16 %v3132
    %v4026 = vunpack.c.h.b16 %v3132
    %v4027 = vunpack.c.l.b16 %v3133
    %v4028 = vunpack.c.l.b16 %v3134
    %v4029 = vunpack.c.h.b16 %v3134
    %v4030 = vunpack.c.l.b16 %v3135
    %v4031 = vunpack.c.h.b16 %v3135
    %v4032 = vunpack.c.l.b16 %v3136
    %v4033 = vunpack.c.h.b16 %v3136
    %v4034 = vunpack.c.l.b16 %v3137
    %v4035 = vunpack.c.l.b16 %v3138
    %v4036 = vunpack.c.h.b16 %v3138
    %v4037 = vunpack.c.l.b16 %v3139
    %v4038 = vunpack.c.h.b16 %v3139
    %v4039 = vunpack.c.l.b16 %v3140
    %v4040 = vunpack.c.h.b16 %v3140
    %v4041 = vunpack.c.l.b16 %v3141
    %v4042 = vunpack.c.l.b16 %v3142
    %v4043 = vunpack.c.h.b16 %v3142
    %v4044 = vunpack.c.l.b16 %v3143
    %v4045 = vunpack.c.h.b16 %v3143
    %v4046 = vunpack.c.l.b16 %v3144
    %v4047 = vunpack.c.h.b16 %v3144
    %v4048 = vunpack.c.l.b16 %v3145
    %v4049 = vunpack.c.l.b16 %v3146
    %v4050 = vunpack.c.h.b16 %v3146
    %v4051 = vunpack.c.l.b16 %v3147
    %v4052 = vunpack.c.h.b16 %v3147
    %v4053 = vunpack.c.l.b16 %v3148
    %v4054 = vunpack.c.h.b16 %v3148
    %v4055 = vunpack.c.l.b16 %v3149
    %v4056 = vunpack.c.l.b16 %v3150
    %v4057 = vunpack.c.h.b16 %v3150
    %v4058 = vunpack.c.l.b16 %v3151
    %v4059 = vunpack.c.h.b16 %v3151
    %v4060 = vunpack.c.l.b16 %v3152
    %v4061 = vunpack.c.h.b16 %v3152
    %v4062 = vunpack.c.l.b16 %v3153
    %v4063 = vunpack.c.l.b16 %v3154
    %v4064 = vunpack.c.h.b16 %v3154
    %v4065 = vunpack.c.l.b16 %v3155
    %v4066 = vunpack.c.h.b16 %v3155
    %v4067 = vunpack.c.l.b16 %v3156
    %v4068 = vunpack.c.h.b16 %v3156
    %v4069 = vunpack.c.l.b16 %v3157
    %v4070 = vunpack.c.l.b16 %v3158
    %v4071 = vunpack.c.h.b16 %v3158
    %v4072 = vunpack.c.l.b16 %v3159
    %v4073 = vunpack.c.h.b16 %v3159
    %v4074 = vunpack.c.l.b16 %v3160
    %v4075 = vunpack.c.h.b16 %v3160
    %v4076 = vunpack.c.l.b16 %v3161
    %v4077 = vunpack.c.l.b16 %v3162
    %v4078 = vunpack.c.h.b16 %v3162
    %v4079 = vunpack.c.l.b16 %v3163
    %v4080 = vunpack.c.h.b16 %v3163
    %v4081 = vunpack.c.l.b16 %v3164
    %v4082 = vunpack.c.h.b16 %v3164
    %v4083 = vunpack.c.l.b16 %v3165
    %v4084 = vunpack.c.l.b16 %v3166
    %v4085 = vunpack.c.h.b16 %v3166
    %v4086 = vunpack.c.l.b16 %v3167
    %v4087 = vunpack.c.h.b16 %v3167
    %v4088 = vunpack.c.l.b16 %v3168
    %v4089 = vunpack.c.h.b16 %v3168
    %v4090 = vunpack.c.l.b16 %v3169
    %v4091 = vunpack.c.l.b16 %v3170
    %v4092 = vunpack.c.h.b16 %v3170
    %v4093 = vunpack.c.l.b16 %v3171
    %v4094 = vunpack.c.h.b16 %v3171
    %v4095 = vunpack.c.l.b16 %v3172
    %v4096 = vunpack.c.h.b16 %v3172
    %v4097 = vunpack.c.l.b16 %v3173
    %v4098 = vunpack.c.l.b16 %v3174
    %v4099 = vunpack.c.h.b16 %v3174
    %v4100 = vunpack.c.l.b16 %v3175
    %v4101 = vunpack.c.h.b16 %v3175
    %v4102 = vunpack.c.l.b16 %v3176
    %v4103 = vunpack.c.h.b16 %v3176
    %v4104 = vunpack.c.l.b16 %v3177
    %v4105 = vunpack.c.l.b16 %v3178
    %v4106 = vunpack.c.h.b16 %v3178
    %v4107 = vunpack.c.l.b16 %v3179
    %v4108 = vunpack.c.h.b16 %v3179
    %v4109 = vunpack.c.l.b16 %v3180
    %v4110 = vunpack.c.h.b16 %v3180
    %v4111 = vunpack.c.l.b16 %v3181
    %v4112 = vunpack.c.l.b16 %v3182
    %v4113 = vunpack.c.h.b16 %v3182
    %v4114 = vunpack.c.l.b16 %v3183
    %v4115 = vunpack.c.h.b16 %v3183
    %v4116 = vunpack.c.l.b16 %v3184
    %v4117 = vunpack.c.h.b16 %v3184
    %v4118 = vunpack.c.l.b16 %v3185
    %v4119 = vunpack.c.l.b16 %v3186
    %v4120 = vunpack.c.h.b16 %v3186
    %v4121 = vunpack.c.l.b16 %v3187
    %v4122 = vunpack.c.h.b16 %v3187
    %v4123 = vunpack.c.l.b16 %v3188
    %v4124 = vunpack.c.h.b16 %v3188
    %v4125 = vunpack.c.l.b16 %v3189
    %v4126 = vunpack.c.l.b16 %v3190
    %v4127 = vunpack.c.h.b16 %v3190
    %v4128 = vunpack.c.l.b16 %v3191
    %v4129 = vunpack.c.h.b16 %v3191
    %v4130 = vunpack.c.l.b16 %v3192
    %v4131 = vunpack.c.h.b16 %v3192
    %v4132 = vunpack.c.l.b16 %v3193
    %v4133 = vunpack.c.l.b16 %v3194
    %v4134 = vunpack.c.h.b16 %v3194
    %v4135 = vunpack.c.l.b16 %v3195
    %v4136 = vunpack.c.h.b16 %v3195
    %v4137 = vunpack.c.l.b16 %v3196
    %v4138 = vunpack.c.h.b16 %v3196
    %v4139 = vunpack.c.l.b16 %v3197
    %v4140 = vunpack.c.l.b16 %v3198
    %v4141 = vunpack.c.h.b16 %v3198
    %v4142 = vunpack.c.l.b16 %v3199
    %v4143 = vunpack.c.h.b16 %v3199
    %v4144 = vunpack.c.l.b16 %v3200
    %v4145 = vunpack.c.h.b16 %v3200
    %v4146 = vunpack.c.l.b16 %v3201
    %v4147 = vunpack.c.l.b16 %v3202
    %v4148 = vunpack.c.h.b16 %v3202
    %v4149 = vunpack.c.l.b16 %v3203
    %v4150 = vunpack.c.h.b16 %v3203
    %v4151 = vunpack.c.l.b16 %v3204
    %v4152 = vunpack.c.h.b16 %v3204
    %v4153 = vunpack.c.l.b16 %v3205
    %v4154 = vunpack.c.l.b16 %v3206
    %v4155 = vunpack.c.h.b16 %v3206
    %v4156 = vunpack.c.l.b16 %v3207
    %v4157 = vunpack.c.h.b16 %v3207
    %v4158 = vunpack.c.l.b16 %v3208
    %v4159 = vunpack.c.h.b16 %v3208
    %v4160 = vunpack.c.l.b16 %v3209
    %v4161 = vunpack.c.l.b16 %v3210
    %v4162 = vunpack.c.h.b16 %v3210
    %v4163 = vunpack.c.l.b16 %v3211
    %v4164 = vunpack.c.h.b16 %v3211
    %v4165 = vunpack.c.l.b16 %v3212
    %v4166 = vunpack.c.h.b16 %v3212
    %v4167 = vunpack.c.l.b16 %v3213
    %v4168 = vunpack.c.l.b16 %v3214
    %v4169 = vunpack.c.h.b16 %v3214
    %v4170 = vunpack.c.l.b16 %v3215
    %v4171 = vunpack.c.h.b16 %v3215
    %v4172 = vunpack.c.l.b16 %v3216
    %v4173 = vunpack.c.h.b16 %v3216
    %v4174 = vunpack.c.l.b16 %v3217
    %v4175 = vunpack.c.l.b16 %v3218
    %v4176 = vunpack.c.h.b16 %v3218
    %v4177 = vunpack.c.l.b16 %v3219
    %v4178 = vunpack.c.h.b16 %v3219
    %v4179 = vunpack.c.l.b16 %v3220
    %v4180 = vunpack.c.h.b16 %v3220
    %v4181 = vunpack.c.l.b16 %v3221
    %v4182 = vunpack.c.l.b16 %v3222
    %v4183 = vunpack.c.h.b16 %v3222
    %v4184 = vunpack.c.l.b16 %v3223
    %v4185 = vunpack.c.h.b16 %v3223
    %v4186 = vunpack.c.l.b16 %v3224
    %v4187 = vunpack.c.h.b16 %v3224
    %v4188 = vunpack.c.l.b16 %v3225
    %v4189 = vunpack.c.l.b16 %v3226
    %v4190 = vunpack.c.h.b16 %v3226
    %v4191 = vunpack.c.l.b16 %v3227
    %v4192 = vunpack.c.h.b16 %v3227
    %v4193 = vunpack.c.l.b16 %v3228
    %v4194 = vunpack.c.h.b16 %v3228
    %v4195 = vunpack.c.l.b16 %v3229
    %v4196 = vunpack.c.l.b16 %v3230
    %v4197 = vunpack.c.h.b16 %v3230
    %v4198 = vunpack.c.l.b16 %v3231
    %v4199 = vunpack.c.h.b16 %v3231
    %v4200 = vunpack.c.l.b16 %v3232
    %v4201 = vunpack.c.h.b16 %v3232
    %v4202 = vunpack.c.l.b16 %v3233
    %v4203 = vunpack.c.l.b16 %v3234
    %v4204 = vunpack.c.h.b16 %v3234
    %v4205 = vunpack.c.l.b16 %v3235
    %v4206 = vunpack.c.h.b16 %v3235
    %v4207 = vunpack.c.l.b16 %v3236
    %v4208 = vunpack.c.h.b16 %v3236
    %v4209 = vunpack.c.l.b16 %v3237
    %v4210 = vunpack.c.l.b16 %v3238
    %v4211 = vunpack.c.h.b16 %v3238
    %v4212 = vunpack.c.l.b16 %v3239
    %v4213 = vunpack.c.h.b16 %v3239
    %v4214 = vunpack.c.l.b16 %v3240
    %v4215 = vunpack.c.h.b16 %v3240
    %v4216 = vunpack.c.l.b16 %v3241
    %v4217 = vunpack.c.l.b16 %v3242
    %v4218 = vunpack.c.h.b16 %v3242
    %v4219 = vunpack.c.l.b16 %v3243
    %v4220 = vunpack.c.h.b16 %v3243
    %v4221 = vunpack.c.l.b16 %v3244
    %v4222 = vunpack.c.h.b16 %v3244
    %v4223 = vunpack.c.l.b16 %v3245
    %v4224 = vunpack.c.l.b16 %v3246
    %v4225 = vunpack.c.h.b16 %v3246
    %v4226 = vunpack.c.l.b16 %v3247
    %v4227 = vunpack.c.h.b16 %v3247
    %v4228 = vunpack.c.l.b16 %v3248
    %v4229 = vunpack.c.h.b16 %v3248
    %v4230 = vunpack.c.l.b16 %v3249
    %v4231 = vunpack.c.l.b16 %v3250
    %v4232 = vunpack.c.h.b16 %v3250
    %v4233 = vunpack.c.l.b16 %v3251
    %v4234 = vunpack.c.h.b16 %v3251
    %v4235 = vunpack.c.l.b16 %v3252
    %v4236 = vunpack.c.h.b16 %v3252
    %v4237 = vunpack.c.l.b16 %v3253
    %v4238 = vunpack.c.l.b16 %v3254
    %v4239 = vunpack.c.h.b16 %v3254
    %v4240 = vunpack.c.l.b16 %v3255
    %v4241 = vunpack.c.h.b16 %v3255
    %v4242 = vunpack.c.l.b16 %v3256
    %v4243 = vunpack.c.h.b16 %v3256
    %v4244 = vunpack.c.l.b16 %v3257
    %v4245 = vunpack.c.l.b16 %v3258
    %v4246 = vunpack.c.h.b16 %v3258
    %v4247 = vunpack.c.l.b16 %v3259
    %v4248 = vunpack.c.h.b16 %v3259
    %v4249 = vunpack.c.l.b16 %v3260
    %v4250 = vunpack.c.h.b16 %v3260
    %v4251 = vunpack.c.l.b16 %v3261
    %v4252 = vunpack.c.l.b16 %v3262
    %v4253 = vunpack.c.h.b16 %v3262
    %v4254 = vunpack.c.l.b16 %v3263
    %v4255 = vunpack.c.h.b16 %v3263
    %v4256 = vunpack.c.l.b16 %v3264
    %v4257 = vunpack.c.h.b16 %v3264
    %v4258 = vunpack.c.l.b16 %v3265
    %v4259 = vunpack.c.l.b16 %v3266
    %v4260 = vunpack.c.h.b16 %v3266
    %v4261 = vunpack.c.l.b16 %v3267
    %v4262 = vunpack.c.h.b16 %v3267
    %v4263 = vunpack.c.l.b16 %v3268
    %v4264 = vunpack.c.h.b16 %v3268
    %v4265 = vunpack.c.l.b16 %v3269
    %v4266 = vunpack.c.l.b16 %v3270
    %v4267 = vunpack.c.h.b16 %v3270
    %v4268 = vunpack.c.l.b16 %v3271
    %v4269 = vunpack.c.h.b16 %v3271
    %v4270 = vunpack.c.l.b16 %v3272
    %v4271 = vunpack.c.h.b16 %v3272
    %v4272 = vunpack.c.l.b16 %v3273
    %v4273 = vunpack.c.l.b16 %v3274
    %v4274 = vunpack.c.h.b16 %v3274
    %v4275 = vunpack.c.l.b16 %v3275
    %v4276 = vunpack.c.h.b16 %v3275
    %v4277 = vunpack.c.l.b16 %v3276
    %v4278 = vunpack.c.h.b16 %v3276
    %v4279 = vunpack.c.l.b16 %v3277
    %v4280 = vunpack.c.l.b16 %v3278
    %v4281 = vunpack.c.h.b16 %v3278
    %v4282 = vunpack.c.l.b16 %v3279
    %v4283 = vunpack.c.h.b16 %v3279
    %v4284 = vunpack.c.l.b16 %v3280
    %v4285 = vunpack.c.h.b16 %v3280
    %v4286 = vunpack.c.l.b16 %v3281
    %v4287 = vunpack.c.l.b16 %v3282
    %v4288 = vunpack.c.h.b16 %v3282
    %v4289 = vunpack.c.l.b16 %v3283
    %v4290 = vunpack.c.h.b16 %v3283
    %v4291 = vunpack.c.l.b16 %v3284
    %v4292 = vunpack.c.h.b16 %v3284
    %v4293 = vunpack.c.l.b16 %v3285
    %v4294 = vunpack.c.l.b16 %v3286
    %v4295 = vunpack.c.h.b16 %v3286
    %v4296 = vunpack.c.l.b16 %v3287
    %v4297 = vunpack.c.h.b16 %v3287
    %v4298 = vunpack.c.l.b16 %v3288
    %v4299 = vunpack.c.h.b16 %v3288
    %v4300 = vunpack.c.l.b16 %v3289
    %v4301 = vunpack.c.l.b16 %v3290
    %v4302 = vunpack.c.h.b16 %v3290
    %v4303 = vunpack.c.l.b16 %v3291
    %v4304 = vunpack.c.h.b16 %v3291
    %v4305 = vunpack.c.l.b16 %v3292
    %v4306 = vunpack.c.h.b16 %v3292
    %v4307 = vunpack.c.l.b16 %v3293
    %v4308 = vunpack.c.l.b16 %v3294
    %v4309 = vunpack.c.h.b16 %v3294
    %v4310 = vunpack.c.l.b16 %v3295
    %v4311 = vunpack.c.h.b16 %v3295
    %v4312 = vunpack.c.l.b16 %v3296
    %v4313 = vunpack.c.h.b16 %v3296
    %v4314 = vunpack.c.l.b16 %v3297
    %v4315 = vunpack.c.l.b16 %v3298
    %v4316 = vunpack.c.h.b16 %v3298
    %v4317 = vunpack.c.l.b16 %v3299
    %v4318 = vunpack.c.h.b16 %v3299
    %v4319 = vunpack.c.l.b16 %v3300
    %v4320 = vunpack.c.h.b16 %v3300
    %v4321 = vunpack.c.l.b16 %v3301
    %v4322 = vunpack.c.l.b16 %v3302
    %v4323 = vunpack.c.h.b16 %v3302
    %v4324 = vunpack.c.l.b16 %v3303
    %v4325 = vunpack.c.h.b16 %v3303
    %v4326 = vunpack.c.l.b16 %v3304
    %v4327 = vunpack.c.h.b16 %v3304
    %v4328 = vunpack.c.l.b16 %v3305
    %v4329 = vunpack.c.l.b16 %v3306
    %v4330 = vunpack.c.h.b16 %v3306
    %v4331 = vunpack.c.l.b16 %v3307
    %v4332 = vunpack.c.h.b16 %v3307
    %v4333 = vunpack.c.l.b16 %v3308
    %v4334 = vunpack.c.h.b16 %v3308
    %v4335 = vunpack.c.l.b16 %v3309
    %v4336 = vunpack.c.l.b16 %v3310
    %v4337 = vunpack.c.h.b16 %v3310
    %v4338 = vunpack.c.l.b16 %v3311
    %v4339 = vunpack.c.h.b16 %v3311
    %v4340 = vunpack.c.l.b16 %v3312
    %v4341 = vunpack.c.h.b16 %v3312
    %v4342 = vunpack.c.l.b16 %v3313
    %v4343 = vunpack.c.l.b16 %v3314
    %v4344 = vunpack.c.h.b16 %v3314
    %v4345 = vunpack.c.l.b16 %v3315
    %v4346 = vunpack.c.h.b16 %v3315
    %v4347 = vunpack.c.l.b16 %v3316
    %v4348 = vunpack.c.h.b16 %v3316
    %v4349 = vunpack.c.l.b16 %v3317
    %v4350 = vunpack.c.l.b16 %v3318
    %v4351 = vunpack.c.h.b16 %v3318
    %v4352 = vunpack.c.l.b16 %v3319
    %v4353 = vunpack.c.h.b16 %v3319
    %v4354 = vunpack.c.l.b16 %v3320
    %v4355 = vunpack.c.h.b16 %v3320
    %v4356 = vunpack.c.l.b16 %v3321
    %v4357 = vunpack.c.l.b16 %v3322
    %v4358 = vunpack.c.h.b16 %v3322
    %v4359 = vunpack.c.l.b16 %v3323
    %v4360 = vunpack.c.h.b16 %v3323
    %v4361 = vunpack.c.l.b16 %v3324
    %v4362 = vunpack.c.h.b16 %v3324
    %v4363 = vunpack.c.l.b16 %v3325
    %v4364 = vunpack.c.l.b16 %v3326
    %v4365 = vunpack.c.h.b16 %v3326
    %v4366 = vunpack.c.l.b16 %v3327
    %v4367 = vunpack.c.h.b16 %v3327
    %v4368 = vunpack.c.l.b16 %v3328
    %v4369 = vunpack.c.h.b16 %v3328
    %v4370 = vunpack.c.l.b16 %v3329
    %v4371 = vunpack.c.l.b16 %v3330
    %v4372 = vunpack.c.h.b16 %v3330
    %v4373 = vunpack.c.l.b16 %v3331
    %v4374 = vunpack.c.h.b16 %v3331
    %v4375 = vunpack.c.l.b16 %v3332
    %v4376 = vunpack.c.h.b16 %v3332
    %v4377 = vunpack.c.l.b16 %v3333
    %v4378 = vunpack.c.l.b16 %v3334
    %v4379 = vunpack.c.h.b16 %v3334
    %v4380 = vunpack.c.l.b16 %v3335
    %v4381 = vunpack.c.h.b16 %v3335
    %v4382 = vunpack.c.l.b16 %v3336
    %v4383 = vunpack.c.h.b16 %v3336
    %v4384 = vunpack.c.l.b16 %v3337
    %v4385 = vunpack.c.l.b16 %v3338
    %v4386 = vunpack.c.h.b16 %v3338
    %v4387 = vunpack.c.l.b16 %v3339
    %v4388 = vunpack.c.h.b16 %v3339
    %v4389 = vunpack.c.l.b16 %v3340
    %v4390 = vunpack.c.h.b16 %v3340
    %v4391 = vunpack.c.l.b16 %v3341
    %v4392 = vunpack.c.l.b16 %v3342
    %v4393 = vunpack.c.h.b16 %v3342
    %v4394 = vunpack.c.l.b16 %v3343
    %v4395 = vunpack.c.h.b16 %v3343
    %v4396 = vunpack.c.l.b16 %v3344
    %v4397 = vunpack.c.h.b16 %v3344
    %v4398 = vunpack.c.l.b16 %v3345
    %v4399 = vunpack.c.l.b16 %v3346
    %v4400 = vunpack.c.h.b16 %v3346
    %v4401 = vunpack.c.l.b16 %v3347
    %v4402 = vunpack.c.h.b16 %v3347
    %v4403 = vunpack.c.l.b16 %v3348
    %v4404 = vunpack.c.h.b16 %v3348
    %v4405 = vunpack.c.l.b16 %v3349
    %v4406 = vunpack.c.l.b16 %v3350
    %v4407 = vunpack.c.h.b16 %v3350
    %v4408 = vunpack.c.l.b16 %v3351
    %v4409 = vunpack.c.h.b16 %v3351
    %v4410 = vunpack.c.l.b16 %v3352
    %v4411 = vunpack.c.h.b16 %v3352
    %v4412 = vunpack.c.l.b16 %v3353
    %v4413 = vunpack.c.l.b16 %v3354
    %v4414 = vunpack.c.h.b16 %v3354
    %v4415 = vunpack.c.l.b16 %v3355
    %v4416 = vunpack.c.h.b16 %v3355
    %v4417 = vunpack.c.l.b16 %v3356
    %v4418 = vunpack.c.h.b16 %v3356
    %v4419 = vunpack.c.l.b16 %v3357
    %v4420 = vunpack.c.l.b16 %v3358
    %v4421 = vunpack.c.h.b16 %v3358
    %v4422 = vunpack.c.l.b16 %v3359
    %v4423 = vunpack.c.h.b16 %v3359
    %v4424 = vunpack.c.l.b16 %v3360
    %v4425 = vunpack.c.h.b16 %v3360
    %v4426 = vunpack.c.l.b16 %v3361
    %v4427 = vunpack.c.l.b16 %v3362
    %v4428 = vunpack.c.h.b16 %v3362
    %v4429 = vunpack.c.l.b16 %v3363
    %v4430 = vunpack.c.h.b16 %v3363
    %v4431 = vunpack.c.l.b16 %v3364
    %v4432 = vunpack.c.h.b16 %v3364
    %v4433 = vunpack.c.l.b16 %v3365
    %v4434 = vunpack.c.l.b16 %v3366
    %v4435 = vunpack.c.h.b16 %v3366
    %v4436 = vunpack.c.l.b16 %v3367
    %v4437 = vunpack.c.h.b16 %v3367
    %v4438 = vunpack.c.l.b16 %v3368
    %v4439 = vunpack.c.h.b16 %v3368
    %v4440 = vunpack.c.l.b16 %v3369
    %v4441 = vunpack.c.l.b16 %v3370
    %v4442 = vunpack.c.h.b16 %v3370
    %v4443 = vunpack.c.l.b16 %v3371
    %v4444 = vunpack.c.h.b16 %v3371
    %v4445 = vunpack.c.l.b16 %v3372
    %v4446 = vunpack.c.h.b16 %v3372
    %v4447 = vunpack.c.l.b16 %v3373
    %v4448 = vunpack.c.l.b16 %v3374
    %v4449 = vunpack.c.h.b16 %v3374
    %v4450 = vunpack.c.l.b16 %v3375
    %v4451 = vunpack.c.h.b16 %v3375
    %v4452 = vunpack.c.l.b16 %v3376
    %v4453 = vunpack.c.h.b16 %v3376
    %v4454 = vunpack.c.l.b16 %v3377
    %v4455 = vunpack.c.l.b16 %v3378
    %v4456 = vunpack.c.h.b16 %v3378
    %v4457 = vunpack.c.l.b16 %v3379
    %v4458 = vunpack.c.h.b16 %v3379
    %v4459 = vunpack.c.l.b16 %v3380
    %v4460 = vunpack.c.h.b16 %v3380
    %v4461 = vunpack.c.l.b16 %v3381
    %v4462 = vunpack.c.l.b16 %v3382
    %v4463 = vunpack.c.h.b16 %v3382
    %v4464 = vunpack.c.l.b16 %v3383
    %v4465 = vunpack.c.h.b16 %v3383
    %v4466 = vunpack.c.l.b16 %v3384
    %v4467 = vunpack.c.h.b16 %v3384
    %v4468 = vunpack.c.l.b16 %v3385
    %v4469 = vunpack.c.l.b16 %v3386
    %v4470 = vunpack.c.h.b16 %v3386
    %v4471 = vunpack.c.l.b16 %v3387
    %v4472 = vunpack.c.h.b16 %v3387
    %v4473 = vunpack.c.l.b16 %v3388
    %v4474 = vunpack.c.h.b16 %v3388
    %v4475 = vunpack.c.l.b16 %v3389
    %v4476 = vunpack.c.l.b16 %v3390
    %v4477 = vunpack.c.h.b16 %v3390
    %v4478 = vunpack.c.l.b16 %v3391
    %v4479 = vunpack.c.h.b16 %v3391
    %v4480 = vunpack.c.l.b16 %v3392
    %v4481 = vunpack.c.h.b16 %v3392
    %v4482 = vunpack.c.l.b16 %v3393
    %v4483 = vunpack.c.l.b16 %v3394
    %v4484 = vunpack.c.h.b16 %v3394
    %v4485 = vunpack.c.l.b16 %v3395
    %v4486 = vunpack.c.h.b16 %v3395
    %v4487 = vunpack.c.l.b16 %v3396
    %v4488 = vunpack.c.h.b16 %v3396
    %v4489 = vunpack.c.l.b16 %v3397
    %v4490 = vunpack.c.l.b16 %v3398
    %v4491 = vunpack.c.h.b16 %v3398
    %v4492 = vunpack.c.l.b16 %v3399
    %v4493 = vunpack.c.h.b16 %v3399
    %v4494 = vunpack.c.l.b16 %v3400
    %v4495 = vunpack.c.h.b16 %v3400
    %v4496 = vunpack.c.l.b16 %v3401
    %v4497 = vunpack.c.l.b16 %v3402
    %v4498 = vunpack.c.h.b16 %v3402
    %v4499 = vunpack.c.l.b16 %v3403
    %v4500 = vunpack.c.h.b16 %v3403
    %v4501 = vunpack.c.l.b16 %v3404
    %v4502 = vunpack.c.h.b16 %v3404
    %v4503 = vunpack.c.l.b16 %v3405
    %v4504 = vunpack.c.l.b16 %v3406
    %v4505 = vunpack.c.h.b16 %v3406
    %v4506 = vunpack.c.l.b16 %v3407
    %v4507 = vunpack.c.h.b16 %v3407
    %v4508 = vunpack.c.l.b16 %v3408
    %v4509 = vunpack.c.h.b16 %v3408
    %v4510 = vunpack.c.l.b16 %v3409
    %v4511 = vunpack.c.l.b16 %v3410
    %v4512 = vunpack.c.h.b16 %v3410
    %v4513 = vunpack.c.l.b16 %v3411
    %v4514 = vunpack.c.h.b16 %v3411
    %v4515 = vunpack.c.l.b16 %v3412
    %v4516 = vunpack.c.h.b16 %v3412
    %v4517 = vunpack.c.l.b16 %v3413
    %v4518 = vunpack.c.l.b16 %v3414
    %v4519 = vunpack.c.h.b16 %v3414
    %v4520 = vunpack.c.l.b16 %v3415
    %v4521 = vunpack.c.h.b16 %v3415
    %v4522 = vunpack.c.l.b16 %v3416
    %v4523 = vunpack.c.h.b16 %v3416
    %v4524 = vunpack.c.l.b16 %v3417
    %v4525 = vunpack.c.l.b16 %v3418
    %v4526 = vunpack.c.h.b16 %v3418
    %v4527 = vunpack.c.l.b16 %v3419
    %v4528 = vunpack.c.h.b16 %v3419
    %v4529 = vunpack.c.l.b16 %v3420
    %v4530 = vunpack.c.h.b16 %v3420
    %v4531 = vunpack.c.l.b16 %v3421
    %v4532 = vunpack.c.l.b16 %v3422
    %v4533 = vunpack.c.h.b16 %v3422
    %v4534 = vunpack.c.l.b16 %v3423
    %v4535 = vunpack.c.h.b16 %v3423
    %v4536 = vunpack.c.l.b16 %v3424
    %v4537 = vunpack.c.h.b16 %v3424
    %v4538 = vunpack.c.l.b16 %v3425
    %v4539 = vunpack.c.l.b16 %v3426
    %v4540 = vunpack.c.h.b16 %v3426
    %v4541 = vunpack.c.l.b16 %v3427
    %v4542 = vunpack.c.h.b16 %v3427
    %v4543 = vunpack.c.l.b16 %v3428
    %v4544 = vunpack.c.h.b16 %v3428
    %v4545 = vunpack.c.l.b16 %v3429
    %v4546 = vunpack.c.l.b16 %v3430
    %v4547 = vunpack.c.h.b16 %v3430
    %v4548 = vunpack.c.l.b16 %v3431
    %v4549 = vunpack.c.h.b16 %v3431
    %v4550 = vunpack.c.l.b16 %v3432
    %v4551 = vunpack.c.h.b16 %v3432
    %v4552 = vunpack.c.l.b16 %v3433
    %v4553 = vunpack.c.l.b16 %v3434
    %v4554 = vunpack.c.h.b16 %v3434
    %v4555 = vunpack.c.l.b16 %v3435
    %v4556 = vunpack.c.h.b16 %v3435
    %v4557 = vunpack.c.l.b16 %v3436
    %v4558 = vunpack.c.h.b16 %v3436
    %v4559 = vunpack.c.l.b16 %v3437
    %v4560 = vunpack.c.l.b16 %v3438
    %v4561 = vunpack.c.h.b16 %v3438
    %v4562 = vunpack.c.l.b16 %v3439
    %v4563 = vunpack.c.h.b16 %v3439
    %v4564 = vunpack.c.l.b16 %v3440
    %v4565 = vunpack.c.h.b16 %v3440
    %v4566 = vunpack.c.l.b16 %v3441
    %v4567 = vunpack.c.l.b16 %v3442
    %v4568 = vunpack.c.h.b16 %v3442
    %v4569 = vunpack.c.l.b16 %v3443
    %v4570 = vunpack.c.h.b16 %v3443
    %v4571 = vunpack.c.l.b16 %v3444
    %v4572 = vunpack.c.h.b16 %v3444
    %v4573 = vunpack.c.l.b16 %v3445
    %v4574 = vunpack.c.l.b16 %v3446
    %v4575 = vunpack.c.h.b16 %v3446
    %v4576 = vunpack.c.l.b16 %v3447
    %v4577 = vunpack.c.h.b16 %v3447
    %v4578 = vunpack.c.l.b16 %v3448
    %v4579 = vunpack.c.h.b16 %v3448
    %v4580 = vunpack.c.l.b16 %v3449
    %v4581 = vunpack.c.l.b16 %v3450
    %v4582 = vunpack.c.h.b16 %v3450
    %v4583 = vunpack.c.l.b16 %v3451
    %v4584 = vunpack.c.h.b16 %v3451
    %v4585 = vunpack.c.l.b16 %v3452
    %v4586 = vunpack.c.h.b16 %v3452
    %v4587 = vunpack.c.l.b16 %v3453
    %v4588 = vunpack.c.l.b16 %v3454
    %v4589 = vunpack.c.h.b16 %v3454
    %v4590 = vunpack.c.l.b16 %v3455
    %v4591 = vunpack.c.h.b16 %v3455
    %v4592 = vunpack.c.l.b16 %v3456
    %v4593 = vunpack.c.h.b16 %v3456
    %v4594 = vunpack.c.l.b16 %v3457
    %v4595 = vpack.c.b16 %v3902, %v3895
    %v4596 = vpack.c.b16 %v3903, %v3896
    %v4597 = vpack.c.b16 %v3904, %v3897
    %v4598 = vpack.c.b16 %v3905, %v3898
    %v4599 = vpack.c.b16 %v3906, %v3899
    %v4600 = vpack.c.b16 %v3907, %v3900
    %v4601 = vpack.c.b16 %v3908, %v3901
    %v4602 = vpack.c.b16 %v3916, %v3909
    %v4603 = vpack.c.b16 %v3917, %v3910
    %v4604 = vpack.c.b16 %v3918, %v3911
    %v4605 = vpack.c.b16 %v3919, %v3912
    %v4606 = vpack.c.b16 %v3920, %v3913
    %v4607 = vpack.c.b16 %v3921, %v3914
    %v4608 = vpack.c.b16 %v3922, %v3915
    %v4609 = vpack.c.b16 %v3930, %v3923
    %v4610 = vpack.c.b16 %v3931, %v3924
    %v4611 = vpack.c.b16 %v3932, %v3925
    %v4612 = vpack.c.b16 %v3933, %v3926
    %v4613 = vpack.c.b16 %v3934, %v3927
    %v4614 = vpack.c.b16 %v3935, %v3928
    %v4615 = vpack.c.b16 %v3936, %v3929
    %v4616 = vpack.c.b16 %v3944, %v3937
    %v4617 = vpack.c.b16 %v3945, %v3938
    %v4618 = vpack.c.b16 %v3946, %v3939
    %v4619 = vpack.c.b16 %v3947, %v3940
    %v4620 = vpack.c.b16 %v3948, %v3941
    %v4621 = vpack.c.b16 %v3949, %v3942
    %v4622 = vpack.c.b16 %v3950, %v3943
    %v4623 = vpack.c.b16 %v3958, %v3951
    %v4624 = vpack.c.b16 %v3959, %v3952
    %v4625 = vpack.c.b16 %v3960, %v3953
    %v4626 = vpack.c.b16 %v3961, %v3954
    %v4627 = vpack.c.b16 %v3962, %v3955
    %v4628 = vpack.c.b16 %v3963, %v3956
    %v4629 = vpack.c.b16 %v3964, %v3957
    %v4630 = vpack.c.b16 %v3972, %v3965
    %v4631 = vpack.c.b16 %v3973, %v3966
    %v4632 = vpack.c.b16 %v3974, %v3967
    %v4633 = vpack.c.b16 %v3975, %v3968
    %v4634 = vpack.c.b16 %v3976, %v3969
    %v4635 = vpack.c.b16 %v3977, %v3970
    %v4636 = vpack.c.b16 %v3978, %v3971
    %v4637 = vpack.c.b16 %v3986, %v3979
    %v4638 = vpack.c.b16 %v3987, %v3980
    %v4639 = vpack.c.b16 %v3988, %v3981
    %v4640 = vpack.c.b16 %v3989, %v3982
    %v4641 = vpack.c.b16 %v3990, %v3983
    %v4642 = vpack.c.b16 %v3991, %v3984
    %v4643 = vpack.c.b16 %v3992, %v3985
    %v4644 = vpack.c.b16 %v4000, %v3993
    %v4645 = vpack.c.b16 %v4001, %v3994
    %v4646 = vpack.c.b16 %v4002, %v3995
    %v4647 = vpack.c.b16 %v4003, %v3996
    %v4648 = vpack.c.b16 %v4004, %v3997
    %v4649 = vpack.c.b16 %v4005, %v3998
    %v4650 = vpack.c.b16 %v4006, %v3999
    %v4651 = vpack.c.b16 %v4014, %v4007
    %v4652 = vpack.c.b16 %v4015, %v4008
    %v4653 = vpack.c.b16 %v4016, %v4009
    %v4654 = vpack.c.b16 %v4017, %v4010
    %v4655 = vpack.c.b16 %v4018, %v4011
    %v4656 = vpack.c.b16 %v4019, %v4012
    %v4657 = vpack.c.b16 %v4020, %v4013
    %v4658 = vpack.c.b16 %v4028, %v4021
    %v4659 = vpack.c.b16 %v4029, %v4022
    %v4660 = vpack.c.b16 %v4030, %v4023
    %v4661 = vpack.c.b16 %v4031, %v4024
    %v4662 = vpack.c.b16 %v4032, %v4025
    %v4663 = vpack.c.b16 %v4033, %v4026
    %v4664 = vpack.c.b16 %v4034, %v4027
    %v4665 = vpack.c.b16 %v4042, %v4035
    %v4666 = vpack.c.b16 %v4043, %v4036
    %v4667 = vpack.c.b16 %v4044, %v4037
    %v4668 = vpack.c.b16 %v4045, %v4038
    %v4669 = vpack.c.b16 %v4046, %v4039
    %v4670 = vpack.c.b16 %v4047, %v4040
    %v4671 = vpack.c.b16 %v4048, %v4041
    %v4672 = vpack.c.b16 %v4056, %v4049
    %v4673 = vpack.c.b16 %v4057, %v4050
    %v4674 = vpack.c.b16 %v4058, %v4051
    %v4675 = vpack.c.b16 %v4059, %v4052
    %v4676 = vpack.c.b16 %v4060, %v4053
    %v4677 = vpack.c.b16 %v4061, %v4054
    %v4678 = vpack.c.b16 %v4062, %v4055
    %v4679 = vpack.c.b16 %v4070, %v4063
    %v4680 = vpack.c.b16 %v4071, %v4064
    %v4681 = vpack.c.b16 %v4072, %v4065
    %v4682 = vpack.c.b16 %v4073, %v4066
    %v4683 = vpack.c.b16 %v4074, %v4067
    %v4684 = vpack.c.b16 %v4075, %v4068
    %v4685 = vpack.c.b16 %v4076, %v4069
    %v4686 = vpack.c.b16 %v4084, %v4077
    %v4687 = vpack.c.b16 %v4085, %v4078
    %v4688 = vpack.c.b16 %v4086, %v4079
    %v4689 = vpack.c.b16 %v4087, %v4080
    %v4690 = vpack.c.b16 %v4088, %v4081
    %v4691 = vpack.c.b16 %v4089, %v4082
    %v4692 = vpack.c.b16 %v4090, %v4083
    %v4693 = vpack.c.b16 %v4098, %v4091
    %v4694 = vpack.c.b16 %v4099, %v4092
    %v4695 = vpack.c.b16 %v4100, %v4093
    %v4696 = vpack.c.b16 %v4101, %v4094
    %v4697 = vpack.c.b16 %v4102, %v4095
    %v4698 = vpack.c.b16 %v4103, %v4096
    %v4699 = vpack.c.b16 %v4104, %v4097
    %v4700 = vpack.c.b16 %v4112, %v4105
    %v4701 = vpack.c.b16 %v4113, %v4106
    %v4702 = vpack.c.b16 %v4114, %v4107
    %v4703 = vpack.c.b16 %v4115, %v4108
    %v4704 = vpack.c.b16 %v4116, %v4109
    %v4705 = vpack.c.b16 %v4117, %v4110
    %v4706 = vpack.c.b16 %v4118, %v4111
    %v4707 = vpack.c.b16 %v4126, %v4119
    %v4708 = vpack.c.b16 %v4127, %v4120
    %v4709 = vpack.c.b16 %v4128, %v4121
    %v4710 = vpack.c.b16 %v4129, %v4122
    %v4711 = vpack.c.b16 %v4130, %v4123
    %v4712 = vpack.c.b16 %v4131, %v4124
    %v4713 = vpack.c.b16 %v4132, %v4125
    %v4714 = vpack.c.b16 %v4140, %v4133
    %v4715 = vpack.c.b16 %v4141, %v4134
    %v4716 = vpack.c.b16 %v4142, %v4135
    %v4717 = vpack.c.b16 %v4143, %v4136
    %v4718 = vpack.c.b16 %v4144, %v4137
    %v4719 = vpack.c.b16 %v4145, %v4138
    %v4720 = vpack.c.b16 %v4146, %v4139
    %v4721 = vpack.c.b16 %v4154, %v4147
    %v4722 = vpack.c.b16 %v4155, %v4148
    %v4723 = vpack.c.b16 %v4156, %v4149
    %v4724 = vpack.c.b16 %v4157, %v4150
    %v4725 = vpack.c.b16 %v4158, %v4151
    %v4726 = vpack.c.b16 %v4159, %v4152
    %v4727 = vpack.c.b16 %v4160, %v4153
    %v4728 = vpack.c.b16 %v4168, %v4161
    %v4729 = vpack.c.b16 %v4169, %v4162
    %v4730 = vpack.c.b16 %v4170, %v4163
    %v4731 = vpack.c.b16 %v4171, %v4164
    %v4732 = vpack.c.b16 %v4172, %v4165
    %v4733 = vpack.c.b16 %v4173, %v4166
    %v4734 = vpack.c.b16 %v4174, %v4167
    %v4735 = vpack.c.b16 %v4182, %v4175
    %v4736 = vpack.c.b16 %v4183, %v4176
    %v4737 = vpack.c.b16 %v4184, %v4177
    %v4738 = vpack.c.b16 %v4185, %v4178
    %v4739 = vpack.c.b16 %v4186, %v4179
    %v4740 = vpack.c.b16 %v4187, %v4180
    %v4741 = vpack.c.b16 %v4188, %v4181
    %v4742 = vpack.c.b16 %v4196, %v4189
    %v4743 = vpack.c.b16 %v4197, %v4190
    %v4744 = vpack.c.b16 %v4198, %v4191
    %v4745 = vpack.c.b16 %v4199, %v4192
    %v4746 = vpack.c.b16 %v4200, %v4193
    %v4747 = vpack.c.b16 %v4201, %v4194
    %v4748 = vpack.c.b16 %v4202, %v4195
    %v4749 = vpack.c.b16 %v4210, %v4203
    %v4750 = vpack.c.b16 %v4211, %v4204
    %v4751 = vpack.c.b16 %v4212, %v4205
    %v4752 = vpack.c.b16 %v4213, %v4206
    %v4753 = vpack.c.b16 %v4214, %v4207
    %v4754 = vpack.c.b16 %v4215, %v4208
    %v4755 = vpack.c.b16 %v4216, %v4209
    %v4756 = vpack.c.b16 %v4224, %v4217
    %v4757 = vpack.c.b16 %v4225, %v4218
    %v4758 = vpack.c.b16 %v4226, %v4219
    %v4759 = vpack.c.b16 %v4227, %v4220
    %v4760 = vpack.c.b16 %v4228, %v4221
    %v4761 = vpack.c.b16 %v4229, %v4222
    %v4762 = vpack.c.b16 %v4230, %v4223
    %v4763 = vpack.c.b16 %v4238, %v4231
    %v4764 = vpack.c.b16 %v4239, %v4232
    %v4765 = vpack.c.b16 %v4240, %v4233
    %v4766 = vpack.c.b16 %v4241, %v4234
    %v4767 = vpack.c.b16 %v4242, %v4235
    %v4768 = vpack.c.b16 %v4243, %v4236
    %v4769 = vpack.c.b16 %v4244, %v4237
    %v4770 = vpack.c.b16 %v4252, %v4245
    %v4771 = vpack.c.b16 %v4253, %v4246
    %v4772 = vpack.c.b16 %v4254, %v4247
    %v4773 = vpack.c.b16 %v4255, %v4248
    %v4774 = vpack.c.b16 %v4256, %v4249
    %v4775 = vpack.c.b16 %v4257, %v4250
    %v4776 = vpack.c.b16 %v4258, %v4251
    %v4777 = vpack.c.b16 %v4266, %v4259
    %v4778 = vpack.c.b16 %v4267, %v4260
    %v4779 = vpack.c.b16 %v4268, %v4261
    %v4780 = vpack.c.b16 %v4269, %v4262
    %v4781 = vpack.c.b16 %v4270, %v4263
    %v4782 = vpack.c.b16 %v4271, %v4264
    %v4783 = vpack.c.b16 %v4272, %v4265
    %v4784 = vpack.c.b16 %v4280, %v4273
    %v4785 = vpack.c.b16 %v4281, %v4274
    %v4786 = vpack.c.b16 %v4282, %v4275
    %v4787 = vpack.c.b16 %v4283, %v4276
    %v4788 = vpack.c.b16 %v4284, %v4277
    %v4789 = vpack.c.b16 %v4285, %v4278
    %v4790 = vpack.c.b16 %v4286, %v4279
    %v4791 = vpack.c.b16 %v4294, %v4287
    %v4792 = vpack.c.b16 %v4295, %v4288
    %v4793 = vpack.c.b16 %v4296, %v4289
    %v4794 = vpack.c.b16 %v4297, %v4290
    %v4795 = vpack.c.b16 %v4298, %v4291
    %v4796 = vpack.c.b16 %v4299, %v4292
    %v4797 = vpack.c.b16 %v4300, %v4293
    %v4798 = vpack.c.b16 %v4308, %v4301
    %v4799 = vpack.c.b16 %v4309, %v4302
    %v4800 = vpack.c.b16 %v4310, %v4303
    %v4801 = vpack.c.b16 %v4311, %v4304
    %v4802 = vpack.c.b16 %v4312, %v4305
    %v4803 = vpack.c.b16 %v4313, %v4306
    %v4804 = vpack.c.b16 %v4314, %v4307
    %v4805 = vpack.c.b16 %v4322, %v4315
    %v4806 = vpack.c.b16 %v4323, %v4316
    %v4807 = vpack.c.b16 %v4324, %v4317
    %v4808 = vpack.c.b16 %v4325, %v4318
    %v4809 = vpack.c.b16 %v4326, %v4319
    %v4810 = vpack.c.b16 %v4327, %v4320
    %v4811 = vpack.c.b16 %v4328, %v4321
    %v4812 = vpack.c.b16 %v4336, %v4329
    %v4813 = vpack.c.b16 %v4337, %v4330
    %v4814 = vpack.c.b16 %v4338, %v4331
    %v4815 = vpack.c.b16 %v4339, %v4332
    %v4816 = vpack.c.b16 %v4340, %v4333
    %v4817 = vpack.c.b16 %v4341, %v4334
    %v4818 = vpack.c.b16 %v4342, %v4335
    %v4819 = vpack.c.b16 %v4350, %v4343
    %v4820 = vpack.c.b16 %v4351, %v4344
    %v4821 = vpack.c.b16 %v4352, %v4345
    %v4822 = vpack.c.b16 %v4353, %v4346
    %v4823 = vpack.c.b16 %v4354, %v4347
    %v4824 = vpack.c.b16 %v4355, %v4348
    %v4825 = vpack.c.b16 %v4356, %v4349
    %v4826 = vpack.c.b16 %v4364, %v4357
    %v4827 = vpack.c.b16 %v4365, %v4358
    %v4828 = vpack.c.b16 %v4366, %v4359
    %v4829 = vpack.c.b16 %v4367, %v4360
    %v4830 = vpack.c.b16 %v4368, %v4361
    %v4831 = vpack.c.b16 %v4369, %v4362
    %v4832 = vpack.c.b16 %v4370, %v4363
    %v4833 = vpack.c.b16 %v4378, %v4371
    %v4834 = vpack.c.b16 %v4379, %v4372
    %v4835 = vpack.c.b16 %v4380, %v4373
    %v4836 = vpack.c.b16 %v4381, %v4374
    %v4837 = vpack.c.b16 %v4382, %v4375
    %v4838 = vpack.c.b16 %v4383, %v4376
    %v4839 = vpack.c.b16 %v4384, %v4377
    %v4840 = vpack.c.b16 %v4392, %v4385
    %v4841 = vpack.c.b16 %v4393, %v4386
    %v4842 = vpack.c.b16 %v4394, %v4387
    %v4843 = vpack.c.b16 %v4395, %v4388
    %v4844 = vpack.c.b16 %v4396, %v4389
    %v4845 = vpack.c.b16 %v4397, %v4390
    %v4846 = vpack.c.b16 %v4398, %v4391
    %v4847 = vpack.c.b16 %v4406, %v4399
    %v4848 = vpack.c.b16 %v4407, %v4400
    %v4849 = vpack.c.b16 %v4408, %v4401
    %v4850 = vpack.c.b16 %v4409, %v4402
    %v4851 = vpack.c.b16 %v4410, %v4403
    %v4852 = vpack.c.b16 %v4411, %v4404
    %v4853 = vpack.c.b16 %v4412, %v4405
    %v4854 = vpack.c.b16 %v4420, %v4413
    %v4855 = vpack.c.b16 %v4421, %v4414
    %v4856 = vpack.c.b16 %v4422, %v4415
    %v4857 = vpack.c.b16 %v4423, %v4416
    %v4858 = vpack.c.b16 %v4424, %v4417
    %v4859 = vpack.c.b16 %v4425, %v4418
    %v4860 = vpack.c.b16 %v4426, %v4419
    %v4861 = vpack.c.b16 %v4434, %v4427
    %v4862 = vpack.c.b16 %v4435, %v4428
    %v4863 = vpack.c.b16 %v4436, %v4429
    %v4864 = vpack.c.b16 %v4437, %v4430
    %v4865 = vpack.c.b16 %v4438, %v4431
    %v4866 = vpack.c.b16 %v4439, %v4432
    %v4867 = vpack.c.b16 %v4440, %v4433
    %v4868 = vpack.c.b16 %v4448, %v4441
    %v4869 = vpack.c.b16 %v4449, %v4442
    %v4870 = vpack.c.b16 %v4450, %v4443
    %v4871 = vpack.c.b16 %v4451, %v4444
    %v4872 = vpack.c.b16 %v4452, %v4445
    %v4873 = vpack.c.b16 %v4453, %v4446
    %v4874 = vpack.c.b16 %v4454, %v4447
    %v4875 = vpack.c.b16 %v4462, %v4455
    %v4876 = vpack.c.b16 %v4463, %v4456
    %v4877 = vpack.c.b16 %v4464, %v4457
    %v4878 = vpack.c.b16 %v4465, %v4458
    %v4879 = vpack.c.b16 %v4466, %v4459
    %v4880 = vpack.c.b16 %v4467, %v4460
    %v4881 = vpack.c.b16 %v4468, %v4461
    %v4882 = vpack.c.b16 %v4476, %v4469
    %v4883 = vpack.c.b16 %v4477, %v4470
    %v4884 = vpack.c.b16 %v4478, %v4471
    %v4885 = vpack.c.b16 %v4479, %v4472
    %v4886 = vpack.c.b16 %v4480, %v4473
    %v4887 = vpack.c.b16 %v4481, %v4474
    %v4888 = vpack.c.b16 %v4482, %v4475
    %v4889 = vpack.c.b16 %v4490, %v4483
    %v4890 = vpack.c.b16 %v4491, %v4484
    %v4891 = vpack.c.b16 %v4492, %v4485
    %v4892 = vpack.c.b16 %v4493, %v4486
    %v4893 = vpack.c.b16 %v4494, %v4487
    %v4894 = vpack.c.b16 %v4495, %v4488
    %v4895 = vpack.c.b16 %v4496, %v4489
    %v4896 = vpack.c.b16 %v4504, %v4497
    %v4897 = vpack.c.b16 %v4505, %v4498
    %v4898 = vpack.c.b16 %v4506, %v4499
    %v4899 = vpack.c.b16 %v4507, %v4500
    %v4900 = vpack.c.b16 %v4508, %v4501
    %v4901 = vpack.c.b16 %v4509, %v4502
    %v4902 = vpack.c.b16 %v4510, %v4503
    %v4903 = vpack.c.b16 %v4518, %v4511
    %v4904 = vpack.c.b16 %v4519, %v4512
    %v4905 = vpack.c.b16 %v4520, %v4513
    %v4906 = vpack.c.b16 %v4521, %v4514
    %v4907 = vpack.c.b16 %v4522, %v4515
    %v4908 = vpack.c.b16 %v4523, %v4516
    %v4909 = vpack.c.b16 %v4524, %v4517
    %v4910 = vpack.c.b16 %v4532, %v4525
    %v4911 = vpack.c.b16 %v4533, %v4526
    %v4912 = vpack.c.b16 %v4534, %v4527
    %v4913 = vpack.c.b16 %v4535, %v4528
    %v4914 = vpack.c.b16 %v4536, %v4529
    %v4915 = vpack.c.b16 %v4537, %v4530
    %v4916 = vpack.c.b16 %v4538, %v4531
    %v4917 = vpack.c.b16 %v4546, %v4539
    %v4918 = vpack.c.b16 %v4547, %v4540
    %v4919 = vpack.c.b16 %v4548, %v4541
    %v4920 = vpack.c.b16 %v4549, %v4542
    %v4921 = vpack.c.b16 %v4550, %v4543
    %v4922 = vpack.c.b16 %v4551, %v4544
    %v4923 = vpack.c.b16 %v4552, %v4545
    %v4924 = vpack.c.b16 %v4560, %v4553
    %v4925 = vpack.c.b16 %v4561, %v4554
    %v4926 = vpack.c.b16 %v4562, %v4555
    %v4927 = vpack.c.b16 %v4563, %v4556
    %v4928 = vpack.c.b16 %v4564, %v4557
    %v4929 = vpack.c.b16 %v4565, %v4558
    %v4930 = vpack.c.b16 %v4566, %v4559
    %v4931 = vpack.c.b16 %v4574, %v4567
    %v4932 = vpack.c.b16 %v4575, %v4568
    %v4933 = vpack.c.b16 %v4576, %v4569
    %v4934 = vpack.c.b16 %v4577, %v4570
    %v4935 = vpack.c.b16 %v4578, %v4571
    %v4936 = vpack.c.b16 %v4579, %v4572
    %v4937 = vpack.c.b16 %v4580, %v4573
    %v4938 = vpack.c.b16 %v4588, %v4581
    %v4939 = vpack.c.b16 %v4589, %v4582
    %v4940 = vpack.c.b16 %v4590, %v4583
    %v4941 = vpack.c.b16 %v4591, %v4584
    %v4942 = vpack.c.b16 %v4592, %v4585
    %v4943 = vpack.c.b16 %v4593, %v4586
    %v4944 = vpack.c.b16 %v4594, %v4587
    %vm5295 = vcmask 261120
    %v5297 = vsel %vm5295, %v3057, 0
    %5299 = vmatprep.subr.bf16.mxu0 %v4645
    %5300 = vmatpush1.bf16.msra.mxu0 %v4644
    %5301 = vmatprep.subr.bf16.mxu0 %v4638
    %5302 = vmatpush1.bf16.msra.mxu0 %v4637
    %5303 = vmatprep.subr.bf16.mxu0 %v4631
    %5304 = vmatpush1.bf16.msra.mxu0 %v4630
    %5305 = vmatprep.subr.bf16.mxu0 %v4624
    %5306 = vmatpush1.bf16.msra.mxu0 %v4623
    %5307 = vmatprep.subr.bf16.mxu0 %v4617
    %5308 = vmatpush1.bf16.msra.mxu0 %v4616
    %5309 = vmatprep.subr.bf16.mxu0 %v4610
    %5310 = vmatpush1.bf16.msra.mxu0 %v4609
    %5311 = vmatprep.subr.bf16.mxu0 %v4603
    %5312 = vmatpush1.bf16.msra.mxu0 %v4602
    %5313 = vmatprep.subr.bf16.mxu0 %v4596
    %5314 = vmatpush1.bf16.msra.mxu0 %v4595
    %5315 = vmatprep.subr.bf16.mxu0 %v4701
    %5316 = vmatpush2.bf16.msra.mxu0 %v4700
    %5317 = vmatprep.subr.bf16.mxu0 %v4694
    %5318 = vmatpush2.bf16.msra.mxu0 %v4693
    %5319 = vmatprep.subr.bf16.mxu0 %v4687
    %5320 = vmatpush2.bf16.msra.mxu0 %v4686
    %5321 = vmatprep.subr.bf16.mxu0 %v4680
    %5322 = vmatpush2.bf16.msra.mxu0 %v4679
    %5323 = vmatprep.subr.bf16.mxu0 %v4673
    %5324 = vmatpush2.bf16.msra.mxu0 %v4672
    %5325 = vmatprep.subr.bf16.mxu0 %v4666
    %5326 = vmatpush2.bf16.msra.mxu0 %v4665
    %5327 = vmatprep.subr.bf16.mxu0 %v4659
    %5328 = vmatpush2.bf16.msra.mxu0 %v4658
    %5329 = vmatprep.subr.bf16.mxu0 %v4652
    %5330 = vmatpush2.bf16.msra.mxu0 %v4651
    %5331 = vmatprep.mubr.bf16.mxu0 %v3052
    %5332 = vmatmul.mubr.bf16.gmra.mxu0 %v3051
    %v5333 = vpop.f32.mrf.mxu0
    %v5334 = vadd.f32 %v3463, %v5333
    %v5335 = vpop.f32.mrf.mxu0
    %v5336 = vadd.f32 %v3467, %v5335
    %v5337 = vpop.f32.mrf.mxu0
    %v5338 = vadd.f32 %v3463, %v5337
    %v5339 = vpop.f32.mrf.mxu0
    %v5340 = vadd.f32 %v3467, %v5339
    %5341 = vdwg.mxu0
    %5342 = vmatprep.subr.bf16.mxu0 %v4757
    %5343 = vmatpush1.bf16.msra.mxu0 %v4756
    %5344 = vmatprep.subr.bf16.mxu0 %v4750
    %5345 = vmatpush1.bf16.msra.mxu0 %v4749
    %5346 = vmatprep.subr.bf16.mxu0 %v4743
    %5347 = vmatpush1.bf16.msra.mxu0 %v4742
    %5348 = vmatprep.subr.bf16.mxu0 %v4736
    %5349 = vmatpush1.bf16.msra.mxu0 %v4735
    %5350 = vmatprep.subr.bf16.mxu0 %v4729
    %5351 = vmatpush1.bf16.msra.mxu0 %v4728
    %5352 = vmatprep.subr.bf16.mxu0 %v4722
    %5353 = vmatpush1.bf16.msra.mxu0 %v4721
    %5354 = vmatprep.subr.bf16.mxu0 %v4715
    %5355 = vmatpush1.bf16.msra.mxu0 %v4714
    %5356 = vmatprep.subr.bf16.mxu0 %v4708
    %5357 = vmatpush1.bf16.msra.mxu0 %v4707
    %5358 = vmatprep.subr.bf16.mxu0 %v4813
    %5359 = vmatpush2.bf16.msra.mxu0 %v4812
    %5360 = vmatprep.subr.bf16.mxu0 %v4806
    %5361 = vmatpush2.bf16.msra.mxu0 %v4805
    %5362 = vmatprep.subr.bf16.mxu0 %v4799
    %5363 = vmatpush2.bf16.msra.mxu0 %v4798
    %5364 = vmatprep.subr.bf16.mxu0 %v4792
    %5365 = vmatpush2.bf16.msra.mxu0 %v4791
    %5366 = vmatprep.subr.bf16.mxu0 %v4785
    %5367 = vmatpush2.bf16.msra.mxu0 %v4784
    %5368 = vmatprep.subr.bf16.mxu0 %v4778
    %5369 = vmatpush2.bf16.msra.mxu0 %v4777
    %5370 = vmatprep.subr.bf16.mxu0 %v4771
    %5371 = vmatpush2.bf16.msra.mxu0 %v4770
    %5372 = vmatprep.subr.bf16.mxu0 %v4764
    %5373 = vmatpush2.bf16.msra.mxu0 %v4763
    %5374 = vmatprep.mubr.bf16.mxu0 %v3054
    %5375 = vmatmul.mubr.bf16.gmra.mxu0 %v3053
    %v5376 = vpop.f32.mrf.mxu0
    %v5377 = vadd.f32 %v5334, %v5376
    %v5378 = vpop.f32.mrf.mxu0
    %v5379 = vadd.f32 %v5336, %v5378
    %v5380 = vpop.f32.mrf.mxu0
    %v5381 = vadd.f32 %v5338, %v5380
    %v5382 = vpop.f32.mrf.mxu0
    %v5383 = vadd.f32 %v5340, %v5382
    %5384 = vdwg.mxu0
    %5385 = vmatprep.subr.bf16.mxu0 %v4869
    %5386 = vmatpush1.bf16.msra.mxu0 %v4868
    %5387 = vmatprep.subr.bf16.mxu0 %v4862
    %5388 = vmatpush1.bf16.msra.mxu0 %v4861
    %5389 = vmatprep.subr.bf16.mxu0 %v4855
    %5390 = vmatpush1.bf16.msra.mxu0 %v4854
    %5391 = vmatprep.subr.bf16.mxu0 %v4848
    %5392 = vmatpush1.bf16.msra.mxu0 %v4847
    %5393 = vmatprep.subr.bf16.mxu0 %v4841
    %5394 = vmatpush1.bf16.msra.mxu0 %v4840
    %5395 = vmatprep.subr.bf16.mxu0 %v4834
    %5396 = vmatpush1.bf16.msra.mxu0 %v4833
    %5397 = vmatprep.subr.bf16.mxu0 %v4827
    %5398 = vmatpush1.bf16.msra.mxu0 %v4826
    %5399 = vmatprep.subr.bf16.mxu0 %v4820
    %5400 = vmatpush1.bf16.msra.mxu0 %v4819
    %5401 = vmatprep.subr.bf16.mxu0 %v4925
    %5402 = vmatpush2.bf16.msra.mxu0 %v4924
    %5403 = vmatprep.subr.bf16.mxu0 %v4918
    %5404 = vmatpush2.bf16.msra.mxu0 %v4917
    %5405 = vmatprep.subr.bf16.mxu0 %v4911
    %5406 = vmatpush2.bf16.msra.mxu0 %v4910
    %5407 = vmatprep.subr.bf16.mxu0 %v4904
    %5408 = vmatpush2.bf16.msra.mxu0 %v4903
    %5409 = vmatprep.subr.bf16.mxu0 %v4897
    %5410 = vmatpush2.bf16.msra.mxu0 %v4896
    %5411 = vmatprep.subr.bf16.mxu0 %v4890
    %5412 = vmatpush2.bf16.msra.mxu0 %v4889
    %5413 = vmatprep.subr.bf16.mxu0 %v4883
    %5414 = vmatpush2.bf16.msra.mxu0 %v4882
    %5415 = vmatprep.subr.bf16.mxu0 %v4876
    %5416 = vmatpush2.bf16.msra.mxu0 %v4875
    %5417 = vmatprep.mubr.bf16.mxu0 %v3056
    %5418 = vmatmul.mubr.bf16.gmra.mxu0 %v3055
    %v5419 = vpop.f32.mrf.mxu0
    %v5420 = vadd.f32 %v5377, %v5419
    %v5421 = vpop.f32.mrf.mxu0
    %v5422 = vadd.f32 %v5379, %v5421
    %v5423 = vpop.f32.mrf.mxu0
    %v5424 = vadd.f32 %v5381, %v5423
    %v5425 = vpop.f32.mrf.mxu0
    %v5426 = vadd.f32 %v5383, %v5425
    %5427 = vdwg.mxu0
    %5428 = vmatprep.subr.bf16.mxu0 0
    %5429 = vmatpush1.bf16.msra.mxu0 0
    %5430 = vmatprep.subr.bf16.mxu0 0
    %5431 = vmatpush1.bf16.msra.mxu0 0
    %5432 = vmatprep.subr.bf16.mxu0 0
    %5433 = vmatpush1.bf16.msra.mxu0 0
    %5434 = vmatprep.subr.bf16.mxu0 0
    %5435 = vmatpush1.bf16.msra.mxu0 0
    %5436 = vmatprep.subr.bf16.mxu0 0
    %5437 = vmatpush1.bf16.msra.mxu0 0
    %5438 = vmatprep.subr.bf16.mxu0 0
    %5439 = vmatpush1.bf16.msra.mxu0 0
    %5440 = vmatprep.subr.bf16.mxu0 %v4939
    %5441 = vmatpush1.bf16.msra.mxu0 %v4938
    %5442 = vmatprep.subr.bf16.mxu0 %v4932
    %5443 = vmatpush1.bf16.msra.mxu0 %v4931
    %5444 = vmatprep.subr.bf16.mxu0 0
    %5445 = vmatpush2.bf16.msra.mxu0 0
    %5446 = vmatprep.subr.bf16.mxu0 0
    %5447 = vmatpush2.bf16.msra.mxu0 0
    %5448 = vmatprep.subr.bf16.mxu0 0
    %5449 = vmatpush2.bf16.msra.mxu0 0
    %5450 = vmatprep.subr.bf16.mxu0 0
    %5451 = vmatpush2.bf16.msra.mxu0 0
    %5452 = vmatprep.subr.bf16.mxu0 0
    %5453 = vmatpush2.bf16.msra.mxu0 0
    %5454 = vmatprep.subr.bf16.mxu0 0
    %5455 = vmatpush2.bf16.msra.mxu0 0
    %5456 = vmatprep.subr.bf16.mxu0 0
    %5457 = vmatpush2.bf16.msra.mxu0 0
    %5458 = vmatprep.subr.bf16.mxu0 0
    %5459 = vmatpush2.bf16.msra.mxu0 0
    %5460 = vmatprep.mubr.bf16.mxu0 0
    %5461 = vmatmul.mubr.bf16.gmra.mxu0 %v5297
    %v5462 = vpop.f32.mrf.mxu0
    %v5463 = vadd.f32 %v5420, %v5462
    %v5464 = vpop.f32.mrf.mxu0
    %v5465 = vadd.f32 %v5422, %v5464
    %v5466 = vpop.f32.mrf.mxu0
    %v5467 = vadd.f32 %v5424, %v5466
    %v5468 = vpop.f32.mrf.mxu0
    %v5469 = vadd.f32 %v5426, %v5468
    %5470 = vdwg.mxu0
    %5471 = vmatprep.subr.bf16.mxu0 %v4647
    %5472 = vmatpush1.bf16.msra.mxu0 %v4646
    %5473 = vmatprep.subr.bf16.mxu0 %v4640
    %5474 = vmatpush1.bf16.msra.mxu0 %v4639
    %5475 = vmatprep.subr.bf16.mxu0 %v4633
    %5476 = vmatpush1.bf16.msra.mxu0 %v4632
    %5477 = vmatprep.subr.bf16.mxu0 %v4626
    %5478 = vmatpush1.bf16.msra.mxu0 %v4625
    %5479 = vmatprep.subr.bf16.mxu0 %v4619
    %5480 = vmatpush1.bf16.msra.mxu0 %v4618
    %5481 = vmatprep.subr.bf16.mxu0 %v4612
    %5482 = vmatpush1.bf16.msra.mxu0 %v4611
    %5483 = vmatprep.subr.bf16.mxu0 %v4605
    %5484 = vmatpush1.bf16.msra.mxu0 %v4604
    %5485 = vmatprep.subr.bf16.mxu0 %v4598
    %5486 = vmatpush1.bf16.msra.mxu0 %v4597
    %5487 = vmatprep.subr.bf16.mxu0 %v4703
    %5488 = vmatpush2.bf16.msra.mxu0 %v4702
    %5489 = vmatprep.subr.bf16.mxu0 %v4696
    %5490 = vmatpush2.bf16.msra.mxu0 %v4695
    %5491 = vmatprep.subr.bf16.mxu0 %v4689
    %5492 = vmatpush2.bf16.msra.mxu0 %v4688
    %5493 = vmatprep.subr.bf16.mxu0 %v4682
    %5494 = vmatpush2.bf16.msra.mxu0 %v4681
    %5495 = vmatprep.subr.bf16.mxu0 %v4675
    %5496 = vmatpush2.bf16.msra.mxu0 %v4674
    %5497 = vmatprep.subr.bf16.mxu0 %v4668
    %5498 = vmatpush2.bf16.msra.mxu0 %v4667
    %5499 = vmatprep.subr.bf16.mxu0 %v4661
    %5500 = vmatpush2.bf16.msra.mxu0 %v4660
    %5501 = vmatprep.subr.bf16.mxu0 %v4654
    %5502 = vmatpush2.bf16.msra.mxu0 %v4653
    %5503 = vmatprep.mubr.bf16.mxu0 %v3052
    %5504 = vmatmul.mubr.bf16.gmra.mxu0 %v3051
    %v5505 = vpop.f32.mrf.mxu0
    %v5506 = vadd.f32 %v3471, %v5505
    %v5507 = vpop.f32.mrf.mxu0
    %v5508 = vadd.f32 %v3475, %v5507
    %v5509 = vpop.f32.mrf.mxu0
    %v5510 = vadd.f32 %v3471, %v5509
    %v5511 = vpop.f32.mrf.mxu0
    %v5512 = vadd.f32 %v3475, %v5511
    %5513 = vdwg.mxu0
    %5514 = vmatprep.subr.bf16.mxu0 %v4759
    %5515 = vmatpush1.bf16.msra.mxu0 %v4758
    %5516 = vmatprep.subr.bf16.mxu0 %v4752
    %5517 = vmatpush1.bf16.msra.mxu0 %v4751
    %5518 = vmatprep.subr.bf16.mxu0 %v4745
    %5519 = vmatpush1.bf16.msra.mxu0 %v4744
    %5520 = vmatprep.subr.bf16.mxu0 %v4738
    %5521 = vmatpush1.bf16.msra.mxu0 %v4737
    %5522 = vmatprep.subr.bf16.mxu0 %v4731
    %5523 = vmatpush1.bf16.msra.mxu0 %v4730
    %5524 = vmatprep.subr.bf16.mxu0 %v4724
    %5525 = vmatpush1.bf16.msra.mxu0 %v4723
    %5526 = vmatprep.subr.bf16.mxu0 %v4717
    %5527 = vmatpush1.bf16.msra.mxu0 %v4716
    %5528 = vmatprep.subr.bf16.mxu0 %v4710
    %5529 = vmatpush1.bf16.msra.mxu0 %v4709
    %5530 = vmatprep.subr.bf16.mxu0 %v4815
    %5531 = vmatpush2.bf16.msra.mxu0 %v4814
    %5532 = vmatprep.subr.bf16.mxu0 %v4808
    %5533 = vmatpush2.bf16.msra.mxu0 %v4807
    %5534 = vmatprep.subr.bf16.mxu0 %v4801
    %5535 = vmatpush2.bf16.msra.mxu0 %v4800
    %5536 = vmatprep.subr.bf16.mxu0 %v4794
    %5537 = vmatpush2.bf16.msra.mxu0 %v4793
    %5538 = vmatprep.subr.bf16.mxu0 %v4787
    %5539 = vmatpush2.bf16.msra.mxu0 %v4786
    %5540 = vmatprep.subr.bf16.mxu0 %v4780
    %5541 = vmatpush2.bf16.msra.mxu0 %v4779
    %5542 = vmatprep.subr.bf16.mxu0 %v4773
    %5543 = vmatpush2.bf16.msra.mxu0 %v4772
    %5544 = vmatprep.subr.bf16.mxu0 %v4766
    %5545 = vmatpush2.bf16.msra.mxu0 %v4765
    %5546 = vmatprep.mubr.bf16.mxu0 %v3054
    %5547 = vmatmul.mubr.bf16.gmra.mxu0 %v3053
    %v5548 = vpop.f32.mrf.mxu0
    %v5549 = vadd.f32 %v5506, %v5548
    %v5550 = vpop.f32.mrf.mxu0
    %v5551 = vadd.f32 %v5508, %v5550
    %v5552 = vpop.f32.mrf.mxu0
    %v5553 = vadd.f32 %v5510, %v5552
    %v5554 = vpop.f32.mrf.mxu0
    %v5555 = vadd.f32 %v5512, %v5554
    %5556 = vdwg.mxu0
    %5557 = vmatprep.subr.bf16.mxu0 %v4871
    %5558 = vmatpush1.bf16.msra.mxu0 %v4870
    %5559 = vmatprep.subr.bf16.mxu0 %v4864
    %5560 = vmatpush1.bf16.msra.mxu0 %v4863
    %5561 = vmatprep.subr.bf16.mxu0 %v4857
    %5562 = vmatpush1.bf16.msra.mxu0 %v4856
    %5563 = vmatprep.subr.bf16.mxu0 %v4850
    %5564 = vmatpush1.bf16.msra.mxu0 %v4849
    %5565 = vmatprep.subr.bf16.mxu0 %v4843
    %5566 = vmatpush1.bf16.msra.mxu0 %v4842
    %5567 = vmatprep.subr.bf16.mxu0 %v4836
    %5568 = vmatpush1.bf16.msra.mxu0 %v4835
    %5569 = vmatprep.subr.bf16.mxu0 %v4829
    %5570 = vmatpush1.bf16.msra.mxu0 %v4828
    %5571 = vmatprep.subr.bf16.mxu0 %v4822
    %5572 = vmatpush1.bf16.msra.mxu0 %v4821
    %5573 = vmatprep.subr.bf16.mxu0 %v4927
    %5574 = vmatpush2.bf16.msra.mxu0 %v4926
    %5575 = vmatprep.subr.bf16.mxu0 %v4920
    %5576 = vmatpush2.bf16.msra.mxu0 %v4919
    %5577 = vmatprep.subr.bf16.mxu0 %v4913
    %5578 = vmatpush2.bf16.msra.mxu0 %v4912
    %5579 = vmatprep.subr.bf16.mxu0 %v4906
    %5580 = vmatpush2.bf16.msra.mxu0 %v4905
    %5581 = vmatprep.subr.bf16.mxu0 %v4899
    %5582 = vmatpush2.bf16.msra.mxu0 %v4898
    %5583 = vmatprep.subr.bf16.mxu0 %v4892
    %5584 = vmatpush2.bf16.msra.mxu0 %v4891
    %5585 = vmatprep.subr.bf16.mxu0 %v4885
    %5586 = vmatpush2.bf16.msra.mxu0 %v4884
    %5587 = vmatprep.subr.bf16.mxu0 %v4878
    %5588 = vmatpush2.bf16.msra.mxu0 %v4877
    %5589 = vmatprep.mubr.bf16.mxu0 %v3056
    %5590 = vmatmul.mubr.bf16.gmra.mxu0 %v3055
    %v5591 = vpop.f32.mrf.mxu0
    %v5592 = vadd.f32 %v5549, %v5591
    %v5593 = vpop.f32.mrf.mxu0
    %v5594 = vadd.f32 %v5551, %v5593
    %v5595 = vpop.f32.mrf.mxu0
    %v5596 = vadd.f32 %v5553, %v5595
    %v5597 = vpop.f32.mrf.mxu0
    %v5598 = vadd.f32 %v5555, %v5597
    %5599 = vdwg.mxu0
    %5600 = vmatprep.subr.bf16.mxu0 0
    %5601 = vmatpush1.bf16.msra.mxu0 0
    %5602 = vmatprep.subr.bf16.mxu0 0
    %5603 = vmatpush1.bf16.msra.mxu0 0
    %5604 = vmatprep.subr.bf16.mxu0 0
    %5605 = vmatpush1.bf16.msra.mxu0 0
    %5606 = vmatprep.subr.bf16.mxu0 0
    %5607 = vmatpush1.bf16.msra.mxu0 0
    %5608 = vmatprep.subr.bf16.mxu0 0
    %5609 = vmatpush1.bf16.msra.mxu0 0
    %5610 = vmatprep.subr.bf16.mxu0 0
    %5611 = vmatpush1.bf16.msra.mxu0 0
    %5612 = vmatprep.subr.bf16.mxu0 %v4941
    %5613 = vmatpush1.bf16.msra.mxu0 %v4940
    %5614 = vmatprep.subr.bf16.mxu0 %v4934
    %5615 = vmatpush1.bf16.msra.mxu0 %v4933
    %5616 = vmatprep.subr.bf16.mxu0 0
    %5617 = vmatpush2.bf16.msra.mxu0 0
    %5618 = vmatprep.subr.bf16.mxu0 0
    %5619 = vmatpush2.bf16.msra.mxu0 0
    %5620 = vmatprep.subr.bf16.mxu0 0
    %5621 = vmatpush2.bf16.msra.mxu0 0
    %5622 = vmatprep.subr.bf16.mxu0 0
    %5623 = vmatpush2.bf16.msra.mxu0 0
    %5624 = vmatprep.subr.bf16.mxu0 0
    %5625 = vmatpush2.bf16.msra.mxu0 0
    %5626 = vmatprep.subr.bf16.mxu0 0
    %5627 = vmatpush2.bf16.msra.mxu0 0
    %5628 = vmatprep.subr.bf16.mxu0 0
    %5629 = vmatpush2.bf16.msra.mxu0 0
    %5630 = vmatprep.subr.bf16.mxu0 0
    %5631 = vmatpush2.bf16.msra.mxu0 0
    %5632 = vmatprep.mubr.bf16.mxu0 0
    %5633 = vmatmul.mubr.bf16.gmra.mxu0 %v5297
    %v5634 = vpop.f32.mrf.mxu0
    %v5635 = vadd.f32 %v5592, %v5634
    %v5636 = vpop.f32.mrf.mxu0
    %v5637 = vadd.f32 %v5594, %v5636
    %v5638 = vpop.f32.mrf.mxu0
    %v5639 = vadd.f32 %v5596, %v5638
    %v5640 = vpop.f32.mrf.mxu0
    %v5641 = vadd.f32 %v5598, %v5640
    %5642 = vdwg.mxu0
    %5643 = vmatprep.subr.bf16.mxu0 %v4649
    %5644 = vmatpush1.bf16.msra.mxu0 %v4648
    %5645 = vmatprep.subr.bf16.mxu0 %v4642
    %5646 = vmatpush1.bf16.msra.mxu0 %v4641
    %5647 = vmatprep.subr.bf16.mxu0 %v4635
    %5648 = vmatpush1.bf16.msra.mxu0 %v4634
    %5649 = vmatprep.subr.bf16.mxu0 %v4628
    %5650 = vmatpush1.bf16.msra.mxu0 %v4627
    %5651 = vmatprep.subr.bf16.mxu0 %v4621
    %5652 = vmatpush1.bf16.msra.mxu0 %v4620
    %5653 = vmatprep.subr.bf16.mxu0 %v4614
    %5654 = vmatpush1.bf16.msra.mxu0 %v4613
    %5655 = vmatprep.subr.bf16.mxu0 %v4607
    %5656 = vmatpush1.bf16.msra.mxu0 %v4606
    %5657 = vmatprep.subr.bf16.mxu0 %v4600
    %5658 = vmatpush1.bf16.msra.mxu0 %v4599
    %5659 = vmatprep.subr.bf16.mxu0 %v4705
    %5660 = vmatpush2.bf16.msra.mxu0 %v4704
    %5661 = vmatprep.subr.bf16.mxu0 %v4698
    %5662 = vmatpush2.bf16.msra.mxu0 %v4697
    %5663 = vmatprep.subr.bf16.mxu0 %v4691
    %5664 = vmatpush2.bf16.msra.mxu0 %v4690
    %5665 = vmatprep.subr.bf16.mxu0 %v4684
    %5666 = vmatpush2.bf16.msra.mxu0 %v4683
    %5667 = vmatprep.subr.bf16.mxu0 %v4677
    %5668 = vmatpush2.bf16.msra.mxu0 %v4676
    %5669 = vmatprep.subr.bf16.mxu0 %v4670
    %5670 = vmatpush2.bf16.msra.mxu0 %v4669
    %5671 = vmatprep.subr.bf16.mxu0 %v4663
    %5672 = vmatpush2.bf16.msra.mxu0 %v4662
    %5673 = vmatprep.subr.bf16.mxu0 %v4656
    %5674 = vmatpush2.bf16.msra.mxu0 %v4655
    %5675 = vmatprep.mubr.bf16.mxu0 %v3052
    %5676 = vmatmul.mubr.bf16.gmra.mxu0 %v3051
    %v5677 = vpop.f32.mrf.mxu0
    %v5678 = vadd.f32 %v3479, %v5677
    %v5679 = vpop.f32.mrf.mxu0
    %v5680 = vadd.f32 %v3483, %v5679
    %v5681 = vpop.f32.mrf.mxu0
    %v5682 = vadd.f32 %v3479, %v5681
    %v5683 = vpop.f32.mrf.mxu0
    %v5684 = vadd.f32 %v3483, %v5683
    %5685 = vdwg.mxu0
    %5686 = vmatprep.subr.bf16.mxu0 %v4761
    %5687 = vmatpush1.bf16.msra.mxu0 %v4760
    %5688 = vmatprep.subr.bf16.mxu0 %v4754
    %5689 = vmatpush1.bf16.msra.mxu0 %v4753
    %5690 = vmatprep.subr.bf16.mxu0 %v4747
    %5691 = vmatpush1.bf16.msra.mxu0 %v4746
    %5692 = vmatprep.subr.bf16.mxu0 %v4740
    %5693 = vmatpush1.bf16.msra.mxu0 %v4739
    %5694 = vmatprep.subr.bf16.mxu0 %v4733
    %5695 = vmatpush1.bf16.msra.mxu0 %v4732
    %5696 = vmatprep.subr.bf16.mxu0 %v4726
    %5697 = vmatpush1.bf16.msra.mxu0 %v4725
    %5698 = vmatprep.subr.bf16.mxu0 %v4719
    %5699 = vmatpush1.bf16.msra.mxu0 %v4718
    %5700 = vmatprep.subr.bf16.mxu0 %v4712
    %5701 = vmatpush1.bf16.msra.mxu0 %v4711
    %5702 = vmatprep.subr.bf16.mxu0 %v4817
    %5703 = vmatpush2.bf16.msra.mxu0 %v4816
    %5704 = vmatprep.subr.bf16.mxu0 %v4810
    %5705 = vmatpush2.bf16.msra.mxu0 %v4809
    %5706 = vmatprep.subr.bf16.mxu0 %v4803
    %5707 = vmatpush2.bf16.msra.mxu0 %v4802
    %5708 = vmatprep.subr.bf16.mxu0 %v4796
    %5709 = vmatpush2.bf16.msra.mxu0 %v4795
    %5710 = vmatprep.subr.bf16.mxu0 %v4789
    %5711 = vmatpush2.bf16.msra.mxu0 %v4788
    %5712 = vmatprep.subr.bf16.mxu0 %v4782
    %5713 = vmatpush2.bf16.msra.mxu0 %v4781
    %5714 = vmatprep.subr.bf16.mxu0 %v4775
    %5715 = vmatpush2.bf16.msra.mxu0 %v4774
    %5716 = vmatprep.subr.bf16.mxu0 %v4768
    %5717 = vmatpush2.bf16.msra.mxu0 %v4767
    %5718 = vmatprep.mubr.bf16.mxu0 %v3054
    %5719 = vmatmul.mubr.bf16.gmra.mxu0 %v3053
    %v5720 = vpop.f32.mrf.mxu0
    %v5721 = vadd.f32 %v5678, %v5720
    %v5722 = vpop.f32.mrf.mxu0
    %v5723 = vadd.f32 %v5680, %v5722
    %v5724 = vpop.f32.mrf.mxu0
    %v5725 = vadd.f32 %v5682, %v5724
    %v5726 = vpop.f32.mrf.mxu0
    %v5727 = vadd.f32 %v5684, %v5726
    %5728 = vdwg.mxu0
    %5729 = vmatprep.subr.bf16.mxu0 %v4873
    %5730 = vmatpush1.bf16.msra.mxu0 %v4872
    %5731 = vmatprep.subr.bf16.mxu0 %v4866
    %5732 = vmatpush1.bf16.msra.mxu0 %v4865
    %5733 = vmatprep.subr.bf16.mxu0 %v4859
    %5734 = vmatpush1.bf16.msra.mxu0 %v4858
    %5735 = vmatprep.subr.bf16.mxu0 %v4852
    %5736 = vmatpush1.bf16.msra.mxu0 %v4851
    %5737 = vmatprep.subr.bf16.mxu0 %v4845
    %5738 = vmatpush1.bf16.msra.mxu0 %v4844
    %5739 = vmatprep.subr.bf16.mxu0 %v4838
    %5740 = vmatpush1.bf16.msra.mxu0 %v4837
    %5741 = vmatprep.subr.bf16.mxu0 %v4831
    %5742 = vmatpush1.bf16.msra.mxu0 %v4830
    %5743 = vmatprep.subr.bf16.mxu0 %v4824
    %5744 = vmatpush1.bf16.msra.mxu0 %v4823
    %5745 = vmatprep.subr.bf16.mxu0 %v4929
    %5746 = vmatpush2.bf16.msra.mxu0 %v4928
    %5747 = vmatprep.subr.bf16.mxu0 %v4922
    %5748 = vmatpush2.bf16.msra.mxu0 %v4921
    %5749 = vmatprep.subr.bf16.mxu0 %v4915
    %5750 = vmatpush2.bf16.msra.mxu0 %v4914
    %5751 = vmatprep.subr.bf16.mxu0 %v4908
    %5752 = vmatpush2.bf16.msra.mxu0 %v4907
    %5753 = vmatprep.subr.bf16.mxu0 %v4901
    %5754 = vmatpush2.bf16.msra.mxu0 %v4900
    %5755 = vmatprep.subr.bf16.mxu0 %v4894
    %5756 = vmatpush2.bf16.msra.mxu0 %v4893
    %5757 = vmatprep.subr.bf16.mxu0 %v4887
    %5758 = vmatpush2.bf16.msra.mxu0 %v4886
    %5759 = vmatprep.subr.bf16.mxu0 %v4880
    %5760 = vmatpush2.bf16.msra.mxu0 %v4879
    %5761 = vmatprep.mubr.bf16.mxu0 %v3056
    %5762 = vmatmul.mubr.bf16.gmra.mxu0 %v3055
    %v5763 = vpop.f32.mrf.mxu0
    %v5764 = vadd.f32 %v5721, %v5763
    %v5765 = vpop.f32.mrf.mxu0
    %v5766 = vadd.f32 %v5723, %v5765
    %v5767 = vpop.f32.mrf.mxu0
    %v5768 = vadd.f32 %v5725, %v5767
    %v5769 = vpop.f32.mrf.mxu0
    %v5770 = vadd.f32 %v5727, %v5769
    %5771 = vdwg.mxu0
    %5772 = vmatprep.subr.bf16.mxu0 0
    %5773 = vmatpush1.bf16.msra.mxu0 0
    %5774 = vmatprep.subr.bf16.mxu0 0
    %5775 = vmatpush1.bf16.msra.mxu0 0
    %5776 = vmatprep.subr.bf16.mxu0 0
    %5777 = vmatpush1.bf16.msra.mxu0 0
    %5778 = vmatprep.subr.bf16.mxu0 0
    %5779 = vmatpush1.bf16.msra.mxu0 0
    %5780 = vmatprep.subr.bf16.mxu0 0
    %5781 = vmatpush1.bf16.msra.mxu0 0
    %5782 = vmatprep.subr.bf16.mxu0 0
    %5783 = vmatpush1.bf16.msra.mxu0 0
    %5784 = vmatprep.subr.bf16.mxu0 %v4943
    %5785 = vmatpush1.bf16.msra.mxu0 %v4942
    %5786 = vmatprep.subr.bf16.mxu0 %v4936
    %5787 = vmatpush1.bf16.msra.mxu0 %v4935
    %5788 = vmatprep.subr.bf16.mxu0 0
    %5789 = vmatpush2.bf16.msra.mxu0 0
    %5790 = vmatprep.subr.bf16.mxu0 0
    %5791 = vmatpush2.bf16.msra.mxu0 0
    %5792 = vmatprep.subr.bf16.mxu0 0
    %5793 = vmatpush2.bf16.msra.mxu0 0
    %5794 = vmatprep.subr.bf16.mxu0 0
    %5795 = vmatpush2.bf16.msra.mxu0 0
    %5796 = vmatprep.subr.bf16.mxu0 0
    %5797 = vmatpush2.bf16.msra.mxu0 0
    %5798 = vmatprep.subr.bf16.mxu0 0
    %5799 = vmatpush2.bf16.msra.mxu0 0
    %5800 = vmatprep.subr.bf16.mxu0 0
    %5801 = vmatpush2.bf16.msra.mxu0 0
    %5802 = vmatprep.subr.bf16.mxu0 0
    %5803 = vmatpush2.bf16.msra.mxu0 0
    %5804 = vmatprep.mubr.bf16.mxu0 0
    %5805 = vmatmul.mubr.bf16.gmra.mxu0 %v5297
    %v5806 = vpop.f32.mrf.mxu0
    %v5807 = vadd.f32 %v5764, %v5806
    %v5808 = vpop.f32.mrf.mxu0
    %v5809 = vadd.f32 %v5766, %v5808
    %v5810 = vpop.f32.mrf.mxu0
    %v5811 = vadd.f32 %v5768, %v5810
    %v5812 = vpop.f32.mrf.mxu0
    %v5813 = vadd.f32 %v5770, %v5812
    %5814 = vdwg.mxu0
    %5815 = vmatprep.subr.bf16.mxu0 0
    %5816 = vmatpush1.bf16.msra.mxu0 %v4650
    %5817 = vmatprep.subr.bf16.mxu0 0
    %5818 = vmatpush1.bf16.msra.mxu0 %v4643
    %5819 = vmatprep.subr.bf16.mxu0 0
    %5820 = vmatpush1.bf16.msra.mxu0 %v4636
    %5821 = vmatprep.subr.bf16.mxu0 0
    %5822 = vmatpush1.bf16.msra.mxu0 %v4629
    %5823 = vmatprep.subr.bf16.mxu0 0
    %5824 = vmatpush1.bf16.msra.mxu0 %v4622
    %5825 = vmatprep.subr.bf16.mxu0 0
    %5826 = vmatpush1.bf16.msra.mxu0 %v4615
    %5827 = vmatprep.subr.bf16.mxu0 0
    %5828 = vmatpush1.bf16.msra.mxu0 %v4608
    %5829 = vmatprep.subr.bf16.mxu0 0
    %5830 = vmatpush1.bf16.msra.mxu0 %v4601
    %5831 = vmatprep.subr.bf16.mxu0 0
    %5832 = vmatpush2.bf16.msra.mxu0 %v4706
    %5833 = vmatprep.subr.bf16.mxu0 0
    %5834 = vmatpush2.bf16.msra.mxu0 %v4699
    %5835 = vmatprep.subr.bf16.mxu0 0
    %5836 = vmatpush2.bf16.msra.mxu0 %v4692
    %5837 = vmatprep.subr.bf16.mxu0 0
    %5838 = vmatpush2.bf16.msra.mxu0 %v4685
    %5839 = vmatprep.subr.bf16.mxu0 0
    %5840 = vmatpush2.bf16.msra.mxu0 %v4678
    %5841 = vmatprep.subr.bf16.mxu0 0
    %5842 = vmatpush2.bf16.msra.mxu0 %v4671
    %5843 = vmatprep.subr.bf16.mxu0 0
    %5844 = vmatpush2.bf16.msra.mxu0 %v4664
    %5845 = vmatprep.subr.bf16.mxu0 0
    %5846 = vmatpush2.bf16.msra.mxu0 %v4657
    %5847 = vmatprep.mubr.bf16.mxu0 %v3052
    %5848 = vmatmul.mubr.bf16.gmra.mxu0 %v3051
    %v5849 = vpop.f32.mrf.mxu0
    %v5850 = vadd.f32 %v3487, %v5849
    %v5851 = vpop.f32.mrf.mxu0
    %v5852 = vpop.f32.mrf.mxu0
    %v5853 = vadd.f32 %v3487, %v5852
    %v5854 = vpop.f32.mrf.mxu0
    %5855 = vdwg.mxu0
    %5856 = vmatprep.subr.bf16.mxu0 0
    %5857 = vmatpush1.bf16.msra.mxu0 %v4762
    %5858 = vmatprep.subr.bf16.mxu0 0
    %5859 = vmatpush1.bf16.msra.mxu0 %v4755
    %5860 = vmatprep.subr.bf16.mxu0 0
    %5861 = vmatpush1.bf16.msra.mxu0 %v4748
    %5862 = vmatprep.subr.bf16.mxu0 0
    %5863 = vmatpush1.bf16.msra.mxu0 %v4741
    %5864 = vmatprep.subr.bf16.mxu0 0
    %5865 = vmatpush1.bf16.msra.mxu0 %v4734
    %5866 = vmatprep.subr.bf16.mxu0 0
    %5867 = vmatpush1.bf16.msra.mxu0 %v4727
    %5868 = vmatprep.subr.bf16.mxu0 0
    %5869 = vmatpush1.bf16.msra.mxu0 %v4720
    %5870 = vmatprep.subr.bf16.mxu0 0
    %5871 = vmatpush1.bf16.msra.mxu0 %v4713
    %5872 = vmatprep.subr.bf16.mxu0 0
    %5873 = vmatpush2.bf16.msra.mxu0 %v4818
    %5874 = vmatprep.subr.bf16.mxu0 0
    %5875 = vmatpush2.bf16.msra.mxu0 %v4811
    %5876 = vmatprep.subr.bf16.mxu0 0
    %5877 = vmatpush2.bf16.msra.mxu0 %v4804
    %5878 = vmatprep.subr.bf16.mxu0 0
    %5879 = vmatpush2.bf16.msra.mxu0 %v4797
    %5880 = vmatprep.subr.bf16.mxu0 0
    %5881 = vmatpush2.bf16.msra.mxu0 %v4790
    %5882 = vmatprep.subr.bf16.mxu0 0
    %5883 = vmatpush2.bf16.msra.mxu0 %v4783
    %5884 = vmatprep.subr.bf16.mxu0 0
    %5885 = vmatpush2.bf16.msra.mxu0 %v4776
    %5886 = vmatprep.subr.bf16.mxu0 0
    %5887 = vmatpush2.bf16.msra.mxu0 %v4769
    %5888 = vmatprep.mubr.bf16.mxu0 %v3054
    %5889 = vmatmul.mubr.bf16.gmra.mxu0 %v3053
    %v5890 = vpop.f32.mrf.mxu0
    %v5891 = vadd.f32 %v5850, %v5890
    %v5892 = vpop.f32.mrf.mxu0
    %v5893 = vpop.f32.mrf.mxu0
    %v5894 = vadd.f32 %v5853, %v5893
    %v5895 = vpop.f32.mrf.mxu0
    %5896 = vdwg.mxu0
    %5897 = vmatprep.subr.bf16.mxu0 0
    %5898 = vmatpush1.bf16.msra.mxu0 %v4874
    %5899 = vmatprep.subr.bf16.mxu0 0
    %5900 = vmatpush1.bf16.msra.mxu0 %v4867
    %5901 = vmatprep.subr.bf16.mxu0 0
    %5902 = vmatpush1.bf16.msra.mxu0 %v4860
    %5903 = vmatprep.subr.bf16.mxu0 0
    %5904 = vmatpush1.bf16.msra.mxu0 %v4853
    %5905 = vmatprep.subr.bf16.mxu0 0
    %5906 = vmatpush1.bf16.msra.mxu0 %v4846
    %5907 = vmatprep.subr.bf16.mxu0 0
    %5908 = vmatpush1.bf16.msra.mxu0 %v4839
    %5909 = vmatprep.subr.bf16.mxu0 0
    %5910 = vmatpush1.bf16.msra.mxu0 %v4832
    %5911 = vmatprep.subr.bf16.mxu0 0
    %5912 = vmatpush1.bf16.msra.mxu0 %v4825
    %5913 = vmatprep.subr.bf16.mxu0 0
    %5914 = vmatpush2.bf16.msra.mxu0 %v4930
    %5915 = vmatprep.subr.bf16.mxu0 0
    %5916 = vmatpush2.bf16.msra.mxu0 %v4923
    %5917 = vmatprep.subr.bf16.mxu0 0
    %5918 = vmatpush2.bf16.msra.mxu0 %v4916
    %5919 = vmatprep.subr.bf16.mxu0 0
    %5920 = vmatpush2.bf16.msra.mxu0 %v4909
    %5921 = vmatprep.subr.bf16.mxu0 0
    %5922 = vmatpush2.bf16.msra.mxu0 %v4902
    %5923 = vmatprep.subr.bf16.mxu0 0
    %5924 = vmatpush2.bf16.msra.mxu0 %v4895
    %5925 = vmatprep.subr.bf16.mxu0 0
    %5926 = vmatpush2.bf16.msra.mxu0 %v4888
    %5927 = vmatprep.subr.bf16.mxu0 0
    %5928 = vmatpush2.bf16.msra.mxu0 %v4881
    %5929 = vmatprep.mubr.bf16.mxu0 %v3056
    %5930 = vmatmul.mubr.bf16.gmra.mxu0 %v3055
    %v5931 = vpop.f32.mrf.mxu0
    %v5932 = vadd.f32 %v5891, %v5931
    %v5933 = vpop.f32.mrf.mxu0
    %v5934 = vpop.f32.mrf.mxu0
    %v5935 = vadd.f32 %v5894, %v5934
    %v5936 = vpop.f32.mrf.mxu0
    %5937 = vdwg.mxu0
    %5938 = vmatprep.subr.bf16.mxu0 0
    %5939 = vmatpush1.bf16.msra.mxu0 0
    %5940 = vmatprep.subr.bf16.mxu0 0
    %5941 = vmatpush1.bf16.msra.mxu0 0
    %5942 = vmatprep.subr.bf16.mxu0 0
    %5943 = vmatpush1.bf16.msra.mxu0 0
    %5944 = vmatprep.subr.bf16.mxu0 0
    %5945 = vmatpush1.bf16.msra.mxu0 0
    %5946 = vmatprep.subr.bf16.mxu0 0
    %5947 = vmatpush1.bf16.msra.mxu0 0
    %5948 = vmatprep.subr.bf16.mxu0 0
    %5949 = vmatpush1.bf16.msra.mxu0 0
    %5950 = vmatprep.subr.bf16.mxu0 0
    %5951 = vmatpush1.bf16.msra.mxu0 %v4944
    %5952 = vmatprep.subr.bf16.mxu0 0
    %5953 = vmatpush1.bf16.msra.mxu0 %v4937
    %5954 = vmatprep.subr.bf16.mxu0 0
    %5955 = vmatpush2.bf16.msra.mxu0 0
    %5956 = vmatprep.subr.bf16.mxu0 0
    %5957 = vmatpush2.bf16.msra.mxu0 0
    %5958 = vmatprep.subr.bf16.mxu0 0
    %5959 = vmatpush2.bf16.msra.mxu0 0
    %5960 = vmatprep.subr.bf16.mxu0 0
    %5961 = vmatpush2.bf16.msra.mxu0 0
    %5962 = vmatprep.subr.bf16.mxu0 0
    %5963 = vmatpush2.bf16.msra.mxu0 0
    %5964 = vmatprep.subr.bf16.mxu0 0
    %5965 = vmatpush2.bf16.msra.mxu0 0
    %5966 = vmatprep.subr.bf16.mxu0 0
    %5967 = vmatpush2.bf16.msra.mxu0 0
    %5968 = vmatprep.subr.bf16.mxu0 0
    %5969 = vmatpush2.bf16.msra.mxu0 0
    %5970 = vmatprep.mubr.bf16.mxu0 0
    %5971 = vmatmul.mubr.bf16.gmra.mxu0 %v5297
    %v5972 = vpop.f32.mrf.mxu0
    %v5973 = vadd.f32 %v5932, %v5972
    %v5974 = vpop.f32.mrf.mxu0
    %v5975 = vpop.f32.mrf.mxu0
    %v5976 = vadd.f32 %v5935, %v5975
    %v5977 = vpop.f32.mrf.mxu0
    %5978 = vdwg.mxu0
    %v5979 = vmax.f32 %v5463, 0.0
    %v5980 = vmax.f32 %v5465, 0.0
    %v5981 = vmax.f32 %v5635, 0.0
    %v5982 = vmax.f32 %v5637, 0.0
    %v5983 = vmax.f32 %v5807, 0.0
    %v5984 = vmax.f32 %v5809, 0.0
    %v5985 = vmax.f32 %v5973, 0.0
    %v5986 = vmax.f32 %v5467, 0.0
    %v5987 = vmax.f32 %v5469, 0.0
    %v5988 = vmax.f32 %v5639, 0.0
    %v5989 = vmax.f32 %v5641, 0.0
    %v5990 = vmax.f32 %v5811, 0.0
    %v5991 = vmax.f32 %v5813, 0.0
    %v5992 = vmax.f32 %v5976, 0.0
    %v5993 = vpack.c.bf16 %v5986, %v5979
    %v5994 = vpack.c.bf16 %v5987, %v5980
    %v5995 = vpack.c.bf16 %v5988, %v5981
    %v5996 = vpack.c.bf16 %v5989, %v5982
    %v5997 = vpack.c.bf16 %v5990, %v5983
    %v5998 = vpack.c.bf16 %v5991, %v5984
    %v5999 = vpack.c.bf16 %v5992, %v5985
    %v6000 = vld [vmem:[#allocation11] sm:$0xf]
    %v6001 = vld [vmem:[#allocation11 + $0x4] sm:$0xf]
    %v6002 = vld [vmem:[#allocation11 + $0x8] sm:$0xf]
    %v6003 = vld [vmem:[#allocation11 + $0xc] sm:$0xf]
    %v6004 = vld [vmem:[#allocation11 + $0x10] sm:$0xf]
    %v6005 = vld [vmem:[#allocation11 + $0x14] sm:$0xf]
    %v6006 = vld [vmem:[#allocation11 + $0x18] sm:$0xf]
    %v6007 = vld [vmem:[#allocation11 + $0x1c] sm:$0xf]
    %v6008 = vld [vmem:[#allocation11 + $0x20] sm:$0xf]
    %v6009 = vld [vmem:[#allocation11 + $0x24] sm:$0xf]
    %v6010 = vld [vmem:[#allocation11 + $0x28] sm:$0xf]
    %v6011 = vld [vmem:[#allocation11 + $0x2c] sm:$0xf]
    %v6012 = vld [vmem:[#allocation11 + $0x30] sm:$0xf]
    %v6013 = vld [vmem:[#allocation11 + $0x34] sm:$0xf]
    %v6014 = vld [vmem:[#allocation11 + $0x38] sm:$0xf]
    %v6015 = vld [vmem:[#allocation11 + $0x3c] sm:$0xf]
    %v6016 = vld [vmem:[#allocation11 + $0x40] sm:$0xf]
    %v6017 = vld [vmem:[#allocation11 + $0x44] sm:$0xf]
    %v6018 = vld [vmem:[#allocation11 + $0x48] sm:$0xf]
    %v6019 = vld [vmem:[#allocation11 + $0x4c] sm:$0xf]
    %v6020 = vld [vmem:[#allocation11 + $0x50] sm:$0xf]
    %v6021 = vld [vmem:[#allocation11 + $0x54] sm:$0xf]
    %v6022 = vld [vmem:[#allocation11 + $0x58] sm:$0xf]
    %v6023 = vld [vmem:[#allocation11 + $0x5c] sm:$0xf]
    %v6024 = vld [vmem:[#allocation11 + $0x60] sm:$0xf]
    %v6025 = vld [vmem:[#allocation11 + $0x64] sm:$0xf]
    %v6026 = vld [vmem:[#allocation11 + $0x68] sm:$0xf]
    %v6027 = vld [vmem:[#allocation11 + $0x6c] sm:$0xf]
    %v6028 = vld [vmem:[#allocation11 + $0x70] sm:$0xf]
    %v6029 = vld [vmem:[#allocation11 + $0x74] sm:$0xf]
    %v6030 = vld [vmem:[#allocation11 + $0x78] sm:$0xf]
    %v6031 = vld [vmem:[#allocation11 + $0x7c] sm:$0xf]
    %v6032 = vld [vmem:[#allocation11 + $0x80] sm:$0xf]
    %v6033 = vld [vmem:[#allocation11 + $0x84] sm:$0xf]
    %v6034 = vld [vmem:[#allocation11 + $0x88] sm:$0xf]
    %v6035 = vld [vmem:[#allocation11 + $0x8c] sm:$0xf]
    %v6036 = vld [vmem:[#allocation11 + $0x90] sm:$0xf]
    %v6037 = vld [vmem:[#allocation11 + $0x94] sm:$0xf]
    %v6038 = vld [vmem:[#allocation11 + $0x98] sm:$0xf]
    %v6039 = vld [vmem:[#allocation11 + $0x9c] sm:$0xf]
    %v6040 = vld [vmem:[#allocation11 + $0xa0] sm:$0xf]
    %v6041 = vld [vmem:[#allocation11 + $0xa4] sm:$0xf]
    %v6042 = vld [vmem:[#allocation11 + $0xa8] sm:$0xf]
    %v6043 = vld [vmem:[#allocation11 + $0xac] sm:$0xf]
    %v6044 = vld [vmem:[#allocation11 + $0xb0] sm:$0xf]
    %v6045 = vld [vmem:[#allocation11 + $0xb4] sm:$0xf]
    %v6046 = vld [vmem:[#allocation11 + $0xb8] sm:$0xf]
    %v6047 = vld [vmem:[#allocation11 + $0xbc] sm:$0xf]
    %v6048 = vld [vmem:[#allocation11 + $0xc0] sm:$0xf]
    %v6049 = vld [vmem:[#allocation11 + $0xc4] sm:$0xf]
    %v6050 = vld [vmem:[#allocation11 + $0xc8] sm:$0xf]
    %v6051 = vld [vmem:[#allocation11 + $0xcc] sm:$0xf]
    %v6052 = vld [vmem:[#allocation11 + $0xd0] sm:$0xf]
    %v6053 = vld [vmem:[#allocation11 + $0xd4] sm:$0xf]
    %v6054 = vld [vmem:[#allocation11 + $0xd8] sm:$0xf]
    %v6055 = vld [vmem:[#allocation11 + $0xdc] sm:$0xf]
    %v6056 = vld [vmem:[#allocation11 + $0xe0] sm:$0xf]
    %v6057 = vld [vmem:[#allocation11 + $0xe4] sm:$0xf]
    %v6058 = vld [vmem:[#allocation11 + $0xe8] sm:$0xf]
    %v6059 = vld [vmem:[#allocation11 + $0xec] sm:$0xf]
    %v6060 = vld [vmem:[#allocation11 + $0xf0] sm:$0xf]
    %v6061 = vld [vmem:[#allocation11 + $0xf4] sm:$0xf]
    %v6062 = vld [vmem:[#allocation11 + $0xf8] sm:$0xf]
    %v6063 = vld [vmem:[#allocation11 + $0xfc] sm:$0xf]
    %v6064 = vld [vmem:[#allocation11 + $0x100] sm:$0xf]
    %v6065 = vld [vmem:[#allocation11 + $0x104] sm:$0xf]
    %v6066 = vld [vmem:[#allocation11 + $0x108] sm:$0xf]
    %v6067 = vld [vmem:[#allocation11 + $0x10c] sm:$0xf]
    %v6068 = vld [vmem:[#allocation11 + $0x110] sm:$0xf]
    %v6069 = vld [vmem:[#allocation11 + $0x114] sm:$0xf]
    %v6070 = vld [vmem:[#allocation11 + $0x118] sm:$0xf]
    %v6071 = vld [vmem:[#allocation11 + $0x11c] sm:$0xf]
    %v6072 = vld [vmem:[#allocation11 + $0x120] sm:$0xf]
    %v6073 = vld [vmem:[#allocation11 + $0x124] sm:$0xf]
    %v6074 = vld [vmem:[#allocation11 + $0x128] sm:$0xf]
    %v6075 = vld [vmem:[#allocation11 + $0x12c] sm:$0xf]
    %v6076 = vld [vmem:[#allocation11 + $0x130] sm:$0xf]
    %v6077 = vld [vmem:[#allocation11 + $0x134] sm:$0xf]
    %v6078 = vld [vmem:[#allocation11 + $0x138] sm:$0xf]
    %v6079 = vld [vmem:[#allocation11 + $0x13c] sm:$0xf]
    %v6080 = vld [vmem:[#allocation11 + $0x140] sm:$0xf]
    %v6081 = vld [vmem:[#allocation11 + $0x144] sm:$0xf]
    %v6082 = vld [vmem:[#allocation11 + $0x148] sm:$0xf]
    %v6083 = vld [vmem:[#allocation11 + $0x14c] sm:$0xf]
    %v6084 = vld [vmem:[#allocation11 + $0x150] sm:$0xf]
    %v6085 = vld [vmem:[#allocation11 + $0x154] sm:$0xf]
    %v6086 = vld [vmem:[#allocation11 + $0x158] sm:$0xf]
    %v6087 = vld [vmem:[#allocation11 + $0x15c] sm:$0xf]
    %v6088 = vld [vmem:[#allocation11 + $0x160] sm:$0xf]
    %v6089 = vld [vmem:[#allocation11 + $0x164] sm:$0xf]
    %v6090 = vld [vmem:[#allocation11 + $0x168] sm:$0xf]
    %v6091 = vld [vmem:[#allocation11 + $0x16c] sm:$0xf]
    %v6092 = vld [vmem:[#allocation11 + $0x170] sm:$0xf]
    %v6093 = vld [vmem:[#allocation11 + $0x174] sm:$0xf]
    %v6094 = vld [vmem:[#allocation11 + $0x178] sm:$0xf]
    %v6095 = vld [vmem:[#allocation11 + $0x17c] sm:$0xf]
    %v6096 = vld [vmem:[#allocation11 + $0x180] sm:$0xf]
    %v6097 = vld [vmem:[#allocation11 + $0x184] sm:$0xf]
    %v6098 = vld [vmem:[#allocation11 + $0x188] sm:$0xf]
    %v6099 = vld [vmem:[#allocation11 + $0x18c] sm:$0xf]
    %v6100 = vld [vmem:[#allocation13] sm:$0x1]
    %v6102 = vlaneseq
    %v6103 = vshrl.u32 %v6102, 7
    %v6104 = vsub.s32 0, %v6103
    %v6105 = vrot.slane %v6100, %v6104
    %v6207 = vunpack.c.l.b16 %v6000
    %v6208 = vunpack.c.l.b16 %v6001
    %v6209 = vunpack.c.l.b16 %v6002
    %v6210 = vunpack.c.l.b16 %v6003
    %v6211 = vunpack.c.l.b16 %v6004
    %v6212 = vunpack.c.l.b16 %v6005
    %v6213 = vunpack.c.l.b16 %v6006
    %v6214 = vunpack.c.l.b16 %v6007
    %v6215 = vunpack.c.l.b16 %v6008
    %v6216 = vunpack.c.l.b16 %v6009
    %v6217 = vunpack.c.l.b16 %v6010
    %v6218 = vunpack.c.l.b16 %v6011
    %v6219 = vunpack.c.l.b16 %v6012
    %v6220 = vunpack.c.l.b16 %v6013
    %v6221 = vunpack.c.l.b16 %v6014
    %v6222 = vunpack.c.l.b16 %v6015
    %v6223 = vunpack.c.l.b16 %v6016
    %v6224 = vunpack.c.l.b16 %v6017
    %v6225 = vunpack.c.l.b16 %v6018
    %v6226 = vunpack.c.l.b16 %v6019
    %v6227 = vunpack.c.l.b16 %v6020
    %v6228 = vunpack.c.l.b16 %v6021
    %v6229 = vunpack.c.l.b16 %v6022
    %v6230 = vunpack.c.l.b16 %v6023
    %v6231 = vunpack.c.l.b16 %v6024
    %v6232 = vunpack.c.l.b16 %v6025
    %v6233 = vunpack.c.l.b16 %v6026
    %v6234 = vunpack.c.l.b16 %v6027
    %v6235 = vunpack.c.l.b16 %v6028
    %v6236 = vunpack.c.l.b16 %v6029
    %v6237 = vunpack.c.l.b16 %v6030
    %v6238 = vunpack.c.l.b16 %v6031
    %v6239 = vunpack.c.l.b16 %v6032
    %v6240 = vunpack.c.l.b16 %v6033
    %v6241 = vunpack.c.l.b16 %v6034
    %v6242 = vunpack.c.l.b16 %v6035
    %v6243 = vunpack.c.l.b16 %v6036
    %v6244 = vunpack.c.l.b16 %v6037
    %v6245 = vunpack.c.l.b16 %v6038
    %v6246 = vunpack.c.l.b16 %v6039
    %v6247 = vunpack.c.l.b16 %v6040
    %v6248 = vunpack.c.l.b16 %v6041
    %v6249 = vunpack.c.l.b16 %v6042
    %v6250 = vunpack.c.l.b16 %v6043
    %v6251 = vunpack.c.l.b16 %v6044
    %v6252 = vunpack.c.l.b16 %v6045
    %v6253 = vunpack.c.l.b16 %v6046
    %v6254 = vunpack.c.l.b16 %v6047
    %v6255 = vunpack.c.l.b16 %v6048
    %v6256 = vunpack.c.l.b16 %v6049
    %v6257 = vunpack.c.l.b16 %v6050
    %v6258 = vunpack.c.l.b16 %v6051
    %v6259 = vunpack.c.l.b16 %v6052
    %v6260 = vunpack.c.l.b16 %v6053
    %v6261 = vunpack.c.l.b16 %v6054
    %v6262 = vunpack.c.l.b16 %v6055
    %v6263 = vunpack.c.l.b16 %v6056
    %v6264 = vunpack.c.l.b16 %v6057
    %v6265 = vunpack.c.l.b16 %v6058
    %v6266 = vunpack.c.l.b16 %v6059
    %v6267 = vunpack.c.l.b16 %v6060
    %v6268 = vunpack.c.l.b16 %v6061
    %v6269 = vunpack.c.l.b16 %v6062
    %v6270 = vunpack.c.l.b16 %v6063
    %v6271 = vunpack.c.l.b16 %v6064
    %v6272 = vunpack.c.l.b16 %v6065
    %v6273 = vunpack.c.l.b16 %v6066
    %v6274 = vunpack.c.l.b16 %v6067
    %v6275 = vunpack.c.l.b16 %v6068
    %v6276 = vunpack.c.l.b16 %v6069
    %v6277 = vunpack.c.l.b16 %v6070
    %v6278 = vunpack.c.l.b16 %v6071
    %v6279 = vunpack.c.l.b16 %v6072
    %v6280 = vunpack.c.l.b16 %v6073
    %v6281 = vunpack.c.l.b16 %v6074
    %v6282 = vunpack.c.l.b16 %v6075
    %v6283 = vunpack.c.l.b16 %v6076
    %v6284 = vunpack.c.l.b16 %v6077
    %v6285 = vunpack.c.l.b16 %v6078
    %v6286 = vunpack.c.l.b16 %v6079
    %v6287 = vunpack.c.l.b16 %v6080
    %v6288 = vunpack.c.l.b16 %v6081
    %v6289 = vunpack.c.l.b16 %v6082
    %v6290 = vunpack.c.l.b16 %v6083
    %v6291 = vunpack.c.l.b16 %v6084
    %v6292 = vunpack.c.l.b16 %v6085
    %v6293 = vunpack.c.l.b16 %v6086
    %v6294 = vunpack.c.l.b16 %v6087
    %v6295 = vunpack.c.l.b16 %v6088
    %v6296 = vunpack.c.l.b16 %v6089
    %v6297 = vunpack.c.l.b16 %v6090
    %v6298 = vunpack.c.l.b16 %v6091
    %v6299 = vunpack.c.l.b16 %v6092
    %v6300 = vunpack.c.l.b16 %v6093
    %v6301 = vunpack.c.l.b16 %v6094
    %v6302 = vunpack.c.l.b16 %v6095
    %v6303 = vunpack.c.l.b16 %v6096
    %v6304 = vunpack.c.l.b16 %v6097
    %v6305 = vunpack.c.l.b16 %v6098
    %v6306 = vunpack.c.l.b16 %v6099
    %v6307 = vpack.c.b16 %v6208, %v6207
    %v6308 = vpack.c.b16 %v6210, %v6209
    %v6309 = vpack.c.b16 %v6212, %v6211
    %v6310 = vpack.c.b16 %v6214, %v6213
    %v6311 = vpack.c.b16 %v6216, %v6215
    %v6312 = vpack.c.b16 %v6218, %v6217
    %v6313 = vpack.c.b16 %v6220, %v6219
    %v6314 = vpack.c.b16 %v6222, %v6221
    %v6315 = vpack.c.b16 %v6224, %v6223
    %v6316 = vpack.c.b16 %v6226, %v6225
    %v6317 = vpack.c.b16 %v6228, %v6227
    %v6318 = vpack.c.b16 %v6230, %v6229
    %v6319 = vpack.c.b16 %v6232, %v6231
    %v6320 = vpack.c.b16 %v6234, %v6233
    %v6321 = vpack.c.b16 %v6236, %v6235
    %v6322 = vpack.c.b16 %v6238, %v6237
    %v6323 = vpack.c.b16 %v6240, %v6239
    %v6324 = vpack.c.b16 %v6242, %v6241
    %v6325 = vpack.c.b16 %v6244, %v6243
    %v6326 = vpack.c.b16 %v6246, %v6245
    %v6327 = vpack.c.b16 %v6248, %v6247
    %v6328 = vpack.c.b16 %v6250, %v6249
    %v6329 = vpack.c.b16 %v6252, %v6251
    %v6330 = vpack.c.b16 %v6254, %v6253
    %v6331 = vpack.c.b16 %v6256, %v6255
    %v6332 = vpack.c.b16 %v6258, %v6257
    %v6333 = vpack.c.b16 %v6260, %v6259
    %v6334 = vpack.c.b16 %v6262, %v6261
    %v6335 = vpack.c.b16 %v6264, %v6263
    %v6336 = vpack.c.b16 %v6266, %v6265
    %v6337 = vpack.c.b16 %v6268, %v6267
    %v6338 = vpack.c.b16 %v6270, %v6269
    %v6339 = vpack.c.b16 %v6272, %v6271
    %v6340 = vpack.c.b16 %v6274, %v6273
    %v6341 = vpack.c.b16 %v6276, %v6275
    %v6342 = vpack.c.b16 %v6278, %v6277
    %v6343 = vpack.c.b16 %v6280, %v6279
    %v6344 = vpack.c.b16 %v6282, %v6281
    %v6345 = vpack.c.b16 %v6284, %v6283
    %v6346 = vpack.c.b16 %v6286, %v6285
    %v6347 = vpack.c.b16 %v6288, %v6287
    %v6348 = vpack.c.b16 %v6290, %v6289
    %v6349 = vpack.c.b16 %v6292, %v6291
    %v6350 = vpack.c.b16 %v6294, %v6293
    %v6351 = vpack.c.b16 %v6296, %v6295
    %v6352 = vpack.c.b16 %v6298, %v6297
    %v6353 = vpack.c.b16 %v6300, %v6299
    %v6354 = vpack.c.b16 %v6302, %v6301
    %v6355 = vpack.c.b16 %v6304, %v6303
    %v6356 = vpack.c.b16 %v6306, %v6305
    %v6408 = vsel %vm5295, %v5999, 0
    %6410 = vmatprep.subr.bf16.mxu0 0
    %6411 = vmatpush1.bf16.msra.mxu0 %v6314
    %6412 = vmatprep.subr.bf16.mxu0 0
    %6413 = vmatpush1.bf16.msra.mxu0 %v6313
    %6414 = vmatprep.subr.bf16.mxu0 0
    %6415 = vmatpush1.bf16.msra.mxu0 %v6312
    %6416 = vmatprep.subr.bf16.mxu0 0
    %6417 = vmatpush1.bf16.msra.mxu0 %v6311
    %6418 = vmatprep.subr.bf16.mxu0 0
    %6419 = vmatpush1.bf16.msra.mxu0 %v6310
    %6420 = vmatprep.subr.bf16.mxu0 0
    %6421 = vmatpush1.bf16.msra.mxu0 %v6309
    %6422 = vmatprep.subr.bf16.mxu0 0
    %6423 = vmatpush1.bf16.msra.mxu0 %v6308
    %6424 = vmatprep.subr.bf16.mxu0 0
    %6425 = vmatpush1.bf16.msra.mxu0 %v6307
    %6426 = vmatprep.subr.bf16.mxu0 0
    %6427 = vmatpush2.bf16.msra.mxu0 %v6322
    %6428 = vmatprep.subr.bf16.mxu0 0
    %6429 = vmatpush2.bf16.msra.mxu0 %v6321
    %6430 = vmatprep.subr.bf16.mxu0 0
    %6431 = vmatpush2.bf16.msra.mxu0 %v6320
    %6432 = vmatprep.subr.bf16.mxu0 0
    %6433 = vmatpush2.bf16.msra.mxu0 %v6319
    %6434 = vmatprep.subr.bf16.mxu0 0
    %6435 = vmatpush2.bf16.msra.mxu0 %v6318
    %6436 = vmatprep.subr.bf16.mxu0 0
    %6437 = vmatpush2.bf16.msra.mxu0 %v6317
    %6438 = vmatprep.subr.bf16.mxu0 0
    %6439 = vmatpush2.bf16.msra.mxu0 %v6316
    %6440 = vmatprep.subr.bf16.mxu0 0
    %6441 = vmatpush2.bf16.msra.mxu0 %v6315
    %6442 = vmatprep.mubr.bf16.mxu0 %v5994
    %6443 = vmatmul.mubr.bf16.gmra.mxu0 %v5993
    %v6444 = vpop.f32.mrf.mxu0
    %v6445 = vadd.f32 %v6105, %v6444
    %v6446 = vpop.f32.mrf.mxu0
    %v6447 = vpop.f32.mrf.mxu0
    %v6448 = vadd.f32 %v6105, %v6447
    %v6449 = vpop.f32.mrf.mxu0
    %6450 = vdwg.mxu0
    %6451 = vmatprep.subr.bf16.mxu0 0
    %6452 = vmatpush1.bf16.msra.mxu0 %v6330
    %6453 = vmatprep.subr.bf16.mxu0 0
    %6454 = vmatpush1.bf16.msra.mxu0 %v6329
    %6455 = vmatprep.subr.bf16.mxu0 0
    %6456 = vmatpush1.bf16.msra.mxu0 %v6328
    %6457 = vmatprep.subr.bf16.mxu0 0
    %6458 = vmatpush1.bf16.msra.mxu0 %v6327
    %6459 = vmatprep.subr.bf16.mxu0 0
    %6460 = vmatpush1.bf16.msra.mxu0 %v6326
    %6461 = vmatprep.subr.bf16.mxu0 0
    %6462 = vmatpush1.bf16.msra.mxu0 %v6325
    %6463 = vmatprep.subr.bf16.mxu0 0
    %6464 = vmatpush1.bf16.msra.mxu0 %v6324
    %6465 = vmatprep.subr.bf16.mxu0 0
    %6466 = vmatpush1.bf16.msra.mxu0 %v6323
    %6467 = vmatprep.subr.bf16.mxu0 0
    %6468 = vmatpush2.bf16.msra.mxu0 %v6338
    %6469 = vmatprep.subr.bf16.mxu0 0
    %6470 = vmatpush2.bf16.msra.mxu0 %v6337
    %6471 = vmatprep.subr.bf16.mxu0 0
    %6472 = vmatpush2.bf16.msra.mxu0 %v6336
    %6473 = vmatprep.subr.bf16.mxu0 0
    %6474 = vmatpush2.bf16.msra.mxu0 %v6335
    %6475 = vmatprep.subr.bf16.mxu0 0
    %6476 = vmatpush2.bf16.msra.mxu0 %v6334
    %6477 = vmatprep.subr.bf16.mxu0 0
    %6478 = vmatpush2.bf16.msra.mxu0 %v6333
    %6479 = vmatprep.subr.bf16.mxu0 0
    %6480 = vmatpush2.bf16.msra.mxu0 %v6332
    %6481 = vmatprep.subr.bf16.mxu0 0
    %6482 = vmatpush2.bf16.msra.mxu0 %v6331
    %6483 = vmatprep.mubr.bf16.mxu0 %v5996
    %6484 = vmatmul.mubr.bf16.gmra.mxu0 %v5995
    %v6485 = vpop.f32.mrf.mxu0
    %v6486 = vadd.f32 %v6445, %v6485
    %v6487 = vpop.f32.mrf.mxu0
    %v6488 = vpop.f32.mrf.mxu0
    %v6489 = vadd.f32 %v6448, %v6488
    %v6490 = vpop.f32.mrf.mxu0
    %6491 = vdwg.mxu0
    %6492 = vmatprep.subr.bf16.mxu0 0
    %6493 = vmatpush1.bf16.msra.mxu0 %v6346
    %6494 = vmatprep.subr.bf16.mxu0 0
    %6495 = vmatpush1.bf16.msra.mxu0 %v6345
    %6496 = vmatprep.subr.bf16.mxu0 0
    %6497 = vmatpush1.bf16.msra.mxu0 %v6344
    %6498 = vmatprep.subr.bf16.mxu0 0
    %6499 = vmatpush1.bf16.msra.mxu0 %v6343
    %6500 = vmatprep.subr.bf16.mxu0 0
    %6501 = vmatpush1.bf16.msra.mxu0 %v6342
    %6502 = vmatprep.subr.bf16.mxu0 0
    %6503 = vmatpush1.bf16.msra.mxu0 %v6341
    %6504 = vmatprep.subr.bf16.mxu0 0
    %6505 = vmatpush1.bf16.msra.mxu0 %v6340
    %6506 = vmatprep.subr.bf16.mxu0 0
    %6507 = vmatpush1.bf16.msra.mxu0 %v6339
    %6508 = vmatprep.subr.bf16.mxu0 0
    %6509 = vmatpush2.bf16.msra.mxu0 %v6354
    %6510 = vmatprep.subr.bf16.mxu0 0
    %6511 = vmatpush2.bf16.msra.mxu0 %v6353
    %6512 = vmatprep.subr.bf16.mxu0 0
    %6513 = vmatpush2.bf16.msra.mxu0 %v6352
    %6514 = vmatprep.subr.bf16.mxu0 0
    %6515 = vmatpush2.bf16.msra.mxu0 %v6351
    %6516 = vmatprep.subr.bf16.mxu0 0
    %6517 = vmatpush2.bf16.msra.mxu0 %v6350
    %6518 = vmatprep.subr.bf16.mxu0 0
    %6519 = vmatpush2.bf16.msra.mxu0 %v6349
    %6520 = vmatprep.subr.bf16.mxu0 0
    %6521 = vmatpush2.bf16.msra.mxu0 %v6348
    %6522 = vmatprep.subr.bf16.mxu0 0
    %6523 = vmatpush2.bf16.msra.mxu0 %v6347
    %6524 = vmatprep.mubr.bf16.mxu0 %v5998
    %6525 = vmatmul.mubr.bf16.gmra.mxu0 %v5997
    %v6526 = vpop.f32.mrf.mxu0
    %v6527 = vadd.f32 %v6486, %v6526
    %v6528 = vpop.f32.mrf.mxu0
    %v6529 = vpop.f32.mrf.mxu0
    %v6530 = vadd.f32 %v6489, %v6529
    %v6531 = vpop.f32.mrf.mxu0
    %6532 = vdwg.mxu0
    %6533 = vmatprep.subr.bf16.mxu0 0
    %6534 = vmatpush1.bf16.msra.mxu0 0
    %6535 = vmatprep.subr.bf16.mxu0 0
    %6536 = vmatpush1.bf16.msra.mxu0 0
    %6537 = vmatprep.subr.bf16.mxu0 0
    %6538 = vmatpush1.bf16.msra.mxu0 0
    %6539 = vmatprep.subr.bf16.mxu0 0
    %6540 = vmatpush1.bf16.msra.mxu0 0
    %6541 = vmatprep.subr.bf16.mxu0 0
    %6542 = vmatpush1.bf16.msra.mxu0 0
    %6543 = vmatprep.subr.bf16.mxu0 0
    %6544 = vmatpush1.bf16.msra.mxu0 0
    %6545 = vmatprep.subr.bf16.mxu0 0
    %6546 = vmatpush1.bf16.msra.mxu0 %v6356
    %6547 = vmatprep.subr.bf16.mxu0 0
    %6548 = vmatpush1.bf16.msra.mxu0 %v6355
    %6549 = vmatprep.subr.bf16.mxu0 0
    %6550 = vmatpush2.bf16.msra.mxu0 0
    %6551 = vmatprep.subr.bf16.mxu0 0
    %6552 = vmatpush2.bf16.msra.mxu0 0
    %6553 = vmatprep.subr.bf16.mxu0 0
    %6554 = vmatpush2.bf16.msra.mxu0 0
    %6555 = vmatprep.subr.bf16.mxu0 0
    %6556 = vmatpush2.bf16.msra.mxu0 0
    %6557 = vmatprep.subr.bf16.mxu0 0
    %6558 = vmatpush2.bf16.msra.mxu0 0
    %6559 = vmatprep.subr.bf16.mxu0 0
    %6560 = vmatpush2.bf16.msra.mxu0 0
    %6561 = vmatprep.subr.bf16.mxu0 0
    %6562 = vmatpush2.bf16.msra.mxu0 0
    %6563 = vmatprep.subr.bf16.mxu0 0
    %6564 = vmatpush2.bf16.msra.mxu0 0
    %6565 = vmatprep.mubr.bf16.mxu0 0
    %6566 = vmatmul.mubr.bf16.gmra.mxu0 %v6408
    %v6567 = vpop.f32.mrf.mxu0
    %v6568 = vadd.f32 %v6527, %v6567
    %v6569 = vpop.f32.mrf.mxu0
    %v6570 = vpop.f32.mrf.mxu0
    %v6571 = vadd.f32 %v6530, %v6570
    %v6572 = vpop.f32.mrf.mxu0
    %6573 = vdwg.mxu0
    %6574 = vst [vmem:[#allocation14] sm:$0xff] %v6568
    %6575 = vst [vmem:[#allocation14 + $0x8] sm:$0xff] %v6571
    // Predicated region
    $region58: #{tpu_custom_call.1} parent=1 // pred_check
      _
    $region59: #{tpu_custom_call.1} parent=1 // pred_check_branch
      %6577 = sbr.rel (0) target = $region61
    $region60: #{tpu_custom_call.1} parent=1 // pred_region
      %s6579 = ssub.s32 256, 256
      %6580 = vsyncadd [#allocation4], %s6579
      %s6581 = sshll.u32 [#allocation14], 4
      %s6582 = int_to_ptr.vmem [resolvable:$true] %s6581
      %6587 = dma.vmem_to_hbm [thread:$0]  %s6582, 256, %s7, [#allocation4], 128, 128, 8
    $region61: #{tpu_custom_call.1} parent=1 // pred_fallthru
      _
    // Predicated region
    $region62: #{tpu_custom_call.1} parent=1 // pred_check
      _
    $region63: #{tpu_custom_call.1} parent=1 // pred_check_branch
      %6589 = sbr.rel (0) target = $region65
    $region64: #{tpu_custom_call.1} parent=1 // pred_region
      %6590 = dma.done [#allocation4], 256
    $region65: #{tpu_custom_call.1} parent=1 // pred_fallthru
      _
    %6591 = vsyncpa [#allocation3], 1
    %6592 = vsyncpa [#allocation6], 1
    %6593 = vsyncpa [#allocation9], 1
    %6594 = vsyncpa [#allocation12], 1
    %6595 = vsyncpa [#allocation4], 1

</llo_original>
